<compile_context>
chip_gen: v7x
topology: tpu7x:2x2x1
jax: 0.10.0
libtpu: 0.0.40
codegen_flags: <defaults>
</compile_context>

<pallas_src>
import functools

import jax
import jax.numpy as jnp
from jax import lax
from jax.experimental import pallas as pl
from jax.experimental.pallas import tpu as pltpu


# ----------------------------- helpers --------------------------------------


def _round_up(x, m):
    return ((x + m - 1) // m) * m


def _pick_row_tile(hw, k, cout, out_itemsize, max_row_tile=512,
                   vmem_budget_bytes=12 << 20):
    """Row tile for the matmul (multiple of 16).

    Prefers an exact divisor of `hw` (no row-padding copy); otherwise the
    largest 16-aligned tile that keeps 3 double-buffered bf16 patch blocks +
    the double-buffered output block + f32 accumulator temps in budget.
    """
    per_row = 3 * 2 * (2 * k) + 2 * (out_itemsize * cout) + 4 * cout
    cap = min(max_row_tile, max(16, vmem_budget_bytes // max(per_row, 1)))
    cap = max(16, (cap // 16) * 16)
    cap = min(cap, _round_up(hw, 16))
    for t in range(cap, 15, -16):
        if hw % t == 0:
            return t
    return cap


# ----------------------- fused conv3x3x3 + BN + LeakyReLU --------------------


def _conv_bn_lrelu_kernel(p0_ref, p1_ref, p2_ref, w0_ref, w1_ref, w2_ref,
                          scale_ref, shift_ref, o_ref, *, negative_slope):
    # p*_ref:    (1, 1, tm, 9*Cin)  patches at padded depths d, d+1, d+2
    # w*_ref:    (1, 9*Cin, Cout)   weight taps for kd = 0, 1, 2
    # scale_ref: (1, Cout)          folded BN scale (f32)
    # shift_ref: (1, Cout)          folded BN shift (f32)
    # o_ref:     (1, 1, tm, Cout)
    acc = jnp.dot(p0_ref[0, 0], w0_ref[0], preferred_element_type=jnp.float32)
    acc = acc + jnp.dot(p1_ref[0, 0], w1_ref[0],
                        preferred_element_type=jnp.float32)
    acc = acc + jnp.dot(p2_ref[0, 0], w2_ref[0],
                        preferred_element_type=jnp.float32)
    y = acc * scale_ref[...] + shift_ref[...]
    y = jnp.where(y > 0, y, negative_slope * y)          # LeakyReLU(0.01)
    o_ref[0, 0] = y.astype(o_ref.dtype)


def _patch_idx(b, d, r, *, kd):
    return (b, d + kd, r, 0)


def _weight_idx(b, d, r, *, kd):
    return (kd, 0, 0)


def _bn_idx(b, d, r):
    return (0, 0)


def _out_idx(b, d, r):
    return (b, d, r, 0)


def conv3x3_bn_lrelu(x_cl, weight, bn_gamma, bn_beta, bn_mean, bn_var, *,
                     eps=1e-5, negative_slope=0.01,
                     compute_dtype=jnp.bfloat16, out_dtype=None,
                     max_row_tile=512):
    """Fused Conv3d(k=3, pad=1, stride=1, no bias) + BatchNorm3d(eval) + LeakyReLU.

    x_cl:   (B, D, H, W, Cin)  channels-last
    weight: (Cout, Cin, 3, 3, 3)  (PyTorch Conv3d layout)
    Returns (B, D, H, W, Cout) in `out_dtype`.
    """
    B, D, H, W, C = x_cl.shape
    Cout = weight.shape[0]
    assert weight.shape == (Cout, C, 3, 3, 3), weight.shape
    out_dtype = out_dtype if out_dtype is not None else x_cl.dtype

    # --- XLA glue (bf16): zero-pad, fold the 9 in-plane taps into channels ---
    xq = x_cl.astype(compute_dtype)
    xp = jnp.pad(xq, ((0, 0), (1, 1), (1, 1), (1, 1), (0, 0)))
    cols = [xp[:, :, kh:kh + H, kw:kw + W, :]
            for kh in range(3) for kw in range(3)]
    patches = jnp.concatenate(cols, axis=-1)          # (B, D+2, H, W, 9*C)
    HW = H * W
    K9 = 9 * C
    patches = patches.reshape(B, D + 2, HW, K9)

    tm = _pick_row_tile(HW, K9, Cout, jnp.dtype(out_dtype).itemsize,
                        max_row_tile=max_row_tile)
    HWp = _round_up(HW, tm)
    if HWp != HW:
        patches = jnp.pad(patches, ((0, 0), (0, 0), (0, HWp - HW), (0, 0)))

    # Conv weight -> (kd, 9*Cin, Cout); (kh, kw, ci) ordering matches patches.
    w_mat = jnp.transpose(weight, (2, 3, 4, 1, 0)).reshape(3, K9, Cout)
    w_mat = w_mat.astype(compute_dtype)

    # Fold BatchNorm (inference) into per-channel scale / shift (f32).
    scale_v = bn_gamma / jnp.sqrt(bn_var + eps)
    shift_v = bn_beta - bn_mean * scale_v
    scale = scale_v.astype(jnp.float32).reshape(1, Cout)
    shift = shift_v.astype(jnp.float32).reshape(1, Cout)

    grid = (B, D, HWp // tm)

    in_specs = (
        [pl.BlockSpec((1, 1, tm, K9), functools.partial(_patch_idx, kd=kd))
         for kd in range(3)]
        + [pl.BlockSpec((1, K9, Cout), functools.partial(_weight_idx, kd=kd))
           for kd in range(3)]
        + [pl.BlockSpec((1, Cout), _bn_idx),
           pl.BlockSpec((1, Cout), _bn_idx)]
    )

    in_item = jnp.dtype(compute_dtype).itemsize
    out_item = jnp.dtype(out_dtype).itemsize
    cost = pl.CostEstimate(
        flops=2 * B * D * HWp * K9 * Cout * 3,
        transcendentals=0,
        bytes_accessed=(3 * B * D * HWp * K9 * in_item
                        + B * D * HWp * Cout * out_item
                        + 3 * K9 * Cout * in_item),
    )

    out = pl.pallas_call(
        functools.partial(_conv_bn_lrelu_kernel,
                          negative_slope=negative_slope),
        out_shape=jax.ShapeDtypeStruct((B, D, HWp, Cout), out_dtype),
        grid_spec=pltpu.PrefetchScalarGridSpec(
            num_scalar_prefetch=0,
            grid=grid,
            in_specs=in_specs,
            out_specs=pl.BlockSpec((1, 1, tm, Cout), _out_idx),
        ),
        compiler_params=pltpu.CompilerParams(
            dimension_semantics=("parallel", "parallel", "parallel")),
        cost_estimate=cost,
    )(patches, patches, patches, w_mat, w_mat, w_mat, scale, shift)

    out = out[:, :, :HW, :].reshape(B, D, H, W, Cout)
    return out


# ----------------------- trilinear x2 upsample (XLA glue) --------------------


def _upsample_x2_linear(x, axis):
    """Gather-free 1-D linear x2 upsample (torch align_corners=False).

    For scale=2, align_corners=False the weights are fixed:
      out[2i]   = 0.25*x[i-1] + 0.75*x[i]   (clamped at the border)
      out[2i+1] = 0.75*x[i]   + 0.25*x[i+1] (clamped at the border)
    """
    n = x.shape[axis]
    first = lax.slice_in_dim(x, 0, 1, axis=axis)
    last = lax.slice_in_dim(x, n - 1, n, axis=axis)
    prev_ = jnp.concatenate([first, lax.slice_in_dim(x, 0, n - 1, axis=axis)],
                            axis=axis)
    next_ = jnp.concatenate([lax.slice_in_dim(x, 1, n, axis=axis), last],
                            axis=axis)
    even = 0.25 * prev_ + 0.75 * x
    odd = 0.75 * x + 0.25 * next_
    out = jnp.stack([even, odd], axis=axis + 1)
    new_shape = list(x.shape)
    new_shape[axis] = 2 * n
    return out.reshape(new_shape)


def upsample_trilinear_x2(x_cl):
    """x_cl: (B, D, H, W, C) -> (B, 2D, 2H, 2W, C); separable trilinear."""
    x_cl = _upsample_x2_linear(x_cl, 1)
    x_cl = _upsample_x2_linear(x_cl, 2)
    x_cl = _upsample_x2_linear(x_cl, 3)
    return x_cl


# ------------------------------ DecoderBlock ---------------------------------


def decoder_block_forward(x, skip, params, *, eps=1e-5, negative_slope=0.01):
    """DecoderBlock.forward.

    x:    (B, Cin, D, H, W)              (NCDHW, like the PyTorch module)
    skip: (B, Cskip, 2D, 2H, 2W) or None
    Returns (B, Cout, 2D, 2H, 2W) float32.
    """
    x_cl = jnp.transpose(x, (0, 2, 3, 4, 1)).astype(jnp.float32)
    x_cl = upsample_trilinear_x2(x_cl).astype(jnp.bfloat16)
    if skip is not None:
        skip_cl = jnp.transpose(skip, (0, 2, 3, 4, 1)).astype(jnp.bfloat16)
        x_cl = jnp.concatenate([x_cl, skip_cl], axis=-1)

    h = conv3x3_bn_lrelu(
        x_cl, params["conv1_w"], params["bn1_gamma"], params["bn1_beta"],
        params["bn1_mean"], params["bn1_var"],
        eps=eps, negative_slope=negative_slope, out_dtype=jnp.bfloat16)
    y = conv3x3_bn_lrelu(
        h, params["conv2_w"], params["bn2_gamma"], params["bn2_beta"],
        params["bn2_mean"], params["bn2_var"],
        eps=eps, negative_slope=negative_slope, out_dtype=jnp.float32)

    return jnp.transpose(y, (0, 4, 1, 2, 3))


# --------------------------- pure-JAX reference ------------------------------


def _upsample_x2_linear_ref(x, axis):
    """Independent gather-based reference for the x2 linear upsample."""
    n = x.shape[axis]
    o = jnp.arange(2 * n, dtype=jnp.float32)
    src = jnp.maximum((o + 0.5) / 2.0 - 0.5, 0.0)
    i0 = jnp.floor(src).astype(jnp.int32)
    i1 = jnp.minimum(i0 + 1, n - 1)
    w = src - i0.astype(jnp.float32)
    x0 = jnp.take(x, i0, axis=axis)
    x1 = jnp.take(x, i1, axis=axis)
    shape = [1] * x.ndim
    shape[axis] = 2 * n
    w = w.reshape(shape)
    return x0 * (1.0 - w) + x1 * w


def _reference_forward(x, skip, params, eps=1e-5, ns=0.01):
    def up(x_ncdhw):
        x_cl = jnp.transpose(x_ncdhw, (0, 2, 3, 4, 1))
        for ax in (1, 2, 3):
            x_cl = _upsample_x2_linear_ref(x_cl, ax)
        return jnp.transpose(x_cl, (0, 4, 1, 2, 3))

    def conv_bn_lrelu(x_ncdhw, w, g, b, m, v):
        y = lax.conv_general_dilated(
            x_ncdhw.astype(jnp.float32), w.astype(jnp.float32),
            window_strides=(1, 1, 1), padding=[(1, 1), (1, 1), (1, 1)],
            dimension_numbers=("NCDHW", "OIDHW", "NCDHW"))
        scale = g / jnp.sqrt(v + eps)
        shift = b - m * scale
        y = y * scale.reshape(1, -1, 1, 1, 1) + shift.reshape(1, -1, 1, 1, 1)
        return jnp.where(y > 0, y, ns * y)

    x = up(x.astype(jnp.float32))
    if skip is not None:
        x = jnp.concatenate([x, skip.astype(jnp.float32)], axis=1)
    x = conv_bn_lrelu(x, params["conv1_w"], params["bn1_gamma"],
                      params["bn1_beta"], params["bn1_mean"], params["bn1_var"])
    x = conv_bn_lrelu(x, params["conv2_w"], params["bn2_gamma"],
                      params["bn2_beta"], params["bn2_mean"], params["bn2_var"])
    return x


# ---------------------------------- demo -------------------------------------


if __name__ == "__main__":
    B = 2
    in_ch, skip_ch, out_ch = 16, 8, 16
    D, H, W = 4, 8, 8                      # pre-upsample spatial size

    key = jax.random.PRNGKey(0)
    ks = jax.random.split(key, 12)

    x = jax.random.normal(ks[0], (B, in_ch, D, H, W), dtype=jnp.float32)
    skip = jax.random.normal(ks[1], (B, skip_ch, 2 * D, 2 * H, 2 * W),
                             dtype=jnp.float32)

    c1_in = in_ch + skip_ch
    params = dict(
        conv1_w=0.05 * jax.random.normal(ks[2], (out_ch, c1_in, 3, 3, 3), jnp.float32),
        bn1_gamma=1.0 + 0.05 * jax.random.normal(ks[3], (out_ch,), jnp.float32),
        bn1_beta=0.05 * jax.random.normal(ks[4], (out_ch,), jnp.float32),
        bn1_mean=0.05 * jax.random.normal(ks[5], (out_ch,), jnp.float32),
        bn1_var=1.0 + 0.1 * jax.random.uniform(ks[6], (out_ch,), jnp.float32),
        conv2_w=0.05 * jax.random.normal(ks[7], (out_ch, out_ch, 3, 3, 3), jnp.float32),
        bn2_gamma=1.0 + 0.05 * jax.random.normal(ks[8], (out_ch,), jnp.float32),
        bn2_beta=0.05 * jax.random.normal(ks[9], (out_ch,), jnp.float32),
        bn2_mean=0.05 * jax.random.normal(ks[10], (out_ch,), jnp.float32),
        bn2_var=1.0 + 0.1 * jax.random.uniform(ks[11], (out_ch,), jnp.float32),
    )

    out = jax.jit(decoder_block_forward)(x, skip, params)
    out = jax.block_until_ready(out)

    ref = _reference_forward(x, skip, params)
    assert out.shape == ref.shape == (B, out_ch, 2 * D, 2 * H, 2 * W), (
        out.shape, ref.shape)
    max_err = float(jnp.max(jnp.abs(out - ref)))
    # bf16 MXU operands + bf16 inter-layer activation -> relaxed tolerance.
    assert jnp.allclose(out, ref, atol=5e-2, rtol=5e-2), max_err

    print("KERNEL_OK")
</pallas_src>

<mosaic_0001>
module attributes {stable_mosaic.version = 11 : i64} {
  func.func @_conv_bn_lrelu_kernel(%arg0: i32, %arg1: i32, %arg2: i32, %arg3: memref<1x1x256x216xbf16, #tpu.memory_space<vmem>>, %arg4: memref<1x1x256x216xbf16, #tpu.memory_space<vmem>>, %arg5: memref<1x1x256x216xbf16, #tpu.memory_space<vmem>>, %arg6: memref<1x216x16xbf16, #tpu.memory_space<vmem>>, %arg7: memref<1x216x16xbf16, #tpu.memory_space<vmem>>, %arg8: memref<1x216x16xbf16, #tpu.memory_space<vmem>>, %arg9: memref<1x16xf32, #tpu.memory_space<vmem>>, %arg10: memref<1x16xf32, #tpu.memory_space<vmem>>, %arg11: memref<1x1x256x16xbf16, #tpu.memory_space<vmem>>) attributes {dimension_semantics = [#tpu.dimension_semantics<parallel>, #tpu.dimension_semantics<parallel>, #tpu.dimension_semantics<parallel>], iteration_bounds = array<i64: 2, 8, 1>, scalar_prefetch = 0 : i64, scratch_operands = 0 : i64, tpu.core_type = #tpu.core_type<tc>, window_params = [{transform_indices = @transform_0, window_bounds = array<i64: 1, 1, 256, 216>}, {transform_indices = @transform_1, window_bounds = array<i64: 1, 1, 256, 216>}, {transform_indices = @transform_2, window_bounds = array<i64: 1, 1, 256, 216>}, {transform_indices = @transform_3, window_bounds = array<i64: 1, 216, 16>}, {transform_indices = @transform_4, window_bounds = array<i64: 1, 216, 16>}, {transform_indices = @transform_5, window_bounds = array<i64: 1, 216, 16>}, {pipeline_mode = #tpu.pipeline_mode<synchronous>, transform_indices = @transform_6, window_bounds = array<i64: 1, 16>}, {pipeline_mode = #tpu.pipeline_mode<synchronous>, transform_indices = @transform_7, window_bounds = array<i64: 1, 16>}, {transform_indices = @transform_8, window_bounds = array<i64: 1, 1, 256, 16>}]} {
    %c0 = arith.constant 0 : index
    %c0_0 = arith.constant 0 : index
    %c0_1 = arith.constant 0 : index
    %c0_2 = arith.constant 0 : index
    %0 = vector.load %arg3[%c0, %c0_0, %c0_1, %c0_2] : memref<1x1x256x216xbf16, #tpu.memory_space<vmem>>, vector<1x1x256x216xbf16>
    %1 = vector.shape_cast %0 : vector<1x1x256x216xbf16> to vector<256x216xbf16>
    %c0_3 = arith.constant 0 : index
    %c0_4 = arith.constant 0 : index
    %c0_5 = arith.constant 0 : index
    %2 = vector.load %arg6[%c0_3, %c0_4, %c0_5] : memref<1x216x16xbf16, #tpu.memory_space<vmem>>, vector<1x216x16xbf16>
    %3 = vector.shape_cast %2 : vector<1x216x16xbf16> to vector<216x16xbf16>
    %cst = arith.constant dense<0.000000e+00> : vector<256x16xf32>
    %4 = tpu.matmul %1, %3, %cst {dimension_numbers = #tpu.dot_dimension_numbers<[1], [0], [0], [1], [0, 0, 1, 1], [], []>} : vector<256x216xbf16>, vector<216x16xbf16>, vector<256x16xf32> -> vector<256x16xf32>
    %c0_6 = arith.constant 0 : index
    %c0_7 = arith.constant 0 : index
    %c0_8 = arith.constant 0 : index
    %c0_9 = arith.constant 0 : index
    %5 = vector.load %arg4[%c0_6, %c0_7, %c0_8, %c0_9] : memref<1x1x256x216xbf16, #tpu.memory_space<vmem>>, vector<1x1x256x216xbf16>
    %6 = vector.shape_cast %5 : vector<1x1x256x216xbf16> to vector<256x216xbf16>
    %c0_10 = arith.constant 0 : index
    %c0_11 = arith.constant 0 : index
    %c0_12 = arith.constant 0 : index
    %7 = vector.load %arg7[%c0_10, %c0_11, %c0_12] : memref<1x216x16xbf16, #tpu.memory_space<vmem>>, vector<1x216x16xbf16>
    %8 = vector.shape_cast %7 : vector<1x216x16xbf16> to vector<216x16xbf16>
    %cst_13 = arith.constant dense<0.000000e+00> : vector<256x16xf32>
    %9 = tpu.matmul %6, %8, %cst_13 {dimension_numbers = #tpu.dot_dimension_numbers<[1], [0], [0], [1], [0, 0, 1, 1], [], []>} : vector<256x216xbf16>, vector<216x16xbf16>, vector<256x16xf32> -> vector<256x16xf32>
    %10 = arith.addf %4, %9 : vector<256x16xf32>
    %c0_14 = arith.constant 0 : index
    %c0_15 = arith.constant 0 : index
    %c0_16 = arith.constant 0 : index
    %c0_17 = arith.constant 0 : index
    %11 = vector.load %arg5[%c0_14, %c0_15, %c0_16, %c0_17] : memref<1x1x256x216xbf16, #tpu.memory_space<vmem>>, vector<1x1x256x216xbf16>
    %12 = vector.shape_cast %11 : vector<1x1x256x216xbf16> to vector<256x216xbf16>
    %c0_18 = arith.constant 0 : index
    %c0_19 = arith.constant 0 : index
    %c0_20 = arith.constant 0 : index
    %13 = vector.load %arg8[%c0_18, %c0_19, %c0_20] : memref<1x216x16xbf16, #tpu.memory_space<vmem>>, vector<1x216x16xbf16>
    %14 = vector.shape_cast %13 : vector<1x216x16xbf16> to vector<216x16xbf16>
    %cst_21 = arith.constant dense<0.000000e+00> : vector<256x16xf32>
    %15 = tpu.matmul %12, %14, %cst_21 {dimension_numbers = #tpu.dot_dimension_numbers<[1], [0], [0], [1], [0, 0, 1, 1], [], []>} : vector<256x216xbf16>, vector<216x16xbf16>, vector<256x16xf32> -> vector<256x16xf32>
    %16 = arith.addf %10, %15 : vector<256x16xf32>
    %c0_22 = arith.constant 0 : index
    %c0_23 = arith.constant 0 : index
    %17 = vector.load %arg9[%c0_22, %c0_23] : memref<1x16xf32, #tpu.memory_space<vmem>>, vector<1x16xf32>
    %18 = vector.broadcast %17 : vector<1x16xf32> to vector<256x16xf32>
    %19 = arith.mulf %16, %18 : vector<256x16xf32>
    %c0_24 = arith.constant 0 : index
    %c0_25 = arith.constant 0 : index
    %20 = vector.load %arg10[%c0_24, %c0_25] : memref<1x16xf32, #tpu.memory_space<vmem>>, vector<1x16xf32>
    %21 = vector.broadcast %20 : vector<1x16xf32> to vector<256x16xf32>
    %22 = arith.addf %19, %21 : vector<256x16xf32>
    %cst_26 = arith.constant 0.000000e+00 : f32
    %23 = vector.broadcast %cst_26 : f32 to vector<256x16xf32>
    %24 = arith.cmpf ogt, %22, %23 : vector<256x16xf32>
    %cst_27 = arith.constant 0.00999999977 : f32
    %25 = vector.broadcast %cst_27 : f32 to vector<256x16xf32>
    %26 = arith.mulf %25, %22 : vector<256x16xf32>
    %27 = arith.select %24, %22, %26 : vector<256x16xi1>, vector<256x16xf32>
    %28 = arith.truncf %27 : vector<256x16xf32> to vector<256x16xbf16>
    %c0_28 = arith.constant 0 : index
    %c0_29 = arith.constant 0 : index
    %c0_30 = arith.constant 0 : index
    %c0_31 = arith.constant 0 : index
    %29 = vector.load %arg11[%c0_28, %c0_29, %c0_30, %c0_31] : memref<1x1x256x16xbf16, #tpu.memory_space<vmem>>, vector<1x1x256x16xbf16>
    %30 = vector.shape_cast %29 : vector<1x1x256x16xbf16> to vector<256x16xbf16>
    %31 = vector.shape_cast %28 : vector<256x16xbf16> to vector<1x1x256x16xbf16>
    tpu.vector_store %arg11[%c0_28, %c0_29, %c0_30, %c0_31], %31 {strides = array<i32>} : memref<1x1x256x16xbf16, #tpu.memory_space<vmem>>, vector<1x1x256x16xbf16>,
    return
  }
  func.func @transform_0(%arg0: i32, %arg1: i32, %arg2: i32) -> (i32, i32, i32, i32) {
    %c0_i32 = arith.constant 0 : i32
    %0 = arith.addi %arg1, %c0_i32 : i32
    %c0_i32_0 = arith.constant 0 : i32
    %c0_i32_1 = arith.constant 0 : i32
    return %arg0, %0, %arg2, %c0_i32_0 : i32, i32, i32, i32
  }
  func.func @transform_1(%arg0: i32, %arg1: i32, %arg2: i32) -> (i32, i32, i32, i32) {
    %c1_i32 = arith.constant 1 : i32
    %0 = arith.addi %arg1, %c1_i32 : i32
    %c0_i32 = arith.constant 0 : i32
    %c0_i32_0 = arith.constant 0 : i32
    return %arg0, %0, %arg2, %c0_i32 : i32, i32, i32, i32
  }
  func.func @transform_2(%arg0: i32, %arg1: i32, %arg2: i32) -> (i32, i32, i32, i32) {
    %c2_i32 = arith.constant 2 : i32
    %0 = arith.addi %arg1, %c2_i32 : i32
    %c0_i32 = arith.constant 0 : i32
    %c0_i32_0 = arith.constant 0 : i32
    return %arg0, %0, %arg2, %c0_i32 : i32, i32, i32, i32
  }
  func.func @transform_3(%arg0: i32, %arg1: i32, %arg2: i32) -> (i32, i32, i32) {
    %c0_i32 = arith.constant 0 : i32
    %c0_i32_0 = arith.constant 0 : i32
    %c0_i32_1 = arith.constant 0 : i32
    %c0_i32_2 = arith.constant 0 : i32
    return %c0_i32, %c0_i32_0, %c0_i32_1 : i32, i32, i32
  }
  func.func @transform_4(%arg0: i32, %arg1: i32, %arg2: i32) -> (i32, i32, i32) {
    %c1_i32 = arith.constant 1 : i32
    %c0_i32 = arith.constant 0 : i32
    %c0_i32_0 = arith.constant 0 : i32
    %c0_i32_1 = arith.constant 0 : i32
    return %c1_i32, %c0_i32, %c0_i32_0 : i32, i32, i32
  }
  func.func @transform_5(%arg0: i32, %arg1: i32, %arg2: i32) -> (i32, i32, i32) {
    %c2_i32 = arith.constant 2 : i32
    %c0_i32 = arith.constant 0 : i32
    %c0_i32_0 = arith.constant 0 : i32
    %c0_i32_1 = arith.constant 0 : i32
    return %c2_i32, %c0_i32, %c0_i32_0 : i32, i32, i32
  }
  func.func @transform_6(%arg0: i32, %arg1: i32, %arg2: i32) -> (i32, i32) {
    %c0_i32 = arith.constant 0 : i32
    %c0_i32_0 = arith.constant 0 : i32
    %c0_i32_1 = arith.constant 0 : i32
    return %c0_i32, %c0_i32_0 : i32, i32
  }
  func.func @transform_7(%arg0: i32, %arg1: i32, %arg2: i32) -> (i32, i32) {
    %c0_i32 = arith.constant 0 : i32
    %c0_i32_0 = arith.constant 0 : i32
    %c0_i32_1 = arith.constant 0 : i32
    return %c0_i32, %c0_i32_0 : i32, i32
  }
  func.func @transform_8(%arg0: i32, %arg1: i32, %arg2: i32) -> (i32, i32, i32, i32) {
    %c0_i32 = arith.constant 0 : i32
    %c0_i32_0 = arith.constant 0 : i32
    return %arg0, %arg1, %arg2, %c0_i32 : i32, i32, i32, i32
  }
}

module attributes {stable_mosaic.version = 11 : i64} {
  func.func @_conv_bn_lrelu_kernel(%arg0: i32, %arg1: i32, %arg2: i32, %arg3: memref<1x1x256x144xbf16, #tpu.memory_space<vmem>>, %arg4: memref<1x1x256x144xbf16, #tpu.memory_space<vmem>>, %arg5: memref<1x1x256x144xbf16, #tpu.memory_space<vmem>>, %arg6: memref<1x144x16xbf16, #tpu.memory_space<vmem>>, %arg7: memref<1x144x16xbf16, #tpu.memory_space<vmem>>, %arg8: memref<1x144x16xbf16, #tpu.memory_space<vmem>>, %arg9: memref<1x16xf32, #tpu.memory_space<vmem>>, %arg10: memref<1x16xf32, #tpu.memory_space<vmem>>, %arg11: memref<1x1x256x16xf32, #tpu.memory_space<vmem>>) attributes {dimension_semantics = [#tpu.dimension_semantics<parallel>, #tpu.dimension_semantics<parallel>, #tpu.dimension_semantics<parallel>], iteration_bounds = array<i64: 2, 8, 1>, scalar_prefetch = 0 : i64, scratch_operands = 0 : i64, tpu.core_type = #tpu.core_type<tc>, window_params = [{transform_indices = @transform_0, window_bounds = array<i64: 1, 1, 256, 144>}, {transform_indices = @transform_1, window_bounds = array<i64: 1, 1, 256, 144>}, {transform_indices = @transform_2, window_bounds = array<i64: 1, 1, 256, 144>}, {transform_indices = @transform_3, window_bounds = array<i64: 1, 144, 16>}, {transform_indices = @transform_4, window_bounds = array<i64: 1, 144, 16>}, {transform_indices = @transform_5, window_bounds = array<i64: 1, 144, 16>}, {pipeline_mode = #tpu.pipeline_mode<synchronous>, transform_indices = @transform_6, window_bounds = array<i64: 1, 16>}, {pipeline_mode = #tpu.pipeline_mode<synchronous>, transform_indices = @transform_7, window_bounds = array<i64: 1, 16>}, {transform_indices = @transform_8, window_bounds = array<i64: 1, 1, 256, 16>}]} {
    %c0 = arith.constant 0 : index
    %c0_0 = arith.constant 0 : index
    %c0_1 = arith.constant 0 : index
    %c0_2 = arith.constant 0 : index
    %0 = vector.load %arg3[%c0, %c0_0, %c0_1, %c0_2] : memref<1x1x256x144xbf16, #tpu.memory_space<vmem>>, vector<1x1x256x144xbf16>
    %1 = vector.shape_cast %0 : vector<1x1x256x144xbf16> to vector<256x144xbf16>
    %c0_3 = arith.constant 0 : index
    %c0_4 = arith.constant 0 : index
    %c0_5 = arith.constant 0 : index
    %2 = vector.load %arg6[%c0_3, %c0_4, %c0_5] : memref<1x144x16xbf16, #tpu.memory_space<vmem>>, vector<1x144x16xbf16>
    %3 = vector.shape_cast %2 : vector<1x144x16xbf16> to vector<144x16xbf16>
    %cst = arith.constant dense<0.000000e+00> : vector<256x16xf32>
    %4 = tpu.matmul %1, %3, %cst {dimension_numbers = #tpu.dot_dimension_numbers<[1], [0], [0], [1], [0, 0, 1, 1], [], []>} : vector<256x144xbf16>, vector<144x16xbf16>, vector<256x16xf32> -> vector<256x16xf32>
    %c0_6 = arith.constant 0 : index
    %c0_7 = arith.constant 0 : index
    %c0_8 = arith.constant 0 : index
    %c0_9 = arith.constant 0 : index
    %5 = vector.load %arg4[%c0_6, %c0_7, %c0_8, %c0_9] : memref<1x1x256x144xbf16, #tpu.memory_space<vmem>>, vector<1x1x256x144xbf16>
    %6 = vector.shape_cast %5 : vector<1x1x256x144xbf16> to vector<256x144xbf16>
    %c0_10 = arith.constant 0 : index
    %c0_11 = arith.constant 0 : index
    %c0_12 = arith.constant 0 : index
    %7 = vector.load %arg7[%c0_10, %c0_11, %c0_12] : memref<1x144x16xbf16, #tpu.memory_space<vmem>>, vector<1x144x16xbf16>
    %8 = vector.shape_cast %7 : vector<1x144x16xbf16> to vector<144x16xbf16>
    %cst_13 = arith.constant dense<0.000000e+00> : vector<256x16xf32>
    %9 = tpu.matmul %6, %8, %cst_13 {dimension_numbers = #tpu.dot_dimension_numbers<[1], [0], [0], [1], [0, 0, 1, 1], [], []>} : vector<256x144xbf16>, vector<144x16xbf16>, vector<256x16xf32> -> vector<256x16xf32>
    %10 = arith.addf %4, %9 : vector<256x16xf32>
    %c0_14 = arith.constant 0 : index
    %c0_15 = arith.constant 0 : index
    %c0_16 = arith.constant 0 : index
    %c0_17 = arith.constant 0 : index
    %11 = vector.load %arg5[%c0_14, %c0_15, %c0_16, %c0_17] : memref<1x1x256x144xbf16, #tpu.memory_space<vmem>>, vector<1x1x256x144xbf16>
    %12 = vector.shape_cast %11 : vector<1x1x256x144xbf16> to vector<256x144xbf16>
    %c0_18 = arith.constant 0 : index
    %c0_19 = arith.constant 0 : index
    %c0_20 = arith.constant 0 : index
    %13 = vector.load %arg8[%c0_18, %c0_19, %c0_20] : memref<1x144x16xbf16, #tpu.memory_space<vmem>>, vector<1x144x16xbf16>
    %14 = vector.shape_cast %13 : vector<1x144x16xbf16> to vector<144x16xbf16>
    %cst_21 = arith.constant dense<0.000000e+00> : vector<256x16xf32>
    %15 = tpu.matmul %12, %14, %cst_21 {dimension_numbers = #tpu.dot_dimension_numbers<[1], [0], [0], [1], [0, 0, 1, 1], [], []>} : vector<256x144xbf16>, vector<144x16xbf16>, vector<256x16xf32> -> vector<256x16xf32>
    %16 = arith.addf %10, %15 : vector<256x16xf32>
    %c0_22 = arith.constant 0 : index
    %c0_23 = arith.constant 0 : index
    %17 = vector.load %arg9[%c0_22, %c0_23] : memref<1x16xf32, #tpu.memory_space<vmem>>, vector<1x16xf32>
    %18 = vector.broadcast %17 : vector<1x16xf32> to vector<256x16xf32>
    %19 = arith.mulf %16, %18 : vector<256x16xf32>
    %c0_24 = arith.constant 0 : index
    %c0_25 = arith.constant 0 : index
    %20 = vector.load %arg10[%c0_24, %c0_25] : memref<1x16xf32, #tpu.memory_space<vmem>>, vector<1x16xf32>
    %21 = vector.broadcast %20 : vector<1x16xf32> to vector<256x16xf32>
    %22 = arith.addf %19, %21 : vector<256x16xf32>
    %cst_26 = arith.constant 0.000000e+00 : f32
    %23 = vector.broadcast %cst_26 : f32 to vector<256x16xf32>
    %24 = arith.cmpf ogt, %22, %23 : vector<256x16xf32>
    %cst_27 = arith.constant 0.00999999977 : f32
    %25 = vector.broadcast %cst_27 : f32 to vector<256x16xf32>
    %26 = arith.mulf %25, %22 : vector<256x16xf32>
    %27 = arith.select %24, %22, %26 : vector<256x16xi1>, vector<256x16xf32>
    %c0_28 = arith.constant 0 : index
    %c0_29 = arith.constant 0 : index
    %c0_30 = arith.constant 0 : index
    %c0_31 = arith.constant 0 : index
    %28 = vector.load %arg11[%c0_28, %c0_29, %c0_30, %c0_31] : memref<1x1x256x16xf32, #tpu.memory_space<vmem>>, vector<1x1x256x16xf32>
    %29 = vector.shape_cast %28 : vector<1x1x256x16xf32> to vector<256x16xf32>
    %30 = vector.shape_cast %27 : vector<256x16xf32> to vector<1x1x256x16xf32>
    tpu.vector_store %arg11[%c0_28, %c0_29, %c0_30, %c0_31], %30 {strides = array<i32>} : memref<1x1x256x16xf32, #tpu.memory_space<vmem>>, vector<1x1x256x16xf32>,
    return
  }
  func.func @transform_0(%arg0: i32, %arg1: i32, %arg2: i32) -> (i32, i32, i32, i32) {
    %c0_i32 = arith.constant 0 : i32
    %0 = arith.addi %arg1, %c0_i32 : i32
    %c0_i32_0 = arith.constant 0 : i32
    %c0_i32_1 = arith.constant 0 : i32
    return %arg0, %0, %arg2, %c0_i32_0 : i32, i32, i32, i32
  }
  func.func @transform_1(%arg0: i32, %arg1: i32, %arg2: i32) -> (i32, i32, i32, i32) {
    %c1_i32 = arith.constant 1 : i32
    %0 = arith.addi %arg1, %c1_i32 : i32
    %c0_i32 = arith.constant 0 : i32
    %c0_i32_0 = arith.constant 0 : i32
    return %arg0, %0, %arg2, %c0_i32 : i32, i32, i32, i32
  }
  func.func @transform_2(%arg0: i32, %arg1: i32, %arg2: i32) -> (i32, i32, i32, i32) {
    %c2_i32 = arith.constant 2 : i32
    %0 = arith.addi %arg1, %c2_i32 : i32
    %c0_i32 = arith.constant 0 : i32
    %c0_i32_0 = arith.constant 0 : i32
    return %arg0, %0, %arg2, %c0_i32 : i32, i32, i32, i32
  }
  func.func @transform_3(%arg0: i32, %arg1: i32, %arg2: i32) -> (i32, i32, i32) {
    %c0_i32 = arith.constant 0 : i32
    %c0_i32_0 = arith.constant 0 : i32
    %c0_i32_1 = arith.constant 0 : i32
    %c0_i32_2 = arith.constant 0 : i32
    return %c0_i32, %c0_i32_0, %c0_i32_1 : i32, i32, i32
  }
  func.func @transform_4(%arg0: i32, %arg1: i32, %arg2: i32) -> (i32, i32, i32) {
    %c1_i32 = arith.constant 1 : i32
    %c0_i32 = arith.constant 0 : i32
    %c0_i32_0 = arith.constant 0 : i32
    %c0_i32_1 = arith.constant 0 : i32
    return %c1_i32, %c0_i32, %c0_i32_0 : i32, i32, i32
  }
  func.func @transform_5(%arg0: i32, %arg1: i32, %arg2: i32) -> (i32, i32, i32) {
    %c2_i32 = arith.constant 2 : i32
    %c0_i32 = arith.constant 0 : i32
    %c0_i32_0 = arith.constant 0 : i32
    %c0_i32_1 = arith.constant 0 : i32
    return %c2_i32, %c0_i32, %c0_i32_0 : i32, i32, i32
  }
  func.func @transform_6(%arg0: i32, %arg1: i32, %arg2: i32) -> (i32, i32) {
    %c0_i32 = arith.constant 0 : i32
    %c0_i32_0 = arith.constant 0 : i32
    %c0_i32_1 = arith.constant 0 : i32
    return %c0_i32, %c0_i32_0 : i32, i32
  }
  func.func @transform_7(%arg0: i32, %arg1: i32, %arg2: i32) -> (i32, i32) {
    %c0_i32 = arith.constant 0 : i32
    %c0_i32_0 = arith.constant 0 : i32
    %c0_i32_1 = arith.constant 0 : i32
    return %c0_i32, %c0_i32_0 : i32, i32
  }
  func.func @transform_8(%arg0: i32, %arg1: i32, %arg2: i32) -> (i32, i32, i32, i32) {
    %c0_i32 = arith.constant 0 : i32
    %c0_i32_0 = arith.constant 0 : i32
    return %arg0, %arg1, %arg2, %c0_i32 : i32, i32, i32, i32
  }
}

</mosaic_0001>

<llo_original>
// kernel: decoder_block_forward.2
$region0: #{decoder_block_forward.2}
  #allocation0 [shape = 'u32[]', space=smem, size = 0x4, offset = 0x4, fixed_abs, tag = 'smem constant byte address 0x4 - core index']
  #allocation1 [shape = 'u32[144,128]{1,0:T(1,128)}', space=vmem, size = 0x12000, scoped, tag = 'internal scratch']
  %s0 = inlined_call_operand.vmem [shape: bf16[2,10,256,216], index: 0, kind: input, shape index: {}, may-alias: {0,1,2}]
  %s1 = inlined_call_operand.vmem [shape: bf16[2,10,256,216], index: 1, kind: input, shape index: {}, may-alias: {0,1,2}]
  %s2 = inlined_call_operand.vmem [shape: bf16[2,10,256,216], index: 2, kind: input, shape index: {}, may-alias: {0,1,2}]
  %s3 = inlined_call_operand.vmem [shape: bf16[3,216,16], index: 3, kind: input, shape index: {}, may-alias: {3,4,5}]
  %s4 = inlined_call_operand.vmem [shape: bf16[3,216,16], index: 4, kind: input, shape index: {}, may-alias: {3,4,5}]
  %s5 = inlined_call_operand.vmem [shape: bf16[3,216,16], index: 5, kind: input, shape index: {}, may-alias: {3,4,5}]
  %s6 = inlined_call_operand.vmem [shape: f32[1,16], index: 6, kind: input, shape index: {}]
  %s7 = inlined_call_operand.vmem [shape: f32[1,16], index: 7, kind: input, shape index: {}]
  %s8 = inlined_call_operand.vmem [shape: bf16[2,8,256,16], index: 8, kind: output, shape index: {}]
  %s9 = sld [smem:[#allocation0]]
  $region65: #{decoder_block_forward.2} parent=0
    _
  %s11 = ssub.s32 1, %s9
  %s12 = scalar_select 0, %s11, %s9
  loop: start=0, step=1, limit=18
  $region2: #{decoder_block_forward.2} parent=0 // loop_pre_header
    _
  $region3: #{decoder_block_forward.2} parent=0 // loop_header
    %s14 = sphi 0, %s18
    %p15 = scmp.ge.s32.totalorder %s14, 18
    %s21 = sphi 0, %s40
    %s22 = sphi 0, %s36
    %s23 = sphi 0, %s32
    %s24 = sphi 0, %s21
    %s25 = sphi 0, %s22
    %s26 = sphi 0, %s23
    %s27 = sphi 0, %s24
    %s28 = sphi 0, %s25
    %s29 = sphi 0, %s26
    %s47 = sphi 0, %s49
    %s50 = sphi 0, %s47
    %s51 = sphi 0, %s50
    %s67 = sphi 0, %s51
    %s79 = sphi 0, %s81
    %s82 = sphi 0, %s79
    %s83 = sphi 0, %s82
    %s99 = sphi 0, %s83
    %s111 = sphi 0, %s113
    %s114 = sphi 0, %s111
    %s115 = sphi 0, %s114
    %s131 = sphi 0, %s115
    %s135 = sphi 0, %s135
    %s137 = sphi 0, %s135
    %s138 = sphi 0, %s137
    %s152 = sphi 0, %s138
    %s156 = sphi 0, %s156
    %s158 = sphi 0, %s156
    %s159 = sphi 0, %s158
    %s173 = sphi 0, %s159
    %s177 = sphi 0, %s177
    %s179 = sphi 0, %s177
    %s180 = sphi 0, %s179
    %s194 = sphi 0, %s180
    %s198 = sphi 0, %s198
    %s200 = sphi 0, %s198
    %s201 = sphi 0, %s200
    %s215 = sphi 0, %s201
    %s219 = sphi 0, %s219
    %s221 = sphi 0, %s219
    %s222 = sphi 0, %s221
    %s236 = sphi 0, %s222
    %s246 = sphi 0, %s248
    %s249 = sphi 0, %s246
    %s250 = sphi 0, %s249
    %s266 = sphi 0, %s250
  $region4: #{decoder_block_forward.2} parent=0 // loop_header_branch
    %17 = sbr.rel (%p15) target = $region8
  $region5: #{decoder_block_forward.2} parent=0 // loop_body
    %s19 = ssub.s32 %s14, 1
    %s20 = ssub.s32 %s14, 2
    %s30 = sadd.s32 1, %s23
    %p31 = scmp.ge.s32.totalorder %s30, 1
    %s32 = scalar_select %p31, 0, %s30
    %s33 = sadd.s32 1, %s22
    %s34 = scalar_select %p31, %s33, %s22
    %p35 = scmp.ge.s32.totalorder %s34, 8
    %s36 = scalar_select %p35, 0, %s34
    %s37 = sadd.s32 1, %s21
    %s38 = scalar_select %p35, %s37, %s21
    %p39 = scmp.ge.s32.totalorder %s38, 2
    %s40 = scalar_select %p39, 0, %s38
    %s41 = ssub.s32 %s21, %s40
    %s42 = ssub.s32 %s22, %s36
    %s43 = sor.u32 %s41, %s42
    %s44 = ssub.s32 %s23, %s32
    %s45 = sor.u32 %s43, %s44
    %p46 = scmp.eq.s32.totalorder %s45, 0
    %s48 = sadd.s32 %s47, 1
    %s49 = scalar_select %p46, %s47, %s48
    %p52 = pneg %p46
    %p53 = scmp.eq.s32.totalorder %s14, 15
    %p54 = por %p52, %p53
    %p55 = scmp.ne.s32.totalorder %s47, %s50
    %p56 = scmp.eq.s32.totalorder %s14, 0
    %p57 = por %p55, %p56
    %p58 = scmp.ne.s32.totalorder %s47, %s50
    %p59 = scmp.eq.s32.totalorder %s19, 15
    %p60 = por %p58, %p59
    %p61 = scmp.ne.s32.totalorder %s50, %s51
    %p62 = scmp.eq.s32.totalorder %s19, 0
    %p63 = por %p61, %p62
    %p64 = scmp.ne.s32.totalorder %s50, %s51
    %p65 = scmp.eq.s32.totalorder %s20, 15
    %p66 = por %p64, %p65
    %p68 = scmp.ne.s32.totalorder %s51, %s67
    %p69 = scmp.eq.s32.totalorder %s20, 0
    %p70 = por %p68, %p69
    %s71 = sadd.s32 %s22, 1
    %s72 = sadd.s32 %s36, 1
    %s73 = ssub.s32 %s21, %s40
    %s74 = ssub.s32 %s71, %s72
    %s75 = sor.u32 %s73, %s74
    %s76 = ssub.s32 %s23, %s32
    %s77 = sor.u32 %s75, %s76
    %p78 = scmp.eq.s32.totalorder %s77, 0
    %s80 = sadd.s32 %s79, 1
    %s81 = scalar_select %p78, %s79, %s80
    %p84 = pneg %p78
    %p85 = scmp.eq.s32.totalorder %s14, 15
    %p86 = por %p84, %p85
    %p87 = scmp.ne.s32.totalorder %s79, %s82
    %p88 = scmp.eq.s32.totalorder %s14, 0
    %p89 = por %p87, %p88
    %p90 = scmp.ne.s32.totalorder %s79, %s82
    %p91 = scmp.eq.s32.totalorder %s19, 15
    %p92 = por %p90, %p91
    %p93 = scmp.ne.s32.totalorder %s82, %s83
    %p94 = scmp.eq.s32.totalorder %s19, 0
    %p95 = por %p93, %p94
    %p96 = scmp.ne.s32.totalorder %s82, %s83
    %p97 = scmp.eq.s32.totalorder %s20, 15
    %p98 = por %p96, %p97
    %p100 = scmp.ne.s32.totalorder %s83, %s99
    %p101 = scmp.eq.s32.totalorder %s20, 0
    %p102 = por %p100, %p101
    %s103 = sadd.s32 %s22, 2
    %s104 = sadd.s32 %s36, 2
    %s105 = ssub.s32 %s21, %s40
    %s106 = ssub.s32 %s103, %s104
    %s107 = sor.u32 %s105, %s106
    %s108 = ssub.s32 %s23, %s32
    %s109 = sor.u32 %s107, %s108
    %p110 = scmp.eq.s32.totalorder %s109, 0
    %s112 = sadd.s32 %s111, 1
    %s113 = scalar_select %p110, %s111, %s112
    %p116 = pneg %p110
    %p117 = scmp.eq.s32.totalorder %s14, 15
    %p118 = por %p116, %p117
    %p119 = scmp.ne.s32.totalorder %s111, %s114
    %p120 = scmp.eq.s32.totalorder %s14, 0
    %p121 = por %p119, %p120
    %p122 = scmp.ne.s32.totalorder %s111, %s114
    %p123 = scmp.eq.s32.totalorder %s19, 15
    %p124 = por %p122, %p123
    %p125 = scmp.ne.s32.totalorder %s114, %s115
    %p126 = scmp.eq.s32.totalorder %s19, 0
    %p127 = por %p125, %p126
    %p128 = scmp.ne.s32.totalorder %s114, %s115
    %p129 = scmp.eq.s32.totalorder %s20, 15
    %p130 = por %p128, %p129
    %p132 = scmp.ne.s32.totalorder %s115, %s131
    %p133 = scmp.eq.s32.totalorder %s20, 0
    %p134 = por %p132, %p133
    %s136 = sadd.s32 %s135, 1
    %p139 = scmp.eq.s32.totalorder %s14, 15
    %p140 = scmp.ne.s32.totalorder %s135, %s137
    %p141 = scmp.eq.s32.totalorder %s14, 0
    %p142 = por %p140, %p141
    %p143 = scmp.ne.s32.totalorder %s135, %s137
    %p144 = scmp.eq.s32.totalorder %s19, 15
    %p145 = por %p143, %p144
    %p146 = scmp.ne.s32.totalorder %s137, %s138
    %p147 = scmp.eq.s32.totalorder %s19, 0
    %p148 = por %p146, %p147
    %p149 = scmp.ne.s32.totalorder %s137, %s138
    %p150 = scmp.eq.s32.totalorder %s20, 15
    %p151 = por %p149, %p150
    %p153 = scmp.ne.s32.totalorder %s138, %s152
    %p154 = scmp.eq.s32.totalorder %s20, 0
    %p155 = por %p153, %p154
    %s157 = sadd.s32 %s156, 1
    %p160 = scmp.eq.s32.totalorder %s14, 15
    %p161 = scmp.ne.s32.totalorder %s156, %s158
    %p162 = scmp.eq.s32.totalorder %s14, 0
    %p163 = por %p161, %p162
    %p164 = scmp.ne.s32.totalorder %s156, %s158
    %p165 = scmp.eq.s32.totalorder %s19, 15
    %p166 = por %p164, %p165
    %p167 = scmp.ne.s32.totalorder %s158, %s159
    %p168 = scmp.eq.s32.totalorder %s19, 0
    %p169 = por %p167, %p168
    %p170 = scmp.ne.s32.totalorder %s158, %s159
    %p171 = scmp.eq.s32.totalorder %s20, 15
    %p172 = por %p170, %p171
    %p174 = scmp.ne.s32.totalorder %s159, %s173
    %p175 = scmp.eq.s32.totalorder %s20, 0
    %p176 = por %p174, %p175
    %s178 = sadd.s32 %s177, 1
    %p181 = scmp.eq.s32.totalorder %s14, 15
    %p182 = scmp.ne.s32.totalorder %s177, %s179
    %p183 = scmp.eq.s32.totalorder %s14, 0
    %p184 = por %p182, %p183
    %p185 = scmp.ne.s32.totalorder %s177, %s179
    %p186 = scmp.eq.s32.totalorder %s19, 15
    %p187 = por %p185, %p186
    %p188 = scmp.ne.s32.totalorder %s179, %s180
    %p189 = scmp.eq.s32.totalorder %s19, 0
    %p190 = por %p188, %p189
    %p191 = scmp.ne.s32.totalorder %s179, %s180
    %p192 = scmp.eq.s32.totalorder %s20, 15
    %p193 = por %p191, %p192
    %p195 = scmp.ne.s32.totalorder %s180, %s194
    %p196 = scmp.eq.s32.totalorder %s20, 0
    %p197 = por %p195, %p196
    %s199 = sadd.s32 %s198, 1
    %p202 = scmp.eq.s32.totalorder %s14, 15
    %p203 = scmp.ne.s32.totalorder %s198, %s200
    %p204 = scmp.eq.s32.totalorder %s14, 0
    %p205 = por %p203, %p204
    %p206 = scmp.ne.s32.totalorder %s198, %s200
    %p207 = scmp.eq.s32.totalorder %s19, 15
    %p208 = por %p206, %p207
    %p209 = scmp.ne.s32.totalorder %s200, %s201
    %p210 = scmp.eq.s32.totalorder %s19, 0
    %p211 = por %p209, %p210
    %p212 = scmp.ne.s32.totalorder %s200, %s201
    %p213 = scmp.eq.s32.totalorder %s20, 15
    %p214 = por %p212, %p213
    %p216 = scmp.ne.s32.totalorder %s201, %s215
    %p217 = scmp.eq.s32.totalorder %s20, 0
    %p218 = por %p216, %p217
    %s220 = sadd.s32 %s219, 1
    %p223 = scmp.eq.s32.totalorder %s14, 15
    %p224 = scmp.ne.s32.totalorder %s219, %s221
    %p225 = scmp.eq.s32.totalorder %s14, 0
    %p226 = por %p224, %p225
    %p227 = scmp.ne.s32.totalorder %s219, %s221
    %p228 = scmp.eq.s32.totalorder %s19, 15
    %p229 = por %p227, %p228
    %p230 = scmp.ne.s32.totalorder %s221, %s222
    %p231 = scmp.eq.s32.totalorder %s19, 0
    %p232 = por %p230, %p231
    %p233 = scmp.ne.s32.totalorder %s221, %s222
    %p234 = scmp.eq.s32.totalorder %s20, 15
    %p235 = por %p233, %p234
    %p237 = scmp.ne.s32.totalorder %s222, %s236
    %p238 = scmp.eq.s32.totalorder %s20, 0
    %p239 = por %p237, %p238
    %s240 = ssub.s32 %s21, %s40
    %s241 = ssub.s32 %s22, %s36
    %s242 = sor.u32 %s240, %s241
    %s243 = ssub.s32 %s23, %s32
    %s244 = sor.u32 %s242, %s243
    %p245 = scmp.eq.s32.totalorder %s244, 0
    %s247 = sadd.s32 %s246, 1
    %s248 = scalar_select %p245, %s246, %s247
    %p251 = pneg %p245
    %p252 = scmp.eq.s32.totalorder %s14, 15
    %p253 = por %p251, %p252
    %p254 = scmp.ne.s32.totalorder %s246, %s249
    %p255 = scmp.eq.s32.totalorder %s14, 0
    %p256 = por %p254, %p255
    %p257 = scmp.ne.s32.totalorder %s246, %s249
    %p258 = scmp.eq.s32.totalorder %s19, 15
    %p259 = por %p257, %p258
    %p260 = scmp.ne.s32.totalorder %s249, %s250
    %p261 = scmp.eq.s32.totalorder %s19, 0
    %p262 = por %p260, %p261
    %p263 = scmp.ne.s32.totalorder %s249, %s250
    %p264 = scmp.eq.s32.totalorder %s20, 15
    %p265 = por %p263, %p264
    %p267 = scmp.ne.s32.totalorder %s250, %s266
    %p268 = scmp.eq.s32.totalorder %s20, 0
    %p269 = por %p267, %p268
    %p270 = scmp.le.s32.totalorder 1, %s14
    %p271 = scmp.lt.s32.totalorder %s14, 17
    %p272 = pnand %p270, %p271
    %p273 = pneg %p272
    // Predicated region
    $region9: #{decoder_block_forward.2} parent=5 // pred_check
      _
    $region10: #{decoder_block_forward.2} parent=5 // pred_check_branch
      %275 = sbr.rel (%p272) target = $region12
    $region11: #{decoder_block_forward.2} parent=5 // pred_region
      %s276 = ssub.s32 %s14, 1
      // Predicated region
      $region13: #{decoder_block_forward.2} parent=11 // pred_check
        %p277 = pneg %p148
      $region14: #{decoder_block_forward.2} parent=11 // pred_check_branch
        %279 = sbr.rel (%p277) target = $region16
      $region15: #{decoder_block_forward.2} parent=11 // pred_region
        _
      $region16: #{decoder_block_forward.2} parent=11 // pred_fallthru
        _
      // Predicated region
      $region17: #{decoder_block_forward.2} parent=11 // pred_check
        %p280 = pneg %p169
      $region18: #{decoder_block_forward.2} parent=11 // pred_check_branch
        %282 = sbr.rel (%p280) target = $region20
      $region19: #{decoder_block_forward.2} parent=11 // pred_region
        %s283 = scalar_lea.vmem %s4, 108
      $region20: #{decoder_block_forward.2} parent=11 // pred_fallthru
        _
      // Predicated region
      $region21: #{decoder_block_forward.2} parent=11 // pred_check
        %p284 = pneg %p190
      $region22: #{decoder_block_forward.2} parent=11 // pred_check_branch
        %286 = sbr.rel (%p284) target = $region24
      $region23: #{decoder_block_forward.2} parent=11 // pred_region
        %s287 = scalar_lea.vmem %s5, 216
      $region24: #{decoder_block_forward.2} parent=11 // pred_fallthru
        _
      // Predicated region
      $region25: #{decoder_block_forward.2} parent=11 // pred_check
        %p288 = pneg %p211
      $region26: #{decoder_block_forward.2} parent=11 // pred_check_branch
        %290 = sbr.rel (%p288) target = $region28
      $region27: #{decoder_block_forward.2} parent=11 // pred_region
        _
      $region28: #{decoder_block_forward.2} parent=11 // pred_fallthru
        _
      // Predicated region
      $region29: #{decoder_block_forward.2} parent=11 // pred_check
        %p291 = pneg %p232
      $region30: #{decoder_block_forward.2} parent=11 // pred_check_branch
        %293 = sbr.rel (%p291) target = $region32
      $region31: #{decoder_block_forward.2} parent=11 // pred_region
        _
      $region32: #{decoder_block_forward.2} parent=11 // pred_fallthru
        _
    $region12: #{decoder_block_forward.2} parent=5 // pred_fallthru
      _
    %p294 = scmp.lt.s32.totalorder %s14, 16
    // Predicated region
    $region33: #{decoder_block_forward.2} parent=5 // pred_check
      %p295 = pneg %p294
    $region34: #{decoder_block_forward.2} parent=5 // pred_check_branch
      %297 = sbr.rel (%p295) target = $region36
    $region35: #{decoder_block_forward.2} parent=5 // pred_region
      // Predicated region
      $region37: #{decoder_block_forward.2} parent=35 // pred_check
        %p298 = pneg %p57
      $region38: #{decoder_block_forward.2} parent=35 // pred_check_branch
        %300 = sbr.rel (%p298) target = $region40
      $region39: #{decoder_block_forward.2} parent=35 // pred_region
        %s301 = smul.u32 32, %s23
        %p302 = scmp.lt.s32.totalorder %s21, 1
        %s303 = scalar_select %p302, %s21, 1
        %p304 = scmp.lt.s32.totalorder %s22, 9
        %s305 = scalar_select %p304, %s22, 9
        %p306 = scmp.lt.s32.totalorder %s301, 31
        %s307 = scalar_select %p306, %s301, 31
        %s308 = smul.addr %s307, 2
        %s309 = smul.addr %s305, 64
        %s310 = sadd.s32 %s308, %s309
        %s311 = smul.addr %s303, 640
        %s312 = sadd.s32 %s310, %s311
        %s313 = smul.addr %s312, 4
        %s314 = scalar_lea.vmem %s0, %s313
        %s315 = smul.u32 32, %s23
      $region40: #{decoder_block_forward.2} parent=35 // pred_fallthru
        _
      // Predicated region
      $region41: #{decoder_block_forward.2} parent=35 // pred_check
        %p316 = pneg %p89
      $region42: #{decoder_block_forward.2} parent=35 // pred_check_branch
        %318 = sbr.rel (%p316) target = $region44
      $region43: #{decoder_block_forward.2} parent=35 // pred_region
        %s319 = sadd.s32 %s22, 1
        %s320 = smul.u32 32, %s23
        %p321 = scmp.lt.s32.totalorder %s21, 1
        %s322 = scalar_select %p321, %s21, 1
        %p323 = scmp.lt.s32.totalorder %s319, 9
        %s324 = scalar_select %p323, %s319, 9
        %p325 = scmp.lt.s32.totalorder %s320, 31
        %s326 = scalar_select %p325, %s320, 31
        %s327 = smul.addr %s326, 2
        %s328 = smul.addr %s324, 64
        %s329 = sadd.s32 %s327, %s328
        %s330 = smul.addr %s322, 640
        %s331 = sadd.s32 %s329, %s330
        %s332 = smul.addr %s331, 4
        %s333 = scalar_lea.vmem %s1, %s332
        %s334 = sadd.s32 %s22, 1
        %s335 = smul.u32 32, %s23
      $region44: #{decoder_block_forward.2} parent=35 // pred_fallthru
        _
      // Predicated region
      $region45: #{decoder_block_forward.2} parent=35 // pred_check
        %p336 = pneg %p121
      $region46: #{decoder_block_forward.2} parent=35 // pred_check_branch
        %338 = sbr.rel (%p336) target = $region48
      $region47: #{decoder_block_forward.2} parent=35 // pred_region
        %s339 = sadd.s32 %s22, 2
        %s340 = smul.u32 32, %s23
        %p341 = scmp.lt.s32.totalorder %s21, 1
        %s342 = scalar_select %p341, %s21, 1
        %p343 = scmp.lt.s32.totalorder %s339, 9
        %s344 = scalar_select %p343, %s339, 9
        %p345 = scmp.lt.s32.totalorder %s340, 31
        %s346 = scalar_select %p345, %s340, 31
        %s347 = smul.addr %s346, 2
        %s348 = smul.addr %s344, 64
        %s349 = sadd.s32 %s347, %s348
        %s350 = smul.addr %s342, 640
        %s351 = sadd.s32 %s349, %s350
        %s352 = smul.addr %s351, 4
        %s353 = scalar_lea.vmem %s2, %s352
        %s354 = sadd.s32 %s22, 2
        %s355 = smul.u32 32, %s23
      $region48: #{decoder_block_forward.2} parent=35 // pred_fallthru
        _
    $region36: #{decoder_block_forward.2} parent=5 // pred_fallthru
      _
    %p356 = scmp.le.s32.totalorder 1, %s14
    %p357 = scmp.lt.s32.totalorder %s14, 17
    %p358 = pnand %p356, %p357
    %p359 = pneg %p358
    // Predicated region
    $region49: #{decoder_block_forward.2} parent=5 // pred_check
      _
    $region50: #{decoder_block_forward.2} parent=5 // pred_check_branch
      %361 = sbr.rel (%p358) target = $region52
    $region51: #{decoder_block_forward.2} parent=5 // pred_region
      %s362 = ssub.s32 %s14, 1
      %s363 = smul.u32 32, %s26
      %p364 = scmp.lt.s32.totalorder %s24, 1
      %s365 = scalar_select %p364, %s24, 1
      %p366 = scmp.lt.s32.totalorder %s25, 9
      %s367 = scalar_select %p366, %s25, 9
      %p368 = scmp.lt.s32.totalorder %s363, 31
      %s369 = scalar_select %p368, %s363, 31
      %s370 = smul.addr %s369, 2
      %s371 = smul.addr %s367, 64
      %s372 = sadd.s32 %s370, %s371
      %s373 = smul.addr %s365, 640
      %s374 = sadd.s32 %s372, %s373
      %s375 = smul.addr %s374, 4
      %s376 = scalar_lea.vmem %s0, %s375
      %p377 = pneg %p63
      %p378 = pneg %p60
      %s379 = sadd.s32 %s25, 1
      %s380 = smul.u32 32, %s26
      %p381 = scmp.lt.s32.totalorder %s24, 1
      %s382 = scalar_select %p381, %s24, 1
      %p383 = scmp.lt.s32.totalorder %s379, 9
      %s384 = scalar_select %p383, %s379, 9
      %p385 = scmp.lt.s32.totalorder %s380, 31
      %s386 = scalar_select %p385, %s380, 31
      %s387 = smul.addr %s386, 2
      %s388 = smul.addr %s384, 64
      %s389 = sadd.s32 %s387, %s388
      %s390 = smul.addr %s382, 640
      %s391 = sadd.s32 %s389, %s390
      %s392 = smul.addr %s391, 4
      %s393 = scalar_lea.vmem %s1, %s392
      %p394 = pneg %p95
      %p395 = pneg %p92
      %s396 = sadd.s32 %s25, 2
      %s397 = smul.u32 32, %s26
      %p398 = scmp.lt.s32.totalorder %s24, 1
      %s399 = scalar_select %p398, %s24, 1
      %p400 = scmp.lt.s32.totalorder %s396, 9
      %s401 = scalar_select %p400, %s396, 9
      %p402 = scmp.lt.s32.totalorder %s397, 31
      %s403 = scalar_select %p402, %s397, 31
      %s404 = smul.addr %s403, 2
      %s405 = smul.addr %s401, 64
      %s406 = sadd.s32 %s404, %s405
      %s407 = smul.addr %s399, 640
      %s408 = sadd.s32 %s406, %s407
      %s409 = smul.addr %s408, 4
      %s410 = scalar_lea.vmem %s2, %s409
      %p411 = pneg %p127
      %p412 = pneg %p124
      %p413 = pneg %p148
      %p414 = pneg %p145
      %s415 = scalar_lea.vmem %s4, 108
      %p416 = pneg %p169
      %p417 = pneg %p166
      %s418 = scalar_lea.vmem %s5, 216
      %p419 = pneg %p190
      %p420 = pneg %p187
      %p421 = pneg %p211
      %p422 = pneg %p208
      %p423 = pneg %p232
      %p424 = pneg %p229
      %p425 = pneg %p262
      %p426 = pneg %p259
      %s427 = smul.u32 32, %s26
      %p428 = scmp.lt.s32.totalorder %s24, 1
      %s429 = scalar_select %p428, %s24, 1
      %p430 = scmp.lt.s32.totalorder %s25, 7
      %s431 = scalar_select %p430, %s25, 7
      %p432 = scmp.lt.s32.totalorder %s427, 31
      %s433 = scalar_select %p432, %s427, 31
      %s434 = smul.addr %s431, 32
      %s435 = sadd.s32 %s433, %s434
      %s436 = smul.addr %s429, 256
      %s437 = sadd.s32 %s435, %s436
      %s438 = smul.addr %s437, 4
      %s439 = scalar_lea.vmem %s8, %s438
      %s440 = smul.u32 32, %s26
      %p441 = scmp.lt.s32.totalorder %s24, 1
      %s442 = scalar_select %p441, %s24, 1
      %p443 = scmp.lt.s32.totalorder %s25, 9
      %s444 = scalar_select %p443, %s25, 9
      %p445 = scmp.lt.s32.totalorder %s440, 31
      %s446 = scalar_select %p445, %s440, 31
      %s447 = smul.addr %s446, 2
      %s448 = smul.addr %s444, 64
      %s449 = sadd.s32 %s447, %s448
      %s450 = smul.addr %s442, 640
      %s451 = sadd.s32 %s449, %s450
      %s452 = smul.addr %s451, 4
      %s453 = scalar_lea.vmem %s0, %s452
      %s454 = smul.u32 32, %s26
      %s455 = sadd.s32 %s25, 1
      %s456 = smul.u32 32, %s26
      %p457 = scmp.lt.s32.totalorder %s24, 1
      %s458 = scalar_select %p457, %s24, 1
      %p459 = scmp.lt.s32.totalorder %s455, 9
      %s460 = scalar_select %p459, %s455, 9
      %p461 = scmp.lt.s32.totalorder %s456, 31
      %s462 = scalar_select %p461, %s456, 31
      %s463 = smul.addr %s462, 2
      %s464 = smul.addr %s460, 64
      %s465 = sadd.s32 %s463, %s464
      %s466 = smul.addr %s458, 640
      %s467 = sadd.s32 %s465, %s466
      %s468 = smul.addr %s467, 4
      %s469 = scalar_lea.vmem %s1, %s468
      %s470 = sadd.s32 %s25, 1
      %s471 = smul.u32 32, %s26
      %s472 = sadd.s32 %s25, 2
      %s473 = smul.u32 32, %s26
      %p474 = scmp.lt.s32.totalorder %s24, 1
      %s475 = scalar_select %p474, %s24, 1
      %p476 = scmp.lt.s32.totalorder %s472, 9
      %s477 = scalar_select %p476, %s472, 9
      %p478 = scmp.lt.s32.totalorder %s473, 31
      %s479 = scalar_select %p478, %s473, 31
      %s480 = smul.addr %s479, 2
      %s481 = smul.addr %s477, 64
      %s482 = sadd.s32 %s480, %s481
      %s483 = smul.addr %s475, 640
      %s484 = sadd.s32 %s482, %s483
      %s485 = smul.addr %s484, 4
      %s486 = scalar_lea.vmem %s2, %s485
      %s487 = sadd.s32 %s25, 2
      %s488 = smul.u32 32, %s26
      %s489 = scalar_lea.vmem %s4, 108
      %s490 = scalar_lea.vmem %s5, 216
      %s491 = smul.u32 32, %s26
      %p492 = scmp.lt.s32.totalorder %s24, 1
      %s493 = scalar_select %p492, %s24, 1
      %p494 = scmp.lt.s32.totalorder %s25, 7
      %s495 = scalar_select %p494, %s25, 7
      %p496 = scmp.lt.s32.totalorder %s491, 31
      %s497 = scalar_select %p496, %s491, 31
      %s498 = smul.addr %s495, 32
      %s499 = sadd.s32 %s497, %s498
      %s500 = smul.addr %s493, 256
      %s501 = sadd.s32 %s499, %s500
      %s502 = smul.addr %s501, 4
      %s503 = scalar_lea.vmem %s8, %s502
      %s504 = smul.u32 32, %s26
      %v506 = vld [vmem:[%s453] sm:$0xff]
      %v507 = vld [vmem:[%s453 + $0x8] sm:$0xff]
      %v508 = vld [vmem:[%s453 + $0x10] sm:$0xff]
      %v509 = vld [vmem:[%s453 + $0x18] sm:$0xff]
      %v510 = vld [vmem:[%s453 + $0x20] sm:$0xff]
      %v511 = vld [vmem:[%s453 + $0x28] sm:$0xff]
      %v512 = vld [vmem:[%s453 + $0x30] sm:$0xff]
      %v513 = vld [vmem:[%s453 + $0x38] sm:$0xff]
      %v514 = vld [vmem:[%s453 + $0x40] sm:$0xff]
      %v515 = vld [vmem:[%s453 + $0x48] sm:$0xff]
      %v516 = vld [vmem:[%s453 + $0x50] sm:$0xff]
      %v517 = vld [vmem:[%s453 + $0x58] sm:$0xff]
      %v518 = vld [vmem:[%s453 + $0x60] sm:$0xff]
      %v519 = vld [vmem:[%s453 + $0x68] sm:$0xff]
      %v520 = vld [vmem:[%s453 + $0x70] sm:$0xff]
      %v521 = vld [vmem:[%s453 + $0x78] sm:$0xff]
      %v522 = vld [vmem:[%s453 + $0x80] sm:$0xff]
      %v523 = vld [vmem:[%s453 + $0x88] sm:$0xff]
      %v524 = vld [vmem:[%s453 + $0x90] sm:$0xff]
      %v525 = vld [vmem:[%s453 + $0x98] sm:$0xff]
      %v526 = vld [vmem:[%s453 + $0xa0] sm:$0xff]
      %v527 = vld [vmem:[%s453 + $0xa8] sm:$0xff]
      %v528 = vld [vmem:[%s453 + $0xb0] sm:$0xff]
      %v529 = vld [vmem:[%s453 + $0xb8] sm:$0xff]
      %v530 = vld [vmem:[%s453 + $0xc0] sm:$0xff]
      %v531 = vld [vmem:[%s453 + $0xc8] sm:$0xff]
      %v532 = vld [vmem:[%s453 + $0xd0] sm:$0xff]
      %v533 = vld [vmem:[%s453 + $0xd8] sm:$0xff]
      %v534 = vld [vmem:[%s453 + $0xe0] sm:$0xff]
      %v535 = vld [vmem:[%s453 + $0xe8] sm:$0xff]
      %v536 = vld [vmem:[%s453 + $0xf0] sm:$0xff]
      %v537 = vld [vmem:[%s453 + $0xf8] sm:$0xff]
      %v538 = vld [vmem:[%s3] sm:$0xf]
      %v539 = vld [vmem:[%s3 + $0x4] sm:$0xf]
      %v540 = vld [vmem:[%s3 + $0x8] sm:$0xf]
      %v541 = vld [vmem:[%s3 + $0xc] sm:$0xf]
      %v542 = vld [vmem:[%s3 + $0x10] sm:$0xf]
      %v543 = vld [vmem:[%s3 + $0x14] sm:$0xf]
      %v544 = vld [vmem:[%s3 + $0x18] sm:$0xf]
      %v545 = vld [vmem:[%s3 + $0x1c] sm:$0xf]
      %v546 = vld [vmem:[%s3 + $0x20] sm:$0xf]
      %v547 = vld [vmem:[%s3 + $0x24] sm:$0xf]
      %v548 = vld [vmem:[%s3 + $0x28] sm:$0xf]
      %v549 = vld [vmem:[%s3 + $0x2c] sm:$0xf]
      %v550 = vld [vmem:[%s3 + $0x30] sm:$0xf]
      %v551 = vld [vmem:[%s3 + $0x34] sm:$0xf]
      %v552 = vld [vmem:[%s3 + $0x38] sm:$0xf]
      %v553 = vld [vmem:[%s3 + $0x3c] sm:$0xf]
      %v554 = vld [vmem:[%s3 + $0x40] sm:$0xf]
      %v555 = vld [vmem:[%s3 + $0x44] sm:$0xf]
      %v556 = vld [vmem:[%s3 + $0x48] sm:$0xf]
      %v557 = vld [vmem:[%s3 + $0x4c] sm:$0xf]
      %v558 = vld [vmem:[%s3 + $0x50] sm:$0xf]
      %v559 = vld [vmem:[%s3 + $0x54] sm:$0xf]
      %v560 = vld [vmem:[%s3 + $0x58] sm:$0xf]
      %v561 = vld [vmem:[%s3 + $0x5c] sm:$0xf]
      %v562 = vld [vmem:[%s3 + $0x60] sm:$0xf]
      %v563 = vld [vmem:[%s3 + $0x64] sm:$0xf]
      %v564 = vld [vmem:[%s3 + $0x68] sm:$0xf]
      %v565 = vld [vmem:[%s469] sm:$0xff]
      %v566 = vld [vmem:[%s469 + $0x8] sm:$0xff]
      %v567 = vld [vmem:[%s469 + $0x10] sm:$0xff]
      %v568 = vld [vmem:[%s469 + $0x18] sm:$0xff]
      %v569 = vld [vmem:[%s469 + $0x20] sm:$0xff]
      %v570 = vld [vmem:[%s469 + $0x28] sm:$0xff]
      %v571 = vld [vmem:[%s469 + $0x30] sm:$0xff]
      %v572 = vld [vmem:[%s469 + $0x38] sm:$0xff]
      %v573 = vld [vmem:[%s469 + $0x40] sm:$0xff]
      %v574 = vld [vmem:[%s469 + $0x48] sm:$0xff]
      %v575 = vld [vmem:[%s469 + $0x50] sm:$0xff]
      %v576 = vld [vmem:[%s469 + $0x58] sm:$0xff]
      %v577 = vld [vmem:[%s469 + $0x60] sm:$0xff]
      %v578 = vld [vmem:[%s469 + $0x68] sm:$0xff]
      %v579 = vld [vmem:[%s469 + $0x70] sm:$0xff]
      %v580 = vld [vmem:[%s469 + $0x78] sm:$0xff]
      %v581 = vld [vmem:[%s469 + $0x80] sm:$0xff]
      %v582 = vld [vmem:[%s469 + $0x88] sm:$0xff]
      %v583 = vld [vmem:[%s469 + $0x90] sm:$0xff]
      %v584 = vld [vmem:[%s469 + $0x98] sm:$0xff]
      %v585 = vld [vmem:[%s469 + $0xa0] sm:$0xff]
      %v586 = vld [vmem:[%s469 + $0xa8] sm:$0xff]
      %v587 = vld [vmem:[%s469 + $0xb0] sm:$0xff]
      %v588 = vld [vmem:[%s469 + $0xb8] sm:$0xff]
      %v589 = vld [vmem:[%s469 + $0xc0] sm:$0xff]
      %v590 = vld [vmem:[%s469 + $0xc8] sm:$0xff]
      %v591 = vld [vmem:[%s469 + $0xd0] sm:$0xff]
      %v592 = vld [vmem:[%s469 + $0xd8] sm:$0xff]
      %v593 = vld [vmem:[%s469 + $0xe0] sm:$0xff]
      %v594 = vld [vmem:[%s469 + $0xe8] sm:$0xff]
      %v595 = vld [vmem:[%s469 + $0xf0] sm:$0xff]
      %v596 = vld [vmem:[%s469 + $0xf8] sm:$0xff]
      %v597 = vld [vmem:[%s489] sm:$0xf]
      %v598 = vld [vmem:[%s489 + $0x4] sm:$0xf]
      %v599 = vld [vmem:[%s489 + $0x8] sm:$0xf]
      %v600 = vld [vmem:[%s489 + $0xc] sm:$0xf]
      %v601 = vld [vmem:[%s489 + $0x10] sm:$0xf]
      %v602 = vld [vmem:[%s489 + $0x14] sm:$0xf]
      %v603 = vld [vmem:[%s489 + $0x18] sm:$0xf]
      %v604 = vld [vmem:[%s489 + $0x1c] sm:$0xf]
      %v605 = vld [vmem:[%s489 + $0x20] sm:$0xf]
      %v606 = vld [vmem:[%s489 + $0x24] sm:$0xf]
      %v607 = vld [vmem:[%s489 + $0x28] sm:$0xf]
      %v608 = vld [vmem:[%s489 + $0x2c] sm:$0xf]
      %v609 = vld [vmem:[%s489 + $0x30] sm:$0xf]
      %v610 = vld [vmem:[%s489 + $0x34] sm:$0xf]
      %v611 = vld [vmem:[%s489 + $0x38] sm:$0xf]
      %v612 = vld [vmem:[%s489 + $0x3c] sm:$0xf]
      %v613 = vld [vmem:[%s489 + $0x40] sm:$0xf]
      %v614 = vld [vmem:[%s489 + $0x44] sm:$0xf]
      %v615 = vld [vmem:[%s489 + $0x48] sm:$0xf]
      %v616 = vld [vmem:[%s489 + $0x4c] sm:$0xf]
      %v617 = vld [vmem:[%s489 + $0x50] sm:$0xf]
      %v618 = vld [vmem:[%s489 + $0x54] sm:$0xf]
      %v619 = vld [vmem:[%s489 + $0x58] sm:$0xf]
      %v620 = vld [vmem:[%s489 + $0x5c] sm:$0xf]
      %v621 = vld [vmem:[%s489 + $0x60] sm:$0xf]
      %v622 = vld [vmem:[%s489 + $0x64] sm:$0xf]
      %v623 = vld [vmem:[%s489 + $0x68] sm:$0xf]
      %v656 = vunpack.c.l.b16 %v565
      %v657 = vunpack.c.h.b16 %v565
      %v658 = vunpack.c.l.b16 %v566
      %v659 = vunpack.c.h.b16 %v566
      %v660 = vunpack.c.l.b16 %v567
      %v661 = vunpack.c.h.b16 %v567
      %v662 = vunpack.c.l.b16 %v568
      %v663 = vunpack.c.h.b16 %v568
      %v664 = vunpack.c.l.b16 %v569
      %v665 = vunpack.c.h.b16 %v569
      %v666 = vunpack.c.l.b16 %v570
      %v667 = vunpack.c.h.b16 %v570
      %v668 = vunpack.c.l.b16 %v571
      %v669 = vunpack.c.h.b16 %v571
      %v670 = vunpack.c.l.b16 %v572
      %v671 = vunpack.c.h.b16 %v572
      %v672 = vunpack.c.l.b16 %v573
      %v673 = vunpack.c.h.b16 %v573
      %v674 = vunpack.c.l.b16 %v574
      %v675 = vunpack.c.h.b16 %v574
      %v676 = vunpack.c.l.b16 %v575
      %v677 = vunpack.c.h.b16 %v575
      %v678 = vunpack.c.l.b16 %v576
      %v679 = vunpack.c.h.b16 %v576
      %v680 = vunpack.c.l.b16 %v577
      %v681 = vunpack.c.h.b16 %v577
      %v682 = vunpack.c.l.b16 %v578
      %v683 = vunpack.c.h.b16 %v578
      %v684 = vunpack.c.l.b16 %v579
      %v685 = vunpack.c.h.b16 %v579
      %v686 = vunpack.c.l.b16 %v580
      %v687 = vunpack.c.h.b16 %v580
      %v688 = vunpack.c.l.b16 %v581
      %v689 = vunpack.c.h.b16 %v581
      %v690 = vunpack.c.l.b16 %v582
      %v691 = vunpack.c.h.b16 %v582
      %v692 = vunpack.c.l.b16 %v583
      %v693 = vunpack.c.h.b16 %v583
      %v694 = vunpack.c.l.b16 %v584
      %v695 = vunpack.c.h.b16 %v584
      %v696 = vunpack.c.l.b16 %v585
      %v697 = vunpack.c.h.b16 %v585
      %v698 = vunpack.c.l.b16 %v586
      %v699 = vunpack.c.h.b16 %v586
      %v700 = vunpack.c.l.b16 %v587
      %v701 = vunpack.c.h.b16 %v587
      %v702 = vunpack.c.l.b16 %v588
      %v703 = vunpack.c.h.b16 %v588
      %v704 = vunpack.c.l.b16 %v589
      %v705 = vunpack.c.h.b16 %v589
      %v706 = vunpack.c.l.b16 %v590
      %v707 = vunpack.c.h.b16 %v590
      %v708 = vunpack.c.l.b16 %v591
      %v709 = vunpack.c.h.b16 %v591
      %v710 = vunpack.c.l.b16 %v592
      %v711 = vunpack.c.h.b16 %v592
      %v712 = vunpack.c.l.b16 %v593
      %v713 = vunpack.c.h.b16 %v593
      %v714 = vunpack.c.l.b16 %v594
      %v715 = vunpack.c.h.b16 %v594
      %v716 = vunpack.c.l.b16 %v595
      %v717 = vunpack.c.h.b16 %v595
      %v718 = vunpack.c.l.b16 %v596
      %v719 = vunpack.c.h.b16 %v596
      %v720 = vpack.c.b16 %v658, %v656
      %v721 = vpack.c.b16 %v659, %v657
      %v722 = vpack.c.b16 %v662, %v660
      %v723 = vpack.c.b16 %v663, %v661
      %v724 = vpack.c.b16 %v666, %v664
      %v725 = vpack.c.b16 %v667, %v665
      %v726 = vpack.c.b16 %v670, %v668
      %v727 = vpack.c.b16 %v671, %v669
      %v728 = vpack.c.b16 %v674, %v672
      %v729 = vpack.c.b16 %v675, %v673
      %v730 = vpack.c.b16 %v678, %v676
      %v731 = vpack.c.b16 %v679, %v677
      %v732 = vpack.c.b16 %v682, %v680
      %v733 = vpack.c.b16 %v683, %v681
      %v734 = vpack.c.b16 %v686, %v684
      %v735 = vpack.c.b16 %v687, %v685
      %v736 = vpack.c.b16 %v690, %v688
      %v737 = vpack.c.b16 %v691, %v689
      %v738 = vpack.c.b16 %v694, %v692
      %v739 = vpack.c.b16 %v695, %v693
      %v740 = vpack.c.b16 %v698, %v696
      %v741 = vpack.c.b16 %v699, %v697
      %v742 = vpack.c.b16 %v702, %v700
      %v743 = vpack.c.b16 %v703, %v701
      %v744 = vpack.c.b16 %v706, %v704
      %v745 = vpack.c.b16 %v707, %v705
      %v746 = vpack.c.b16 %v710, %v708
      %v747 = vpack.c.b16 %v711, %v709
      %v748 = vpack.c.b16 %v714, %v712
      %v749 = vpack.c.b16 %v715, %v713
      %v750 = vpack.c.b16 %v718, %v716
      %v751 = vpack.c.b16 %v719, %v717
      %v795 = vunpack.c.l.b16 %v597
      %v796 = vunpack.c.l.b16 %v598
      %v797 = vunpack.c.l.b16 %v599
      %v798 = vunpack.c.l.b16 %v600
      %v799 = vunpack.c.l.b16 %v601
      %v800 = vunpack.c.l.b16 %v602
      %v801 = vunpack.c.l.b16 %v603
      %v802 = vunpack.c.l.b16 %v604
      %v803 = vunpack.c.l.b16 %v605
      %v804 = vunpack.c.l.b16 %v606
      %v805 = vunpack.c.l.b16 %v607
      %v806 = vunpack.c.l.b16 %v608
      %v807 = vunpack.c.l.b16 %v609
      %v808 = vunpack.c.l.b16 %v610
      %v809 = vunpack.c.l.b16 %v611
      %v810 = vunpack.c.l.b16 %v612
      %v811 = vunpack.c.l.b16 %v613
      %v812 = vunpack.c.l.b16 %v614
      %v813 = vunpack.c.l.b16 %v615
      %v814 = vunpack.c.l.b16 %v616
      %v815 = vunpack.c.l.b16 %v617
      %v816 = vunpack.c.l.b16 %v618
      %v817 = vunpack.c.l.b16 %v619
      %v818 = vunpack.c.l.b16 %v620
      %v819 = vunpack.c.l.b16 %v621
      %v820 = vunpack.c.l.b16 %v622
      %v821 = vunpack.c.l.b16 %v623
      %v822 = vpack.c.b16 %v796, %v795
      %v823 = vpack.c.b16 %v798, %v797
      %v824 = vpack.c.b16 %v800, %v799
      %v825 = vpack.c.b16 %v802, %v801
      %v826 = vpack.c.b16 %v804, %v803
      %v827 = vpack.c.b16 %v806, %v805
      %v828 = vpack.c.b16 %v808, %v807
      %v829 = vpack.c.b16 %v810, %v809
      %v830 = vpack.c.b16 %v812, %v811
      %v831 = vpack.c.b16 %v814, %v813
      %v832 = vpack.c.b16 %v816, %v815
      %v833 = vpack.c.b16 %v818, %v817
      %v834 = vpack.c.b16 %v820, %v819
      %v835 = vpack.c.b16 %v821, %v821
      %vm849 = vcmask 719872
      %v851 = vsel %vm849, %v721, 0
      %v854 = vsel %vm849, %v723, 0
      %v857 = vsel %vm849, %v725, 0
      %v860 = vsel %vm849, %v727, 0
      %v863 = vsel %vm849, %v729, 0
      %v866 = vsel %vm849, %v731, 0
      %v869 = vsel %vm849, %v733, 0
      %v872 = vsel %vm849, %v735, 0
      %v875 = vsel %vm849, %v737, 0
      %v878 = vsel %vm849, %v739, 0
      %v881 = vsel %vm849, %v741, 0
      %v884 = vsel %vm849, %v743, 0
      %v887 = vsel %vm849, %v745, 0
      %v890 = vsel %vm849, %v747, 0
      %v893 = vsel %vm849, %v749, 0
      %v896 = vsel %vm849, %v751, 0
      %vm898 = vcmask 1043456
      %v900 = vsel %vm898, %v835, 0
      %902 = vmatprep.subr.bf16.mxu0 0
      %903 = vmatpush1.bf16.msra.mxu0 %v822
      %904 = vmatprep.subr.bf16.mxu0 0
      %905 = vmatpush1.bf16.msra.mxu0 %v823
      %906 = vmatprep.subr.bf16.mxu0 0
      %907 = vmatpush1.bf16.msra.mxu0 %v824
      %908 = vmatprep.subr.bf16.mxu0 0
      %909 = vmatpush1.bf16.msra.mxu0 %v825
      %910 = vmatprep.subr.bf16.mxu0 0
      %911 = vmatpush1.bf16.msra.mxu0 %v826
      %912 = vmatprep.subr.bf16.mxu0 0
      %913 = vmatpush1.bf16.msra.mxu0 %v827
      %914 = vmatprep.subr.bf16.mxu0 0
      %915 = vmatpush1.bf16.msra.mxu0 %v828
      %916 = vmatprep.subr.bf16.mxu0 0
      %917 = vmatpush1.bf16.msra.mxu0 %v829
      %918 = vmatprep.subr.bf16.mxu0 0
      %919 = vmatpush1.bf16.msra.mxu0 %v830
      %920 = vmatprep.subr.bf16.mxu0 0
      %921 = vmatpush1.bf16.msra.mxu0 %v831
      %922 = vmatprep.subr.bf16.mxu0 0
      %923 = vmatpush1.bf16.msra.mxu0 %v832
      %924 = vmatprep.subr.bf16.mxu0 0
      %925 = vmatpush1.bf16.msra.mxu0 %v833
      %926 = vmatprep.subr.bf16.mxu0 0
      %927 = vmatpush1.bf16.msra.mxu0 %v834
      %928 = vmatprep.subr.bf16.mxu0 0
      %929 = vmatpush1.bf16.msra.mxu0 %v900
      %930 = vmatprep.subr.bf16.mxu0 0
      %931 = vmatpush1.bf16.msra.mxu0 0
      %932 = vmatprep.subr.bf16.mxu0 0
      %933 = vmatpush1.bf16.msra.mxu0 0
      %934 = vmatprep.mubr.bf16.mxu0 %v851
      %935 = vmatmul.mubr.bf16.gmra.mrb[0].mxu0 %v720
      %v936 = vpop.f32.mrb[0].mxu0
      %v937 = vadd.f32 0.0, %v936
      %v938 = vpop.f32.mrb[0].mxu0
      %v939 = vpop.f32.mrb[0].mxu0
      %v940 = vadd.f32 0.0, %v939
      %v941 = vpop.f32.mrb[0].mxu0
      %942 = vmatprep.mubr.bf16.mxu0 %v854
      %943 = vmatmul.mubr.bf16.gmra.mrb[0].mxu0 %v722
      %v944 = vpop.f32.mrb[0].mxu0
      %v945 = vadd.f32 0.0, %v944
      %v946 = vpop.f32.mrb[0].mxu0
      %v947 = vpop.f32.mrb[0].mxu0
      %v948 = vadd.f32 0.0, %v947
      %v949 = vpop.f32.mrb[0].mxu0
      %950 = vmatprep.mubr.bf16.mxu0 %v857
      %951 = vmatmul.mubr.bf16.gmra.mrb[0].mxu0 %v724
      %v952 = vpop.f32.mrb[0].mxu0
      %v953 = vadd.f32 0.0, %v952
      %v954 = vpop.f32.mrb[0].mxu0
      %v955 = vpop.f32.mrb[0].mxu0
      %v956 = vadd.f32 0.0, %v955
      %v957 = vpop.f32.mrb[0].mxu0
      %958 = vmatprep.mubr.bf16.mxu0 %v860
      %959 = vmatmul.mubr.bf16.gmra.mrb[0].mxu0 %v726
      %v960 = vpop.f32.mrb[0].mxu0
      %v961 = vadd.f32 0.0, %v960
      %v962 = vpop.f32.mrb[0].mxu0
      %v963 = vpop.f32.mrb[0].mxu0
      %v964 = vadd.f32 0.0, %v963
      %v965 = vpop.f32.mrb[0].mxu0
      %966 = vmatprep.mubr.bf16.mxu0 %v863
      %967 = vmatmul.mubr.bf16.gmra.mrb[0].mxu0 %v728
      %v968 = vpop.f32.mrb[0].mxu0
      %v969 = vadd.f32 0.0, %v968
      %v970 = vpop.f32.mrb[0].mxu0
      %v971 = vpop.f32.mrb[0].mxu0
      %v972 = vadd.f32 0.0, %v971
      %v973 = vpop.f32.mrb[0].mxu0
      %974 = vmatprep.mubr.bf16.mxu0 %v866
      %975 = vmatmul.mubr.bf16.gmra.mrb[0].mxu0 %v730
      %v976 = vpop.f32.mrb[0].mxu0
      %v977 = vadd.f32 0.0, %v976
      %v978 = vpop.f32.mrb[0].mxu0
      %v979 = vpop.f32.mrb[0].mxu0
      %v980 = vadd.f32 0.0, %v979
      %v981 = vpop.f32.mrb[0].mxu0
      %982 = vmatprep.mubr.bf16.mxu0 %v869
      %983 = vmatmul.mubr.bf16.gmra.mrb[0].mxu0 %v732
      %v984 = vpop.f32.mrb[0].mxu0
      %v985 = vadd.f32 0.0, %v984
      %v986 = vpop.f32.mrb[0].mxu0
      %v987 = vpop.f32.mrb[0].mxu0
      %v988 = vadd.f32 0.0, %v987
      %v989 = vpop.f32.mrb[0].mxu0
      %990 = vmatprep.mubr.bf16.mxu0 %v872
      %991 = vmatmul.mubr.bf16.gmra.mrb[0].mxu0 %v734
      %v992 = vpop.f32.mrb[0].mxu0
      %v993 = vadd.f32 0.0, %v992
      %v994 = vpop.f32.mrb[0].mxu0
      %v995 = vpop.f32.mrb[0].mxu0
      %v996 = vadd.f32 0.0, %v995
      %v997 = vpop.f32.mrb[0].mxu0
      %998 = vmatprep.mubr.bf16.mxu0 %v875
      %999 = vmatmul.mubr.bf16.gmra.mrb[0].mxu0 %v736
      %v1000 = vpop.f32.mrb[0].mxu0
      %v1001 = vadd.f32 0.0, %v1000
      %v1002 = vpop.f32.mrb[0].mxu0
      %v1003 = vpop.f32.mrb[0].mxu0
      %v1004 = vadd.f32 0.0, %v1003
      %v1005 = vpop.f32.mrb[0].mxu0
      %1006 = vmatprep.mubr.bf16.mxu0 %v878
      %1007 = vmatmul.mubr.bf16.gmra.mrb[0].mxu0 %v738
      %v1008 = vpop.f32.mrb[0].mxu0
      %v1009 = vadd.f32 0.0, %v1008
      %v1010 = vpop.f32.mrb[0].mxu0
      %v1011 = vpop.f32.mrb[0].mxu0
      %v1012 = vadd.f32 0.0, %v1011
      %v1013 = vpop.f32.mrb[0].mxu0
      %1014 = vmatprep.mubr.bf16.mxu0 %v881
      %1015 = vmatmul.mubr.bf16.gmra.mrb[0].mxu0 %v740
      %v1016 = vpop.f32.mrb[0].mxu0
      %v1017 = vadd.f32 0.0, %v1016
      %v1018 = vpop.f32.mrb[0].mxu0
      %v1019 = vpop.f32.mrb[0].mxu0
      %v1020 = vadd.f32 0.0, %v1019
      %v1021 = vpop.f32.mrb[0].mxu0
      %1022 = vmatprep.mubr.bf16.mxu0 %v884
      %1023 = vmatmul.mubr.bf16.gmra.mrb[0].mxu0 %v742
      %v1024 = vpop.f32.mrb[0].mxu0
      %v1025 = vadd.f32 0.0, %v1024
      %v1026 = vpop.f32.mrb[0].mxu0
      %v1027 = vpop.f32.mrb[0].mxu0
      %v1028 = vadd.f32 0.0, %v1027
      %v1029 = vpop.f32.mrb[0].mxu0
      %1030 = vmatprep.mubr.bf16.mxu0 %v887
      %1031 = vmatmul.mubr.bf16.gmra.mrb[0].mxu0 %v744
      %v1032 = vpop.f32.mrb[0].mxu0
      %v1033 = vadd.f32 0.0, %v1032
      %v1034 = vpop.f32.mrb[0].mxu0
      %v1035 = vpop.f32.mrb[0].mxu0
      %v1036 = vadd.f32 0.0, %v1035
      %v1037 = vpop.f32.mrb[0].mxu0
      %1038 = vmatprep.mubr.bf16.mxu0 %v890
      %1039 = vmatmul.mubr.bf16.gmra.mrb[0].mxu0 %v746
      %v1040 = vpop.f32.mrb[0].mxu0
      %v1041 = vadd.f32 0.0, %v1040
      %v1042 = vpop.f32.mrb[0].mxu0
      %v1043 = vpop.f32.mrb[0].mxu0
      %v1044 = vadd.f32 0.0, %v1043
      %v1045 = vpop.f32.mrb[0].mxu0
      %1046 = vmatprep.mubr.bf16.mxu0 %v893
      %1047 = vmatmul.mubr.bf16.gmra.mrb[0].mxu0 %v748
      %v1048 = vpop.f32.mrb[0].mxu0
      %v1049 = vadd.f32 0.0, %v1048
      %v1050 = vpop.f32.mrb[0].mxu0
      %v1051 = vpop.f32.mrb[0].mxu0
      %v1052 = vadd.f32 0.0, %v1051
      %v1053 = vpop.f32.mrb[0].mxu0
      %1054 = vmatprep.mubr.bf16.mxu0 %v896
      %1055 = vmatmul.mubr.bf16.gmra.mrb[0].mxu0 %v750
      %v1056 = vpop.f32.mrb[0].mxu0
      %v1057 = vadd.f32 0.0, %v1056
      %v1058 = vpop.f32.mrb[0].mxu0
      %v1059 = vpop.f32.mrb[0].mxu0
      %v1060 = vadd.f32 0.0, %v1059
      %v1061 = vpop.f32.mrb[0].mxu0
      %1062 = vdwg.mxu0
      %v1095 = vunpack.c.l.b16 %v506
      %v1096 = vunpack.c.h.b16 %v506
      %v1097 = vunpack.c.l.b16 %v507
      %v1098 = vunpack.c.h.b16 %v507
      %v1099 = vunpack.c.l.b16 %v508
      %v1100 = vunpack.c.h.b16 %v508
      %v1101 = vunpack.c.l.b16 %v509
      %v1102 = vunpack.c.h.b16 %v509
      %v1103 = vunpack.c.l.b16 %v510
      %v1104 = vunpack.c.h.b16 %v510
      %v1105 = vunpack.c.l.b16 %v511
      %v1106 = vunpack.c.h.b16 %v511
      %v1107 = vunpack.c.l.b16 %v512
      %v1108 = vunpack.c.h.b16 %v512
      %v1109 = vunpack.c.l.b16 %v513
      %v1110 = vunpack.c.h.b16 %v513
      %v1111 = vunpack.c.l.b16 %v514
      %v1112 = vunpack.c.h.b16 %v514
      %v1113 = vunpack.c.l.b16 %v515
      %v1114 = vunpack.c.h.b16 %v515
      %v1115 = vunpack.c.l.b16 %v516
      %v1116 = vunpack.c.h.b16 %v516
      %v1117 = vunpack.c.l.b16 %v517
      %v1118 = vunpack.c.h.b16 %v517
      %v1119 = vunpack.c.l.b16 %v518
      %v1120 = vunpack.c.h.b16 %v518
      %v1121 = vunpack.c.l.b16 %v519
      %v1122 = vunpack.c.h.b16 %v519
      %v1123 = vunpack.c.l.b16 %v520
      %v1124 = vunpack.c.h.b16 %v520
      %v1125 = vunpack.c.l.b16 %v521
      %v1126 = vunpack.c.h.b16 %v521
      %v1127 = vunpack.c.l.b16 %v522
      %v1128 = vunpack.c.h.b16 %v522
      %v1129 = vunpack.c.l.b16 %v523
      %v1130 = vunpack.c.h.b16 %v523
      %v1131 = vunpack.c.l.b16 %v524
      %v1132 = vunpack.c.h.b16 %v524
      %v1133 = vunpack.c.l.b16 %v525
      %v1134 = vunpack.c.h.b16 %v525
      %v1135 = vunpack.c.l.b16 %v526
      %v1136 = vunpack.c.h.b16 %v526
      %v1137 = vunpack.c.l.b16 %v527
      %v1138 = vunpack.c.h.b16 %v527
      %v1139 = vunpack.c.l.b16 %v528
      %v1140 = vunpack.c.h.b16 %v528
      %v1141 = vunpack.c.l.b16 %v529
      %v1142 = vunpack.c.h.b16 %v529
      %v1143 = vunpack.c.l.b16 %v530
      %v1144 = vunpack.c.h.b16 %v530
      %v1145 = vunpack.c.l.b16 %v531
      %v1146 = vunpack.c.h.b16 %v531
      %v1147 = vunpack.c.l.b16 %v532
      %v1148 = vunpack.c.h.b16 %v532
      %v1149 = vunpack.c.l.b16 %v533
      %v1150 = vunpack.c.h.b16 %v533
      %v1151 = vunpack.c.l.b16 %v534
      %v1152 = vunpack.c.h.b16 %v534
      %v1153 = vunpack.c.l.b16 %v535
      %v1154 = vunpack.c.h.b16 %v535
      %v1155 = vunpack.c.l.b16 %v536
      %v1156 = vunpack.c.h.b16 %v536
      %v1157 = vunpack.c.l.b16 %v537
      %v1158 = vunpack.c.h.b16 %v537
      %v1159 = vpack.c.b16 %v1097, %v1095
      %v1160 = vpack.c.b16 %v1098, %v1096
      %v1161 = vpack.c.b16 %v1101, %v1099
      %v1162 = vpack.c.b16 %v1102, %v1100
      %v1163 = vpack.c.b16 %v1105, %v1103
      %v1164 = vpack.c.b16 %v1106, %v1104
      %v1165 = vpack.c.b16 %v1109, %v1107
      %v1166 = vpack.c.b16 %v1110, %v1108
      %v1167 = vpack.c.b16 %v1113, %v1111
      %v1168 = vpack.c.b16 %v1114, %v1112
      %v1169 = vpack.c.b16 %v1117, %v1115
      %v1170 = vpack.c.b16 %v1118, %v1116
      %v1171 = vpack.c.b16 %v1121, %v1119
      %v1172 = vpack.c.b16 %v1122, %v1120
      %v1173 = vpack.c.b16 %v1125, %v1123
      %v1174 = vpack.c.b16 %v1126, %v1124
      %v1175 = vpack.c.b16 %v1129, %v1127
      %v1176 = vpack.c.b16 %v1130, %v1128
      %v1177 = vpack.c.b16 %v1133, %v1131
      %v1178 = vpack.c.b16 %v1134, %v1132
      %v1179 = vpack.c.b16 %v1137, %v1135
      %v1180 = vpack.c.b16 %v1138, %v1136
      %v1181 = vpack.c.b16 %v1141, %v1139
      %v1182 = vpack.c.b16 %v1142, %v1140
      %v1183 = vpack.c.b16 %v1145, %v1143
      %v1184 = vpack.c.b16 %v1146, %v1144
      %v1185 = vpack.c.b16 %v1149, %v1147
      %v1186 = vpack.c.b16 %v1150, %v1148
      %v1187 = vpack.c.b16 %v1153, %v1151
      %v1188 = vpack.c.b16 %v1154, %v1152
      %v1189 = vpack.c.b16 %v1157, %v1155
      %v1190 = vpack.c.b16 %v1158, %v1156
      %v1234 = vunpack.c.l.b16 %v538
      %v1235 = vunpack.c.l.b16 %v539
      %v1236 = vunpack.c.l.b16 %v540
      %v1237 = vunpack.c.l.b16 %v541
      %v1238 = vunpack.c.l.b16 %v542
      %v1239 = vunpack.c.l.b16 %v543
      %v1240 = vunpack.c.l.b16 %v544
      %v1241 = vunpack.c.l.b16 %v545
      %v1242 = vunpack.c.l.b16 %v546
      %v1243 = vunpack.c.l.b16 %v547
      %v1244 = vunpack.c.l.b16 %v548
      %v1245 = vunpack.c.l.b16 %v549
      %v1246 = vunpack.c.l.b16 %v550
      %v1247 = vunpack.c.l.b16 %v551
      %v1248 = vunpack.c.l.b16 %v552
      %v1249 = vunpack.c.l.b16 %v553
      %v1250 = vunpack.c.l.b16 %v554
      %v1251 = vunpack.c.l.b16 %v555
      %v1252 = vunpack.c.l.b16 %v556
      %v1253 = vunpack.c.l.b16 %v557
      %v1254 = vunpack.c.l.b16 %v558
      %v1255 = vunpack.c.l.b16 %v559
      %v1256 = vunpack.c.l.b16 %v560
      %v1257 = vunpack.c.l.b16 %v561
      %v1258 = vunpack.c.l.b16 %v562
      %v1259 = vunpack.c.l.b16 %v563
      %v1260 = vunpack.c.l.b16 %v564
      %v1261 = vpack.c.b16 %v1235, %v1234
      %v1262 = vpack.c.b16 %v1237, %v1236
      %v1263 = vpack.c.b16 %v1239, %v1238
      %v1264 = vpack.c.b16 %v1241, %v1240
      %v1265 = vpack.c.b16 %v1243, %v1242
      %v1266 = vpack.c.b16 %v1245, %v1244
      %v1267 = vpack.c.b16 %v1247, %v1246
      %v1268 = vpack.c.b16 %v1249, %v1248
      %v1269 = vpack.c.b16 %v1251, %v1250
      %v1270 = vpack.c.b16 %v1253, %v1252
      %v1271 = vpack.c.b16 %v1255, %v1254
      %v1272 = vpack.c.b16 %v1257, %v1256
      %v1273 = vpack.c.b16 %v1259, %v1258
      %v1274 = vpack.c.b16 %v1260, %v1260
      %v1289 = vsel %vm849, %v1160, 0
      %v1292 = vsel %vm849, %v1162, 0
      %v1295 = vsel %vm849, %v1164, 0
      %v1298 = vsel %vm849, %v1166, 0
      %v1301 = vsel %vm849, %v1168, 0
      %v1304 = vsel %vm849, %v1170, 0
      %v1307 = vsel %vm849, %v1172, 0
      %v1310 = vsel %vm849, %v1174, 0
      %v1313 = vsel %vm849, %v1176, 0
      %v1316 = vsel %vm849, %v1178, 0
      %v1319 = vsel %vm849, %v1180, 0
      %v1322 = vsel %vm849, %v1182, 0
      %v1325 = vsel %vm849, %v1184, 0
      %v1328 = vsel %vm849, %v1186, 0
      %v1331 = vsel %vm849, %v1188, 0
      %v1334 = vsel %vm849, %v1190, 0
      %v1337 = vsel %vm898, %v1274, 0
      %1339 = vmatprep.subr.bf16.mxu0 0
      %1340 = vmatpush1.bf16.msra.mxu0 %v1261
      %1341 = vmatprep.subr.bf16.mxu0 0
      %1342 = vmatpush1.bf16.msra.mxu0 %v1262
      %1343 = vmatprep.subr.bf16.mxu0 0
      %1344 = vmatpush1.bf16.msra.mxu0 %v1263
      %1345 = vmatprep.subr.bf16.mxu0 0
      %1346 = vmatpush1.bf16.msra.mxu0 %v1264
      %1347 = vmatprep.subr.bf16.mxu0 0
      %1348 = vmatpush1.bf16.msra.mxu0 %v1265
      %1349 = vmatprep.subr.bf16.mxu0 0
      %1350 = vmatpush1.bf16.msra.mxu0 %v1266
      %1351 = vmatprep.subr.bf16.mxu0 0
      %1352 = vmatpush1.bf16.msra.mxu0 %v1267
      %1353 = vmatprep.subr.bf16.mxu0 0
      %1354 = vmatpush1.bf16.msra.mxu0 %v1268
      %1355 = vmatprep.subr.bf16.mxu0 0
      %1356 = vmatpush1.bf16.msra.mxu0 %v1269
      %1357 = vmatprep.subr.bf16.mxu0 0
      %1358 = vmatpush1.bf16.msra.mxu0 %v1270
      %1359 = vmatprep.subr.bf16.mxu0 0
      %1360 = vmatpush1.bf16.msra.mxu0 %v1271
      %1361 = vmatprep.subr.bf16.mxu0 0
      %1362 = vmatpush1.bf16.msra.mxu0 %v1272
      %1363 = vmatprep.subr.bf16.mxu0 0
      %1364 = vmatpush1.bf16.msra.mxu0 %v1273
      %1365 = vmatprep.subr.bf16.mxu0 0
      %1366 = vmatpush1.bf16.msra.mxu0 %v1337
      %1367 = vmatprep.subr.bf16.mxu0 0
      %1368 = vmatpush1.bf16.msra.mxu0 0
      %1369 = vmatprep.subr.bf16.mxu0 0
      %1370 = vmatpush1.bf16.msra.mxu0 0
      %1371 = vmatprep.mubr.bf16.mxu0 %v1289
      %1372 = vmatmul.mubr.bf16.gmra.mrb[0].mxu0 %v1159
      %v1373 = vpop.f32.mrb[0].mxu0
      %v1374 = vadd.f32 %v937, %v1373
      %v1375 = vpop.f32.mrb[0].mxu0
      %v1376 = vpop.f32.mrb[0].mxu0
      %v1377 = vadd.f32 %v940, %v1376
      %v1378 = vpop.f32.mrb[0].mxu0
      %1379 = vmatprep.mubr.bf16.mxu0 %v1292
      %1380 = vmatmul.mubr.bf16.gmra.mrb[0].mxu0 %v1161
      %v1381 = vpop.f32.mrb[0].mxu0
      %v1382 = vadd.f32 %v945, %v1381
      %v1383 = vpop.f32.mrb[0].mxu0
      %v1384 = vpop.f32.mrb[0].mxu0
      %v1385 = vadd.f32 %v948, %v1384
      %v1386 = vpop.f32.mrb[0].mxu0
      %1387 = vmatprep.mubr.bf16.mxu0 %v1295
      %1388 = vmatmul.mubr.bf16.gmra.mrb[0].mxu0 %v1163
      %v1389 = vpop.f32.mrb[0].mxu0
      %v1390 = vadd.f32 %v953, %v1389
      %v1391 = vpop.f32.mrb[0].mxu0
      %v1392 = vpop.f32.mrb[0].mxu0
      %v1393 = vadd.f32 %v956, %v1392
      %v1394 = vpop.f32.mrb[0].mxu0
      %1395 = vmatprep.mubr.bf16.mxu0 %v1298
      %1396 = vmatmul.mubr.bf16.gmra.mrb[0].mxu0 %v1165
      %v1397 = vpop.f32.mrb[0].mxu0
      %v1398 = vadd.f32 %v961, %v1397
      %v1399 = vpop.f32.mrb[0].mxu0
      %v1400 = vpop.f32.mrb[0].mxu0
      %v1401 = vadd.f32 %v964, %v1400
      %v1402 = vpop.f32.mrb[0].mxu0
      %1403 = vmatprep.mubr.bf16.mxu0 %v1301
      %1404 = vmatmul.mubr.bf16.gmra.mrb[0].mxu0 %v1167
      %v1405 = vpop.f32.mrb[0].mxu0
      %v1406 = vadd.f32 %v969, %v1405
      %v1407 = vpop.f32.mrb[0].mxu0
      %v1408 = vpop.f32.mrb[0].mxu0
      %v1409 = vadd.f32 %v972, %v1408
      %v1410 = vpop.f32.mrb[0].mxu0
      %1411 = vmatprep.mubr.bf16.mxu0 %v1304
      %1412 = vmatmul.mubr.bf16.gmra.mrb[0].mxu0 %v1169
      %v1413 = vpop.f32.mrb[0].mxu0
      %v1414 = vadd.f32 %v977, %v1413
      %v1415 = vpop.f32.mrb[0].mxu0
      %v1416 = vpop.f32.mrb[0].mxu0
      %v1417 = vadd.f32 %v980, %v1416
      %v1418 = vpop.f32.mrb[0].mxu0
      %1419 = vmatprep.mubr.bf16.mxu0 %v1307
      %1420 = vmatmul.mubr.bf16.gmra.mrb[0].mxu0 %v1171
      %v1421 = vpop.f32.mrb[0].mxu0
      %v1422 = vadd.f32 %v985, %v1421
      %v1423 = vpop.f32.mrb[0].mxu0
      %v1424 = vpop.f32.mrb[0].mxu0
      %v1425 = vadd.f32 %v988, %v1424
      %v1426 = vpop.f32.mrb[0].mxu0
      %1427 = vmatprep.mubr.bf16.mxu0 %v1310
      %1428 = vmatmul.mubr.bf16.gmra.mrb[0].mxu0 %v1173
      %v1429 = vpop.f32.mrb[0].mxu0
      %v1430 = vadd.f32 %v993, %v1429
      %v1431 = vpop.f32.mrb[0].mxu0
      %v1432 = vpop.f32.mrb[0].mxu0
      %v1433 = vadd.f32 %v996, %v1432
      %v1434 = vpop.f32.mrb[0].mxu0
      %1435 = vmatprep.mubr.bf16.mxu0 %v1313
      %1436 = vmatmul.mubr.bf16.gmra.mrb[0].mxu0 %v1175
      %v1437 = vpop.f32.mrb[0].mxu0
      %v1438 = vadd.f32 %v1001, %v1437
      %v1439 = vpop.f32.mrb[0].mxu0
      %v1440 = vpop.f32.mrb[0].mxu0
      %v1441 = vadd.f32 %v1004, %v1440
      %v1442 = vpop.f32.mrb[0].mxu0
      %1443 = vmatprep.mubr.bf16.mxu0 %v1316
      %1444 = vmatmul.mubr.bf16.gmra.mrb[0].mxu0 %v1177
      %v1445 = vpop.f32.mrb[0].mxu0
      %v1446 = vadd.f32 %v1009, %v1445
      %v1447 = vpop.f32.mrb[0].mxu0
      %v1448 = vpop.f32.mrb[0].mxu0
      %v1449 = vadd.f32 %v1012, %v1448
      %v1450 = vpop.f32.mrb[0].mxu0
      %1451 = vmatprep.mubr.bf16.mxu0 %v1319
      %1452 = vmatmul.mubr.bf16.gmra.mrb[0].mxu0 %v1179
      %v1453 = vpop.f32.mrb[0].mxu0
      %v1454 = vadd.f32 %v1017, %v1453
      %v1455 = vpop.f32.mrb[0].mxu0
      %v1456 = vpop.f32.mrb[0].mxu0
      %v1457 = vadd.f32 %v1020, %v1456
      %v1458 = vpop.f32.mrb[0].mxu0
      %1459 = vmatprep.mubr.bf16.mxu0 %v1322
      %1460 = vmatmul.mubr.bf16.gmra.mrb[0].mxu0 %v1181
      %v1461 = vpop.f32.mrb[0].mxu0
      %v1462 = vadd.f32 %v1025, %v1461
      %v1463 = vpop.f32.mrb[0].mxu0
      %v1464 = vpop.f32.mrb[0].mxu0
      %v1465 = vadd.f32 %v1028, %v1464
      %v1466 = vpop.f32.mrb[0].mxu0
      %1467 = vmatprep.mubr.bf16.mxu0 %v1325
      %1468 = vmatmul.mubr.bf16.gmra.mrb[0].mxu0 %v1183
      %v1469 = vpop.f32.mrb[0].mxu0
      %v1470 = vadd.f32 %v1033, %v1469
      %v1471 = vpop.f32.mrb[0].mxu0
      %v1472 = vpop.f32.mrb[0].mxu0
      %v1473 = vadd.f32 %v1036, %v1472
      %v1474 = vpop.f32.mrb[0].mxu0
      %1475 = vmatprep.mubr.bf16.mxu0 %v1328
      %1476 = vmatmul.mubr.bf16.gmra.mrb[0].mxu0 %v1185
      %v1477 = vpop.f32.mrb[0].mxu0
      %v1478 = vadd.f32 %v1041, %v1477
      %v1479 = vpop.f32.mrb[0].mxu0
      %v1480 = vpop.f32.mrb[0].mxu0
      %v1481 = vadd.f32 %v1044, %v1480
      %v1482 = vpop.f32.mrb[0].mxu0
      %1483 = vmatprep.mubr.bf16.mxu0 %v1331
      %1484 = vmatmul.mubr.bf16.gmra.mrb[0].mxu0 %v1187
      %v1485 = vpop.f32.mrb[0].mxu0
      %v1486 = vadd.f32 %v1049, %v1485
      %v1487 = vpop.f32.mrb[0].mxu0
      %v1488 = vpop.f32.mrb[0].mxu0
      %v1489 = vadd.f32 %v1052, %v1488
      %v1490 = vpop.f32.mrb[0].mxu0
      %1491 = vmatprep.mubr.bf16.mxu0 %v1334
      %1492 = vmatmul.mubr.bf16.gmra.mrb[0].mxu0 %v1189
      %v1493 = vpop.f32.mrb[0].mxu0
      %v1494 = vadd.f32 %v1057, %v1493
      %v1495 = vpop.f32.mrb[0].mxu0
      %v1496 = vpop.f32.mrb[0].mxu0
      %v1497 = vadd.f32 %v1060, %v1496
      %v1498 = vpop.f32.mrb[0].mxu0
      %1499 = vdwg.mxu0
      %v1500 = vld [vmem:[%s486] sm:$0xff]
      %v1501 = vld [vmem:[%s486 + $0x8] sm:$0xff]
      %v1502 = vld [vmem:[%s486 + $0x10] sm:$0xff]
      %v1503 = vld [vmem:[%s486 + $0x18] sm:$0xff]
      %v1504 = vld [vmem:[%s486 + $0x20] sm:$0xff]
      %v1505 = vld [vmem:[%s486 + $0x28] sm:$0xff]
      %v1506 = vld [vmem:[%s486 + $0x30] sm:$0xff]
      %v1507 = vld [vmem:[%s486 + $0x38] sm:$0xff]
      %v1508 = vld [vmem:[%s486 + $0x40] sm:$0xff]
      %v1509 = vld [vmem:[%s486 + $0x48] sm:$0xff]
      %v1510 = vld [vmem:[%s486 + $0x50] sm:$0xff]
      %v1511 = vld [vmem:[%s486 + $0x58] sm:$0xff]
      %v1512 = vld [vmem:[%s486 + $0x60] sm:$0xff]
      %v1513 = vld [vmem:[%s486 + $0x68] sm:$0xff]
      %v1514 = vld [vmem:[%s486 + $0x70] sm:$0xff]
      %v1515 = vld [vmem:[%s486 + $0x78] sm:$0xff]
      %v1516 = vld [vmem:[%s486 + $0x80] sm:$0xff]
      %v1517 = vld [vmem:[%s486 + $0x88] sm:$0xff]
      %v1518 = vld [vmem:[%s486 + $0x90] sm:$0xff]
      %v1519 = vld [vmem:[%s486 + $0x98] sm:$0xff]
      %v1520 = vld [vmem:[%s486 + $0xa0] sm:$0xff]
      %v1521 = vld [vmem:[%s486 + $0xa8] sm:$0xff]
      %v1522 = vld [vmem:[%s486 + $0xb0] sm:$0xff]
      %v1523 = vld [vmem:[%s486 + $0xb8] sm:$0xff]
      %v1524 = vld [vmem:[%s486 + $0xc0] sm:$0xff]
      %v1525 = vld [vmem:[%s486 + $0xc8] sm:$0xff]
      %v1526 = vld [vmem:[%s486 + $0xd0] sm:$0xff]
      %v1527 = vld [vmem:[%s486 + $0xd8] sm:$0xff]
      %v1528 = vld [vmem:[%s486 + $0xe0] sm:$0xff]
      %v1529 = vld [vmem:[%s486 + $0xe8] sm:$0xff]
      %v1530 = vld [vmem:[%s486 + $0xf0] sm:$0xff]
      %v1531 = vld [vmem:[%s486 + $0xf8] sm:$0xff]
      %v1532 = vld [vmem:[%s490] sm:$0xf]
      %v1533 = vld [vmem:[%s490 + $0x4] sm:$0xf]
      %v1534 = vld [vmem:[%s490 + $0x8] sm:$0xf]
      %v1535 = vld [vmem:[%s490 + $0xc] sm:$0xf]
      %v1536 = vld [vmem:[%s490 + $0x10] sm:$0xf]
      %v1537 = vld [vmem:[%s490 + $0x14] sm:$0xf]
      %v1538 = vld [vmem:[%s490 + $0x18] sm:$0xf]
      %v1539 = vld [vmem:[%s490 + $0x1c] sm:$0xf]
      %v1540 = vld [vmem:[%s490 + $0x20] sm:$0xf]
      %v1541 = vld [vmem:[%s490 + $0x24] sm:$0xf]
      %v1542 = vld [vmem:[%s490 + $0x28] sm:$0xf]
      %v1543 = vld [vmem:[%s490 + $0x2c] sm:$0xf]
      %v1544 = vld [vmem:[%s490 + $0x30] sm:$0xf]
      %v1545 = vld [vmem:[%s490 + $0x34] sm:$0xf]
      %v1546 = vld [vmem:[%s490 + $0x38] sm:$0xf]
      %v1547 = vld [vmem:[%s490 + $0x3c] sm:$0xf]
      %v1548 = vld [vmem:[%s490 + $0x40] sm:$0xf]
      %v1549 = vld [vmem:[%s490 + $0x44] sm:$0xf]
      %v1550 = vld [vmem:[%s490 + $0x48] sm:$0xf]
      %v1551 = vld [vmem:[%s490 + $0x4c] sm:$0xf]
      %v1552 = vld [vmem:[%s490 + $0x50] sm:$0xf]
      %v1553 = vld [vmem:[%s490 + $0x54] sm:$0xf]
      %v1554 = vld [vmem:[%s490 + $0x58] sm:$0xf]
      %v1555 = vld [vmem:[%s490 + $0x5c] sm:$0xf]
      %v1556 = vld [vmem:[%s490 + $0x60] sm:$0xf]
      %v1557 = vld [vmem:[%s490 + $0x64] sm:$0xf]
      %v1558 = vld [vmem:[%s490 + $0x68] sm:$0xf]
      %v1591 = vunpack.c.l.b16 %v1500
      %v1592 = vunpack.c.h.b16 %v1500
      %v1593 = vunpack.c.l.b16 %v1501
      %v1594 = vunpack.c.h.b16 %v1501
      %v1595 = vunpack.c.l.b16 %v1502
      %v1596 = vunpack.c.h.b16 %v1502
      %v1597 = vunpack.c.l.b16 %v1503
      %v1598 = vunpack.c.h.b16 %v1503
      %v1599 = vunpack.c.l.b16 %v1504
      %v1600 = vunpack.c.h.b16 %v1504
      %v1601 = vunpack.c.l.b16 %v1505
      %v1602 = vunpack.c.h.b16 %v1505
      %v1603 = vunpack.c.l.b16 %v1506
      %v1604 = vunpack.c.h.b16 %v1506
      %v1605 = vunpack.c.l.b16 %v1507
      %v1606 = vunpack.c.h.b16 %v1507
      %v1607 = vunpack.c.l.b16 %v1508
      %v1608 = vunpack.c.h.b16 %v1508
      %v1609 = vunpack.c.l.b16 %v1509
      %v1610 = vunpack.c.h.b16 %v1509
      %v1611 = vunpack.c.l.b16 %v1510
      %v1612 = vunpack.c.h.b16 %v1510
      %v1613 = vunpack.c.l.b16 %v1511
      %v1614 = vunpack.c.h.b16 %v1511
      %v1615 = vunpack.c.l.b16 %v1512
      %v1616 = vunpack.c.h.b16 %v1512
      %v1617 = vunpack.c.l.b16 %v1513
      %v1618 = vunpack.c.h.b16 %v1513
      %v1619 = vunpack.c.l.b16 %v1514
      %v1620 = vunpack.c.h.b16 %v1514
      %v1621 = vunpack.c.l.b16 %v1515
      %v1622 = vunpack.c.h.b16 %v1515
      %v1623 = vunpack.c.l.b16 %v1516
      %v1624 = vunpack.c.h.b16 %v1516
      %v1625 = vunpack.c.l.b16 %v1517
      %v1626 = vunpack.c.h.b16 %v1517
      %v1627 = vunpack.c.l.b16 %v1518
      %v1628 = vunpack.c.h.b16 %v1518
      %v1629 = vunpack.c.l.b16 %v1519
      %v1630 = vunpack.c.h.b16 %v1519
      %v1631 = vunpack.c.l.b16 %v1520
      %v1632 = vunpack.c.h.b16 %v1520
      %v1633 = vunpack.c.l.b16 %v1521
      %v1634 = vunpack.c.h.b16 %v1521
      %v1635 = vunpack.c.l.b16 %v1522
      %v1636 = vunpack.c.h.b16 %v1522
      %v1637 = vunpack.c.l.b16 %v1523
      %v1638 = vunpack.c.h.b16 %v1523
      %v1639 = vunpack.c.l.b16 %v1524
      %v1640 = vunpack.c.h.b16 %v1524
      %v1641 = vunpack.c.l.b16 %v1525
      %v1642 = vunpack.c.h.b16 %v1525
      %v1643 = vunpack.c.l.b16 %v1526
      %v1644 = vunpack.c.h.b16 %v1526
      %v1645 = vunpack.c.l.b16 %v1527
      %v1646 = vunpack.c.h.b16 %v1527
      %v1647 = vunpack.c.l.b16 %v1528
      %v1648 = vunpack.c.h.b16 %v1528
      %v1649 = vunpack.c.l.b16 %v1529
      %v1650 = vunpack.c.h.b16 %v1529
      %v1651 = vunpack.c.l.b16 %v1530
      %v1652 = vunpack.c.h.b16 %v1530
      %v1653 = vunpack.c.l.b16 %v1531
      %v1654 = vunpack.c.h.b16 %v1531
      %v1655 = vpack.c.b16 %v1593, %v1591
      %v1656 = vpack.c.b16 %v1594, %v1592
      %v1657 = vpack.c.b16 %v1597, %v1595
      %v1658 = vpack.c.b16 %v1598, %v1596
      %v1659 = vpack.c.b16 %v1601, %v1599
      %v1660 = vpack.c.b16 %v1602, %v1600
      %v1661 = vpack.c.b16 %v1605, %v1603
      %v1662 = vpack.c.b16 %v1606, %v1604
      %v1663 = vpack.c.b16 %v1609, %v1607
      %v1664 = vpack.c.b16 %v1610, %v1608
      %v1665 = vpack.c.b16 %v1613, %v1611
      %v1666 = vpack.c.b16 %v1614, %v1612
      %v1667 = vpack.c.b16 %v1617, %v1615
      %v1668 = vpack.c.b16 %v1618, %v1616
      %v1669 = vpack.c.b16 %v1621, %v1619
      %v1670 = vpack.c.b16 %v1622, %v1620
      %v1671 = vpack.c.b16 %v1625, %v1623
      %v1672 = vpack.c.b16 %v1626, %v1624
      %v1673 = vpack.c.b16 %v1629, %v1627
      %v1674 = vpack.c.b16 %v1630, %v1628
      %v1675 = vpack.c.b16 %v1633, %v1631
      %v1676 = vpack.c.b16 %v1634, %v1632
      %v1677 = vpack.c.b16 %v1637, %v1635
      %v1678 = vpack.c.b16 %v1638, %v1636
      %v1679 = vpack.c.b16 %v1641, %v1639
      %v1680 = vpack.c.b16 %v1642, %v1640
      %v1681 = vpack.c.b16 %v1645, %v1643
      %v1682 = vpack.c.b16 %v1646, %v1644
      %v1683 = vpack.c.b16 %v1649, %v1647
      %v1684 = vpack.c.b16 %v1650, %v1648
      %v1685 = vpack.c.b16 %v1653, %v1651
      %v1686 = vpack.c.b16 %v1654, %v1652
      %v1730 = vunpack.c.l.b16 %v1532
      %v1731 = vunpack.c.l.b16 %v1533
      %v1732 = vunpack.c.l.b16 %v1534
      %v1733 = vunpack.c.l.b16 %v1535
      %v1734 = vunpack.c.l.b16 %v1536
      %v1735 = vunpack.c.l.b16 %v1537
      %v1736 = vunpack.c.l.b16 %v1538
      %v1737 = vunpack.c.l.b16 %v1539
      %v1738 = vunpack.c.l.b16 %v1540
      %v1739 = vunpack.c.l.b16 %v1541
      %v1740 = vunpack.c.l.b16 %v1542
      %v1741 = vunpack.c.l.b16 %v1543
      %v1742 = vunpack.c.l.b16 %v1544
      %v1743 = vunpack.c.l.b16 %v1545
      %v1744 = vunpack.c.l.b16 %v1546
      %v1745 = vunpack.c.l.b16 %v1547
      %v1746 = vunpack.c.l.b16 %v1548
      %v1747 = vunpack.c.l.b16 %v1549
      %v1748 = vunpack.c.l.b16 %v1550
      %v1749 = vunpack.c.l.b16 %v1551
      %v1750 = vunpack.c.l.b16 %v1552
      %v1751 = vunpack.c.l.b16 %v1553
      %v1752 = vunpack.c.l.b16 %v1554
      %v1753 = vunpack.c.l.b16 %v1555
      %v1754 = vunpack.c.l.b16 %v1556
      %v1755 = vunpack.c.l.b16 %v1557
      %v1756 = vunpack.c.l.b16 %v1558
      %v1757 = vpack.c.b16 %v1731, %v1730
      %v1758 = vpack.c.b16 %v1733, %v1732
      %v1759 = vpack.c.b16 %v1735, %v1734
      %v1760 = vpack.c.b16 %v1737, %v1736
      %v1761 = vpack.c.b16 %v1739, %v1738
      %v1762 = vpack.c.b16 %v1741, %v1740
      %v1763 = vpack.c.b16 %v1743, %v1742
      %v1764 = vpack.c.b16 %v1745, %v1744
      %v1765 = vpack.c.b16 %v1747, %v1746
      %v1766 = vpack.c.b16 %v1749, %v1748
      %v1767 = vpack.c.b16 %v1751, %v1750
      %v1768 = vpack.c.b16 %v1753, %v1752
      %v1769 = vpack.c.b16 %v1755, %v1754
      %v1770 = vpack.c.b16 %v1756, %v1756
      %v1785 = vsel %vm849, %v1656, 0
      %v1788 = vsel %vm849, %v1658, 0
      %v1791 = vsel %vm849, %v1660, 0
      %v1794 = vsel %vm849, %v1662, 0
      %v1797 = vsel %vm849, %v1664, 0
      %v1800 = vsel %vm849, %v1666, 0
      %v1803 = vsel %vm849, %v1668, 0
      %v1806 = vsel %vm849, %v1670, 0
      %v1809 = vsel %vm849, %v1672, 0
      %v1812 = vsel %vm849, %v1674, 0
      %v1815 = vsel %vm849, %v1676, 0
      %v1818 = vsel %vm849, %v1678, 0
      %v1821 = vsel %vm849, %v1680, 0
      %v1824 = vsel %vm849, %v1682, 0
      %v1827 = vsel %vm849, %v1684, 0
      %v1830 = vsel %vm849, %v1686, 0
      %v1833 = vsel %vm898, %v1770, 0
      %1835 = vmatprep.subr.bf16.mxu0 0
      %1836 = vmatpush1.bf16.msra.mxu0 %v1757
      %1837 = vmatprep.subr.bf16.mxu0 0
      %1838 = vmatpush1.bf16.msra.mxu0 %v1758
      %1839 = vmatprep.subr.bf16.mxu0 0
      %1840 = vmatpush1.bf16.msra.mxu0 %v1759
      %1841 = vmatprep.subr.bf16.mxu0 0
      %1842 = vmatpush1.bf16.msra.mxu0 %v1760
      %1843 = vmatprep.subr.bf16.mxu0 0
      %1844 = vmatpush1.bf16.msra.mxu0 %v1761
      %1845 = vmatprep.subr.bf16.mxu0 0
      %1846 = vmatpush1.bf16.msra.mxu0 %v1762
      %1847 = vmatprep.subr.bf16.mxu0 0
      %1848 = vmatpush1.bf16.msra.mxu0 %v1763
      %1849 = vmatprep.subr.bf16.mxu0 0
      %1850 = vmatpush1.bf16.msra.mxu0 %v1764
      %1851 = vmatprep.subr.bf16.mxu0 0
      %1852 = vmatpush1.bf16.msra.mxu0 %v1765
      %1853 = vmatprep.subr.bf16.mxu0 0
      %1854 = vmatpush1.bf16.msra.mxu0 %v1766
      %1855 = vmatprep.subr.bf16.mxu0 0
      %1856 = vmatpush1.bf16.msra.mxu0 %v1767
      %1857 = vmatprep.subr.bf16.mxu0 0
      %1858 = vmatpush1.bf16.msra.mxu0 %v1768
      %1859 = vmatprep.subr.bf16.mxu0 0
      %1860 = vmatpush1.bf16.msra.mxu0 %v1769
      %1861 = vmatprep.subr.bf16.mxu0 0
      %1862 = vmatpush1.bf16.msra.mxu0 %v1833
      %1863 = vmatprep.subr.bf16.mxu0 0
      %1864 = vmatpush1.bf16.msra.mxu0 0
      %1865 = vmatprep.subr.bf16.mxu0 0
      %1866 = vmatpush1.bf16.msra.mxu0 0
      %1867 = vmatprep.mubr.bf16.mxu0 %v1785
      %1868 = vmatmul.mubr.bf16.gmra.mrb[0].mxu0 %v1655
      %v1869 = vpop.f32.mrb[0].mxu0
      %v1870 = vadd.f32 0.0, %v1869
      %v1871 = vpop.f32.mrb[0].mxu0
      %v1872 = vpop.f32.mrb[0].mxu0
      %v1873 = vadd.f32 0.0, %v1872
      %v1874 = vpop.f32.mrb[0].mxu0
      %1875 = vmatprep.mubr.bf16.mxu0 %v1788
      %1876 = vmatmul.mubr.bf16.gmra.mrb[0].mxu0 %v1657
      %v1877 = vpop.f32.mrb[0].mxu0
      %v1878 = vadd.f32 0.0, %v1877
      %v1879 = vpop.f32.mrb[0].mxu0
      %v1880 = vpop.f32.mrb[0].mxu0
      %v1881 = vadd.f32 0.0, %v1880
      %v1882 = vpop.f32.mrb[0].mxu0
      %1883 = vmatprep.mubr.bf16.mxu0 %v1791
      %1884 = vmatmul.mubr.bf16.gmra.mrb[0].mxu0 %v1659
      %v1885 = vpop.f32.mrb[0].mxu0
      %v1886 = vadd.f32 0.0, %v1885
      %v1887 = vpop.f32.mrb[0].mxu0
      %v1888 = vpop.f32.mrb[0].mxu0
      %v1889 = vadd.f32 0.0, %v1888
      %v1890 = vpop.f32.mrb[0].mxu0
      %1891 = vmatprep.mubr.bf16.mxu0 %v1794
      %1892 = vmatmul.mubr.bf16.gmra.mrb[0].mxu0 %v1661
      %v1893 = vpop.f32.mrb[0].mxu0
      %v1894 = vadd.f32 0.0, %v1893
      %v1895 = vpop.f32.mrb[0].mxu0
      %v1896 = vpop.f32.mrb[0].mxu0
      %v1897 = vadd.f32 0.0, %v1896
      %v1898 = vpop.f32.mrb[0].mxu0
      %1899 = vmatprep.mubr.bf16.mxu0 %v1797
      %1900 = vmatmul.mubr.bf16.gmra.mrb[0].mxu0 %v1663
      %v1901 = vpop.f32.mrb[0].mxu0
      %v1902 = vadd.f32 0.0, %v1901
      %v1903 = vpop.f32.mrb[0].mxu0
      %v1904 = vpop.f32.mrb[0].mxu0
      %v1905 = vadd.f32 0.0, %v1904
      %v1906 = vpop.f32.mrb[0].mxu0
      %1907 = vmatprep.mubr.bf16.mxu0 %v1800
      %1908 = vmatmul.mubr.bf16.gmra.mrb[0].mxu0 %v1665
      %v1909 = vpop.f32.mrb[0].mxu0
      %v1910 = vadd.f32 0.0, %v1909
      %v1911 = vpop.f32.mrb[0].mxu0
      %v1912 = vpop.f32.mrb[0].mxu0
      %v1913 = vadd.f32 0.0, %v1912
      %v1914 = vpop.f32.mrb[0].mxu0
      %1915 = vmatprep.mubr.bf16.mxu0 %v1803
      %1916 = vmatmul.mubr.bf16.gmra.mrb[0].mxu0 %v1667
      %v1917 = vpop.f32.mrb[0].mxu0
      %v1918 = vadd.f32 0.0, %v1917
      %v1919 = vpop.f32.mrb[0].mxu0
      %v1920 = vpop.f32.mrb[0].mxu0
      %v1921 = vadd.f32 0.0, %v1920
      %v1922 = vpop.f32.mrb[0].mxu0
      %1923 = vmatprep.mubr.bf16.mxu0 %v1806
      %1924 = vmatmul.mubr.bf16.gmra.mrb[0].mxu0 %v1669
      %v1925 = vpop.f32.mrb[0].mxu0
      %v1926 = vadd.f32 0.0, %v1925
      %v1927 = vpop.f32.mrb[0].mxu0
      %v1928 = vpop.f32.mrb[0].mxu0
      %v1929 = vadd.f32 0.0, %v1928
      %v1930 = vpop.f32.mrb[0].mxu0
      %1931 = vmatprep.mubr.bf16.mxu0 %v1809
      %1932 = vmatmul.mubr.bf16.gmra.mrb[0].mxu0 %v1671
      %v1933 = vpop.f32.mrb[0].mxu0
      %v1934 = vadd.f32 0.0, %v1933
      %v1935 = vpop.f32.mrb[0].mxu0
      %v1936 = vpop.f32.mrb[0].mxu0
      %v1937 = vadd.f32 0.0, %v1936
      %v1938 = vpop.f32.mrb[0].mxu0
      %1939 = vmatprep.mubr.bf16.mxu0 %v1812
      %1940 = vmatmul.mubr.bf16.gmra.mrb[0].mxu0 %v1673
      %v1941 = vpop.f32.mrb[0].mxu0
      %v1942 = vadd.f32 0.0, %v1941
      %v1943 = vpop.f32.mrb[0].mxu0
      %v1944 = vpop.f32.mrb[0].mxu0
      %v1945 = vadd.f32 0.0, %v1944
      %v1946 = vpop.f32.mrb[0].mxu0
      %1947 = vmatprep.mubr.bf16.mxu0 %v1815
      %1948 = vmatmul.mubr.bf16.gmra.mrb[0].mxu0 %v1675
      %v1949 = vpop.f32.mrb[0].mxu0
      %v1950 = vadd.f32 0.0, %v1949
      %v1951 = vpop.f32.mrb[0].mxu0
      %v1952 = vpop.f32.mrb[0].mxu0
      %v1953 = vadd.f32 0.0, %v1952
      %v1954 = vpop.f32.mrb[0].mxu0
      %1955 = vmatprep.mubr.bf16.mxu0 %v1818
      %1956 = vmatmul.mubr.bf16.gmra.mrb[0].mxu0 %v1677
      %v1957 = vpop.f32.mrb[0].mxu0
      %v1958 = vadd.f32 0.0, %v1957
      %v1959 = vpop.f32.mrb[0].mxu0
      %v1960 = vpop.f32.mrb[0].mxu0
      %v1961 = vadd.f32 0.0, %v1960
      %v1962 = vpop.f32.mrb[0].mxu0
      %1963 = vmatprep.mubr.bf16.mxu0 %v1821
      %1964 = vmatmul.mubr.bf16.gmra.mrb[0].mxu0 %v1679
      %v1965 = vpop.f32.mrb[0].mxu0
      %v1966 = vadd.f32 0.0, %v1965
      %v1967 = vpop.f32.mrb[0].mxu0
      %v1968 = vpop.f32.mrb[0].mxu0
      %v1969 = vadd.f32 0.0, %v1968
      %v1970 = vpop.f32.mrb[0].mxu0
      %1971 = vmatprep.mubr.bf16.mxu0 %v1824
      %1972 = vmatmul.mubr.bf16.gmra.mrb[0].mxu0 %v1681
      %v1973 = vpop.f32.mrb[0].mxu0
      %v1974 = vadd.f32 0.0, %v1973
      %v1975 = vpop.f32.mrb[0].mxu0
      %v1976 = vpop.f32.mrb[0].mxu0
      %v1977 = vadd.f32 0.0, %v1976
      %v1978 = vpop.f32.mrb[0].mxu0
      %1979 = vmatprep.mubr.bf16.mxu0 %v1827
      %1980 = vmatmul.mubr.bf16.gmra.mrb[0].mxu0 %v1683
      %v1981 = vpop.f32.mrb[0].mxu0
      %v1982 = vadd.f32 0.0, %v1981
      %v1983 = vpop.f32.mrb[0].mxu0
      %v1984 = vpop.f32.mrb[0].mxu0
      %v1985 = vadd.f32 0.0, %v1984
      %v1986 = vpop.f32.mrb[0].mxu0
      %1987 = vmatprep.mubr.bf16.mxu0 %v1830
      %1988 = vmatmul.mubr.bf16.gmra.mrb[0].mxu0 %v1685
      %v1989 = vpop.f32.mrb[0].mxu0
      %v1990 = vadd.f32 0.0, %v1989
      %v1991 = vpop.f32.mrb[0].mxu0
      %v1992 = vpop.f32.mrb[0].mxu0
      %v1993 = vadd.f32 0.0, %v1992
      %v1994 = vpop.f32.mrb[0].mxu0
      %1995 = vdwg.mxu0
      %v1996 = vadd.f32 %v1374, %v1870
      %v1997 = vadd.f32 %v1377, %v1873
      %v1998 = vadd.f32 %v1382, %v1878
      %v1999 = vadd.f32 %v1385, %v1881
      %v2000 = vadd.f32 %v1390, %v1886
      %v2001 = vadd.f32 %v1393, %v1889
      %v2002 = vadd.f32 %v1398, %v1894
      %v2003 = vadd.f32 %v1401, %v1897
      %v2004 = vadd.f32 %v1406, %v1902
      %v2005 = vadd.f32 %v1409, %v1905
      %v2006 = vadd.f32 %v1414, %v1910
      %v2007 = vadd.f32 %v1417, %v1913
      %v2008 = vadd.f32 %v1422, %v1918
      %v2009 = vadd.f32 %v1425, %v1921
      %v2010 = vadd.f32 %v1430, %v1926
      %v2011 = vadd.f32 %v1433, %v1929
      %v2012 = vadd.f32 %v1438, %v1934
      %v2013 = vadd.f32 %v1441, %v1937
      %v2014 = vadd.f32 %v1446, %v1942
      %v2015 = vadd.f32 %v1449, %v1945
      %v2016 = vadd.f32 %v1454, %v1950
      %v2017 = vadd.f32 %v1457, %v1953
      %v2018 = vadd.f32 %v1462, %v1958
      %v2019 = vadd.f32 %v1465, %v1961
      %v2020 = vadd.f32 %v1470, %v1966
      %v2021 = vadd.f32 %v1473, %v1969
      %v2022 = vadd.f32 %v1478, %v1974
      %v2023 = vadd.f32 %v1481, %v1977
      %v2024 = vadd.f32 %v1486, %v1982
      %v2025 = vadd.f32 %v1489, %v1985
      %v2026 = vadd.f32 %v1494, %v1990
      %v2027 = vadd.f32 %v1497, %v1993
      %v2028 = vld [vmem:[%s6] sm:$0x1]
      %v2030 = vlaneseq
      %v2031 = vshrl.u32 %v2030, 7
      %v2032 = vsub.s32 0, %v2031
      %v2033 = vrot.slane %v2028, %v2032
      %v2035 = vmul.f32 %v1996, %v2033
      %v2036 = vmul.f32 %v1997, %v2033
      %v2037 = vmul.f32 %v1998, %v2033
      %v2038 = vmul.f32 %v1999, %v2033
      %v2039 = vmul.f32 %v2000, %v2033
      %v2040 = vmul.f32 %v2001, %v2033
      %v2041 = vmul.f32 %v2002, %v2033
      %v2042 = vmul.f32 %v2003, %v2033
      %v2043 = vmul.f32 %v2004, %v2033
      %v2044 = vmul.f32 %v2005, %v2033
      %v2045 = vmul.f32 %v2006, %v2033
      %v2046 = vmul.f32 %v2007, %v2033
      %v2047 = vmul.f32 %v2008, %v2033
      %v2048 = vmul.f32 %v2009, %v2033
      %v2049 = vmul.f32 %v2010, %v2033
      %v2050 = vmul.f32 %v2011, %v2033
      %v2051 = vmul.f32 %v2012, %v2033
      %v2052 = vmul.f32 %v2013, %v2033
      %v2053 = vmul.f32 %v2014, %v2033
      %v2054 = vmul.f32 %v2015, %v2033
      %v2055 = vmul.f32 %v2016, %v2033
      %v2056 = vmul.f32 %v2017, %v2033
      %v2057 = vmul.f32 %v2018, %v2033
      %v2058 = vmul.f32 %v2019, %v2033
      %v2059 = vmul.f32 %v2020, %v2033
      %v2060 = vmul.f32 %v2021, %v2033
      %v2061 = vmul.f32 %v2022, %v2033
      %v2062 = vmul.f32 %v2023, %v2033
      %v2063 = vmul.f32 %v2024, %v2033
      %v2064 = vmul.f32 %v2025, %v2033
      %v2065 = vmul.f32 %v2026, %v2033
      %v2066 = vmul.f32 %v2027, %v2033
      %v2067 = vld [vmem:[%s7] sm:$0x1]
      %v2069 = vlaneseq
      %v2070 = vshrl.u32 %v2069, 7
      %v2071 = vsub.s32 0, %v2070
      %v2072 = vrot.slane %v2067, %v2071
      %v2074 = vadd.f32 %v2035, %v2072
      %v2075 = vadd.f32 %v2036, %v2072
      %v2076 = vadd.f32 %v2037, %v2072
      %v2077 = vadd.f32 %v2038, %v2072
      %v2078 = vadd.f32 %v2039, %v2072
      %v2079 = vadd.f32 %v2040, %v2072
      %v2080 = vadd.f32 %v2041, %v2072
      %v2081 = vadd.f32 %v2042, %v2072
      %v2082 = vadd.f32 %v2043, %v2072
      %v2083 = vadd.f32 %v2044, %v2072
      %v2084 = vadd.f32 %v2045, %v2072
      %v2085 = vadd.f32 %v2046, %v2072
      %v2086 = vadd.f32 %v2047, %v2072
      %v2087 = vadd.f32 %v2048, %v2072
      %v2088 = vadd.f32 %v2049, %v2072
      %v2089 = vadd.f32 %v2050, %v2072
      %v2090 = vadd.f32 %v2051, %v2072
      %v2091 = vadd.f32 %v2052, %v2072
      %v2092 = vadd.f32 %v2053, %v2072
      %v2093 = vadd.f32 %v2054, %v2072
      %v2094 = vadd.f32 %v2055, %v2072
      %v2095 = vadd.f32 %v2056, %v2072
      %v2096 = vadd.f32 %v2057, %v2072
      %v2097 = vadd.f32 %v2058, %v2072
      %v2098 = vadd.f32 %v2059, %v2072
      %v2099 = vadd.f32 %v2060, %v2072
      %v2100 = vadd.f32 %v2061, %v2072
      %v2101 = vadd.f32 %v2062, %v2072
      %v2102 = vadd.f32 %v2063, %v2072
      %v2103 = vadd.f32 %v2064, %v2072
      %v2104 = vadd.f32 %v2065, %v2072
      %v2105 = vadd.f32 %v2066, %v2072
      %vm2106 = vcmp.gt.f32.partialorder %v2074, 0.0
      %vm2107 = vcmp.gt.f32.partialorder %v2075, 0.0
      %vm2108 = vcmp.gt.f32.partialorder %v2076, 0.0
      %vm2109 = vcmp.gt.f32.partialorder %v2077, 0.0
      %vm2110 = vcmp.gt.f32.partialorder %v2078, 0.0
      %vm2111 = vcmp.gt.f32.partialorder %v2079, 0.0
      %vm2112 = vcmp.gt.f32.partialorder %v2080, 0.0
      %vm2113 = vcmp.gt.f32.partialorder %v2081, 0.0
      %vm2114 = vcmp.gt.f32.partialorder %v2082, 0.0
      %vm2115 = vcmp.gt.f32.partialorder %v2083, 0.0
      %vm2116 = vcmp.gt.f32.partialorder %v2084, 0.0
      %vm2117 = vcmp.gt.f32.partialorder %v2085, 0.0
      %vm2118 = vcmp.gt.f32.partialorder %v2086, 0.0
      %vm2119 = vcmp.gt.f32.partialorder %v2087, 0.0
      %vm2120 = vcmp.gt.f32.partialorder %v2088, 0.0
      %vm2121 = vcmp.gt.f32.partialorder %v2089, 0.0
      %vm2122 = vcmp.gt.f32.partialorder %v2090, 0.0
      %vm2123 = vcmp.gt.f32.partialorder %v2091, 0.0
      %vm2124 = vcmp.gt.f32.partialorder %v2092, 0.0
      %vm2125 = vcmp.gt.f32.partialorder %v2093, 0.0
      %vm2126 = vcmp.gt.f32.partialorder %v2094, 0.0
      %vm2127 = vcmp.gt.f32.partialorder %v2095, 0.0
      %vm2128 = vcmp.gt.f32.partialorder %v2096, 0.0
      %vm2129 = vcmp.gt.f32.partialorder %v2097, 0.0
      %vm2130 = vcmp.gt.f32.partialorder %v2098, 0.0
      %vm2131 = vcmp.gt.f32.partialorder %v2099, 0.0
      %vm2132 = vcmp.gt.f32.partialorder %v2100, 0.0
      %vm2133 = vcmp.gt.f32.partialorder %v2101, 0.0
      %vm2134 = vcmp.gt.f32.partialorder %v2102, 0.0
      %vm2135 = vcmp.gt.f32.partialorder %v2103, 0.0
      %vm2136 = vcmp.gt.f32.partialorder %v2104, 0.0
      %vm2137 = vcmp.gt.f32.partialorder %v2105, 0.0
      %v2138 = vmul.f32 %v2074, 0.01
      %v2139 = vmul.f32 %v2075, 0.01
      %v2140 = vmul.f32 %v2076, 0.01
      %v2141 = vmul.f32 %v2077, 0.01
      %v2142 = vmul.f32 %v2078, 0.01
      %v2143 = vmul.f32 %v2079, 0.01
      %v2144 = vmul.f32 %v2080, 0.01
      %v2145 = vmul.f32 %v2081, 0.01
      %v2146 = vmul.f32 %v2082, 0.01
      %v2147 = vmul.f32 %v2083, 0.01
      %v2148 = vmul.f32 %v2084, 0.01
      %v2149 = vmul.f32 %v2085, 0.01
      %v2150 = vmul.f32 %v2086, 0.01
      %v2151 = vmul.f32 %v2087, 0.01
      %v2152 = vmul.f32 %v2088, 0.01
      %v2153 = vmul.f32 %v2089, 0.01
      %v2154 = vmul.f32 %v2090, 0.01
      %v2155 = vmul.f32 %v2091, 0.01
      %v2156 = vmul.f32 %v2092, 0.01
      %v2157 = vmul.f32 %v2093, 0.01
      %v2158 = vmul.f32 %v2094, 0.01
      %v2159 = vmul.f32 %v2095, 0.01
      %v2160 = vmul.f32 %v2096, 0.01
      %v2161 = vmul.f32 %v2097, 0.01
      %v2162 = vmul.f32 %v2098, 0.01
      %v2163 = vmul.f32 %v2099, 0.01
      %v2164 = vmul.f32 %v2100, 0.01
      %v2165 = vmul.f32 %v2101, 0.01
      %v2166 = vmul.f32 %v2102, 0.01
      %v2167 = vmul.f32 %v2103, 0.01
      %v2168 = vmul.f32 %v2104, 0.01
      %v2169 = vmul.f32 %v2105, 0.01
      %v2170 = vsel %vm2106, %v2074, %v2138
      %v2171 = vsel %vm2107, %v2075, %v2139
      %v2172 = vsel %vm2108, %v2076, %v2140
      %v2173 = vsel %vm2109, %v2077, %v2141
      %v2174 = vsel %vm2110, %v2078, %v2142
      %v2175 = vsel %vm2111, %v2079, %v2143
      %v2176 = vsel %vm2112, %v2080, %v2144
      %v2177 = vsel %vm2113, %v2081, %v2145
      %v2178 = vsel %vm2114, %v2082, %v2146
      %v2179 = vsel %vm2115, %v2083, %v2147
      %v2180 = vsel %vm2116, %v2084, %v2148
      %v2181 = vsel %vm2117, %v2085, %v2149
      %v2182 = vsel %vm2118, %v2086, %v2150
      %v2183 = vsel %vm2119, %v2087, %v2151
      %v2184 = vsel %vm2120, %v2088, %v2152
      %v2185 = vsel %vm2121, %v2089, %v2153
      %v2186 = vsel %vm2122, %v2090, %v2154
      %v2187 = vsel %vm2123, %v2091, %v2155
      %v2188 = vsel %vm2124, %v2092, %v2156
      %v2189 = vsel %vm2125, %v2093, %v2157
      %v2190 = vsel %vm2126, %v2094, %v2158
      %v2191 = vsel %vm2127, %v2095, %v2159
      %v2192 = vsel %vm2128, %v2096, %v2160
      %v2193 = vsel %vm2129, %v2097, %v2161
      %v2194 = vsel %vm2130, %v2098, %v2162
      %v2195 = vsel %vm2131, %v2099, %v2163
      %v2196 = vsel %vm2132, %v2100, %v2164
      %v2197 = vsel %vm2133, %v2101, %v2165
      %v2198 = vsel %vm2134, %v2102, %v2166
      %v2199 = vsel %vm2135, %v2103, %v2167
      %v2200 = vsel %vm2136, %v2104, %v2168
      %v2201 = vsel %vm2137, %v2105, %v2169
      %v2202 = vpack.c.bf16 %v2171, %v2170
      %v2203 = vpack.c.bf16 %v2173, %v2172
      %v2204 = vpack.c.bf16 %v2175, %v2174
      %v2205 = vpack.c.bf16 %v2177, %v2176
      %v2206 = vpack.c.bf16 %v2179, %v2178
      %v2207 = vpack.c.bf16 %v2181, %v2180
      %v2208 = vpack.c.bf16 %v2183, %v2182
      %v2209 = vpack.c.bf16 %v2185, %v2184
      %v2210 = vpack.c.bf16 %v2187, %v2186
      %v2211 = vpack.c.bf16 %v2189, %v2188
      %v2212 = vpack.c.bf16 %v2191, %v2190
      %v2213 = vpack.c.bf16 %v2193, %v2192
      %v2214 = vpack.c.bf16 %v2195, %v2194
      %v2215 = vpack.c.bf16 %v2197, %v2196
      %v2216 = vpack.c.bf16 %v2199, %v2198
      %v2217 = vpack.c.bf16 %v2201, %v2200
      %v2234 = vunpack.c.l.b16 %v2202
      %v2235 = vunpack.c.h.b16 %v2202
      %v2236 = vunpack.c.l.b16 %v2203
      %v2237 = vunpack.c.h.b16 %v2203
      %v2238 = vunpack.c.l.b16 %v2204
      %v2239 = vunpack.c.h.b16 %v2204
      %v2240 = vunpack.c.l.b16 %v2205
      %v2241 = vunpack.c.h.b16 %v2205
      %v2242 = vunpack.c.l.b16 %v2206
      %v2243 = vunpack.c.h.b16 %v2206
      %v2244 = vunpack.c.l.b16 %v2207
      %v2245 = vunpack.c.h.b16 %v2207
      %v2246 = vunpack.c.l.b16 %v2208
      %v2247 = vunpack.c.h.b16 %v2208
      %v2248 = vunpack.c.l.b16 %v2209
      %v2249 = vunpack.c.h.b16 %v2209
      %v2250 = vunpack.c.l.b16 %v2210
      %v2251 = vunpack.c.h.b16 %v2210
      %v2252 = vunpack.c.l.b16 %v2211
      %v2253 = vunpack.c.h.b16 %v2211
      %v2254 = vunpack.c.l.b16 %v2212
      %v2255 = vunpack.c.h.b16 %v2212
      %v2256 = vunpack.c.l.b16 %v2213
      %v2257 = vunpack.c.h.b16 %v2213
      %v2258 = vunpack.c.l.b16 %v2214
      %v2259 = vunpack.c.h.b16 %v2214
      %v2260 = vunpack.c.l.b16 %v2215
      %v2261 = vunpack.c.h.b16 %v2215
      %v2262 = vunpack.c.l.b16 %v2216
      %v2263 = vunpack.c.h.b16 %v2216
      %v2264 = vunpack.c.l.b16 %v2217
      %v2265 = vunpack.c.h.b16 %v2217
      %v2266 = vpack.c.b16 %v2234, %v2234
      %v2267 = vpack.c.b16 %v2235, %v2235
      %v2268 = vpack.c.b16 %v2236, %v2236
      %v2269 = vpack.c.b16 %v2237, %v2237
      %v2270 = vpack.c.b16 %v2238, %v2238
      %v2271 = vpack.c.b16 %v2239, %v2239
      %v2272 = vpack.c.b16 %v2240, %v2240
      %v2273 = vpack.c.b16 %v2241, %v2241
      %v2274 = vpack.c.b16 %v2242, %v2242
      %v2275 = vpack.c.b16 %v2243, %v2243
      %v2276 = vpack.c.b16 %v2244, %v2244
      %v2277 = vpack.c.b16 %v2245, %v2245
      %v2278 = vpack.c.b16 %v2246, %v2246
      %v2279 = vpack.c.b16 %v2247, %v2247
      %v2280 = vpack.c.b16 %v2248, %v2248
      %v2281 = vpack.c.b16 %v2249, %v2249
      %v2282 = vpack.c.b16 %v2250, %v2250
      %v2283 = vpack.c.b16 %v2251, %v2251
      %v2284 = vpack.c.b16 %v2252, %v2252
      %v2285 = vpack.c.b16 %v2253, %v2253
      %v2286 = vpack.c.b16 %v2254, %v2254
      %v2287 = vpack.c.b16 %v2255, %v2255
      %v2288 = vpack.c.b16 %v2256, %v2256
      %v2289 = vpack.c.b16 %v2257, %v2257
      %v2290 = vpack.c.b16 %v2258, %v2258
      %v2291 = vpack.c.b16 %v2259, %v2259
      %v2292 = vpack.c.b16 %v2260, %v2260
      %v2293 = vpack.c.b16 %v2261, %v2261
      %v2294 = vpack.c.b16 %v2262, %v2262
      %v2295 = vpack.c.b16 %v2263, %v2263
      %v2296 = vpack.c.b16 %v2264, %v2264
      %v2297 = vpack.c.b16 %v2265, %v2265
      %vm2330 = vcmask 125952
      %2331 = vst.msk [vmem:[%s503] sm:$0xf] %vm2330, %v2266
      %2332 = vst.msk [vmem:[%s503 + $0x4] sm:$0xf] %vm2330, %v2267
      %2333 = vst.msk [vmem:[%s503 + $0x8] sm:$0xf] %vm2330, %v2268
      %2334 = vst.msk [vmem:[%s503 + $0xc] sm:$0xf] %vm2330, %v2269
      %2335 = vst.msk [vmem:[%s503 + $0x10] sm:$0xf] %vm2330, %v2270
      %2336 = vst.msk [vmem:[%s503 + $0x14] sm:$0xf] %vm2330, %v2271
      %2337 = vst.msk [vmem:[%s503 + $0x18] sm:$0xf] %vm2330, %v2272
      %2338 = vst.msk [vmem:[%s503 + $0x1c] sm:$0xf] %vm2330, %v2273
      %2339 = vst.msk [vmem:[%s503 + $0x20] sm:$0xf] %vm2330, %v2274
      %2340 = vst.msk [vmem:[%s503 + $0x24] sm:$0xf] %vm2330, %v2275
      %2341 = vst.msk [vmem:[%s503 + $0x28] sm:$0xf] %vm2330, %v2276
      %2342 = vst.msk [vmem:[%s503 + $0x2c] sm:$0xf] %vm2330, %v2277
      %2343 = vst.msk [vmem:[%s503 + $0x30] sm:$0xf] %vm2330, %v2278
      %2344 = vst.msk [vmem:[%s503 + $0x34] sm:$0xf] %vm2330, %v2279
      %2345 = vst.msk [vmem:[%s503 + $0x38] sm:$0xf] %vm2330, %v2280
      %2346 = vst.msk [vmem:[%s503 + $0x3c] sm:$0xf] %vm2330, %v2281
      %2347 = vst.msk [vmem:[%s503 + $0x40] sm:$0xf] %vm2330, %v2282
      %2348 = vst.msk [vmem:[%s503 + $0x44] sm:$0xf] %vm2330, %v2283
      %2349 = vst.msk [vmem:[%s503 + $0x48] sm:$0xf] %vm2330, %v2284
      %2350 = vst.msk [vmem:[%s503 + $0x4c] sm:$0xf] %vm2330, %v2285
      %2351 = vst.msk [vmem:[%s503 + $0x50] sm:$0xf] %vm2330, %v2286
      %2352 = vst.msk [vmem:[%s503 + $0x54] sm:$0xf] %vm2330, %v2287
      %2353 = vst.msk [vmem:[%s503 + $0x58] sm:$0xf] %vm2330, %v2288
      %2354 = vst.msk [vmem:[%s503 + $0x5c] sm:$0xf] %vm2330, %v2289
      %2355 = vst.msk [vmem:[%s503 + $0x60] sm:$0xf] %vm2330, %v2290
      %2356 = vst.msk [vmem:[%s503 + $0x64] sm:$0xf] %vm2330, %v2291
      %2357 = vst.msk [vmem:[%s503 + $0x68] sm:$0xf] %vm2330, %v2292
      %2358 = vst.msk [vmem:[%s503 + $0x6c] sm:$0xf] %vm2330, %v2293
      %2359 = vst.msk [vmem:[%s503 + $0x70] sm:$0xf] %vm2330, %v2294
      %2360 = vst.msk [vmem:[%s503 + $0x74] sm:$0xf] %vm2330, %v2295
      %2361 = vst.msk [vmem:[%s503 + $0x78] sm:$0xf] %vm2330, %v2296
      %2362 = vst.msk [vmem:[%s503 + $0x7c] sm:$0xf] %vm2330, %v2297
      %s2363 = smul.u32 32, %s26
      %p2364 = scmp.lt.s32.totalorder %s24, 1
      %s2365 = scalar_select %p2364, %s24, 1
      %p2366 = scmp.lt.s32.totalorder %s25, 7
      %s2367 = scalar_select %p2366, %s25, 7
      %p2368 = scmp.lt.s32.totalorder %s2363, 31
      %s2369 = scalar_select %p2368, %s2363, 31
      %s2370 = smul.addr %s2367, 32
      %s2371 = sadd.s32 %s2369, %s2370
      %s2372 = smul.addr %s2365, 256
      %s2373 = sadd.s32 %s2371, %s2372
      %s2374 = smul.addr %s2373, 4
      %s2375 = scalar_lea.vmem %s8, %s2374
      // Predicated region
      $region53: #{decoder_block_forward.2} parent=51 // pred_check
        %p2376 = pneg %p259
      $region54: #{decoder_block_forward.2} parent=51 // pred_check_branch
        %2378 = sbr.rel (%p2376) target = $region56
      $region55: #{decoder_block_forward.2} parent=51 // pred_region
        %s2379 = smul.u32 32, %s26
      $region56: #{decoder_block_forward.2} parent=51 // pred_fallthru
        _
    $region52: #{decoder_block_forward.2} parent=5 // pred_fallthru
      _
    %p2380 = scmp.le.s32.totalorder 2, %s14
    // Predicated region
    $region57: #{decoder_block_forward.2} parent=5 // pred_check
      %p2381 = pneg %p2380
    $region58: #{decoder_block_forward.2} parent=5 // pred_check_branch
      %2383 = sbr.rel (%p2381) target = $region60
    $region59: #{decoder_block_forward.2} parent=5 // pred_region
      %s2384 = ssub.s32 %s14, 2
      // Predicated region
      $region61: #{decoder_block_forward.2} parent=59 // pred_check
        %p2385 = pneg %p265
      $region62: #{decoder_block_forward.2} parent=59 // pred_check_branch
        %2387 = sbr.rel (%p2385) target = $region64
      $region63: #{decoder_block_forward.2} parent=59 // pred_region
        %s2388 = smul.u32 32, %s29
        %p2389 = scmp.lt.s32.totalorder %s27, 1
        %s2390 = scalar_select %p2389, %s27, 1
        %p2391 = scmp.lt.s32.totalorder %s28, 7
        %s2392 = scalar_select %p2391, %s28, 7
        %p2393 = scmp.lt.s32.totalorder %s2388, 31
        %s2394 = scalar_select %p2393, %s2388, 31
        %s2395 = smul.addr %s2392, 32
        %s2396 = sadd.s32 %s2394, %s2395
        %s2397 = smul.addr %s2390, 256
        %s2398 = sadd.s32 %s2396, %s2397
        %s2399 = smul.addr %s2398, 4
        %s2400 = scalar_lea.vmem %s8, %s2399
      $region64: #{decoder_block_forward.2} parent=59 // pred_fallthru
        _
    $region60: #{decoder_block_forward.2} parent=5 // pred_fallthru
      _
  $region6: #{decoder_block_forward.2} parent=0 // loop_footer
    %s18 = sadd.s32 1, %s14
  $region7: #{decoder_block_forward.2} parent=0 // loop_footer_branch
    %13 = sbr.rel target = $region3
  $region8: #{decoder_block_forward.2} parent=0 // loop_exit
    _

// kernel: decoder_block_forward.3
$region0: #{decoder_block_forward.3}
  #allocation0 [shape = 'u32[]', space=smem, size = 0x4, offset = 0x4, fixed_abs, tag = 'smem constant byte address 0x4 - core index']
  #allocation1 [shape = 'u32[144,128]{1,0:T(1,128)}', space=vmem, size = 0x12000, scoped, tag = 'internal scratch']
  %s0 = inlined_call_operand.vmem [shape: bf16[2,10,256,144], index: 0, kind: input, shape index: {}, may-alias: {0,1,2}]
  %s1 = inlined_call_operand.vmem [shape: bf16[2,10,256,144], index: 1, kind: input, shape index: {}, may-alias: {0,1,2}]
  %s2 = inlined_call_operand.vmem [shape: bf16[2,10,256,144], index: 2, kind: input, shape index: {}, may-alias: {0,1,2}]
  %s3 = inlined_call_operand.vmem [shape: bf16[3,144,16], index: 3, kind: input, shape index: {}, may-alias: {3,4,5}]
  %s4 = inlined_call_operand.vmem [shape: bf16[3,144,16], index: 4, kind: input, shape index: {}, may-alias: {3,4,5}]
  %s5 = inlined_call_operand.vmem [shape: bf16[3,144,16], index: 5, kind: input, shape index: {}, may-alias: {3,4,5}]
  %s6 = inlined_call_operand.vmem [shape: f32[1,16], index: 6, kind: input, shape index: {}]
  %s7 = inlined_call_operand.vmem [shape: f32[1,16], index: 7, kind: input, shape index: {}]
  %s8 = inlined_call_operand.vmem [shape: f32[2,8,256,16], index: 8, kind: output, shape index: {}]
  %s9 = sld [smem:[#allocation0]]
  $region65: #{decoder_block_forward.3} parent=0
    _
  %s11 = ssub.s32 1, %s9
  %s12 = scalar_select 0, %s11, %s9
  loop: start=0, step=1, limit=18
  $region2: #{decoder_block_forward.3} parent=0 // loop_pre_header
    _
  $region3: #{decoder_block_forward.3} parent=0 // loop_header
    %s14 = sphi 0, %s18
    %p15 = scmp.ge.s32.totalorder %s14, 18
    %s21 = sphi 0, %s40
    %s22 = sphi 0, %s36
    %s23 = sphi 0, %s32
    %s24 = sphi 0, %s21
    %s25 = sphi 0, %s22
    %s26 = sphi 0, %s23
    %s27 = sphi 0, %s24
    %s28 = sphi 0, %s25
    %s29 = sphi 0, %s26
    %s47 = sphi 0, %s49
    %s50 = sphi 0, %s47
    %s51 = sphi 0, %s50
    %s67 = sphi 0, %s51
    %s79 = sphi 0, %s81
    %s82 = sphi 0, %s79
    %s83 = sphi 0, %s82
    %s99 = sphi 0, %s83
    %s111 = sphi 0, %s113
    %s114 = sphi 0, %s111
    %s115 = sphi 0, %s114
    %s131 = sphi 0, %s115
    %s135 = sphi 0, %s135
    %s137 = sphi 0, %s135
    %s138 = sphi 0, %s137
    %s152 = sphi 0, %s138
    %s156 = sphi 0, %s156
    %s158 = sphi 0, %s156
    %s159 = sphi 0, %s158
    %s173 = sphi 0, %s159
    %s177 = sphi 0, %s177
    %s179 = sphi 0, %s177
    %s180 = sphi 0, %s179
    %s194 = sphi 0, %s180
    %s198 = sphi 0, %s198
    %s200 = sphi 0, %s198
    %s201 = sphi 0, %s200
    %s215 = sphi 0, %s201
    %s219 = sphi 0, %s219
    %s221 = sphi 0, %s219
    %s222 = sphi 0, %s221
    %s236 = sphi 0, %s222
    %s246 = sphi 0, %s248
    %s249 = sphi 0, %s246
    %s250 = sphi 0, %s249
    %s266 = sphi 0, %s250
  $region4: #{decoder_block_forward.3} parent=0 // loop_header_branch
    %17 = sbr.rel (%p15) target = $region8
  $region5: #{decoder_block_forward.3} parent=0 // loop_body
    %s19 = ssub.s32 %s14, 1
    %s20 = ssub.s32 %s14, 2
    %s30 = sadd.s32 1, %s23
    %p31 = scmp.ge.s32.totalorder %s30, 1
    %s32 = scalar_select %p31, 0, %s30
    %s33 = sadd.s32 1, %s22
    %s34 = scalar_select %p31, %s33, %s22
    %p35 = scmp.ge.s32.totalorder %s34, 8
    %s36 = scalar_select %p35, 0, %s34
    %s37 = sadd.s32 1, %s21
    %s38 = scalar_select %p35, %s37, %s21
    %p39 = scmp.ge.s32.totalorder %s38, 2
    %s40 = scalar_select %p39, 0, %s38
    %s41 = ssub.s32 %s21, %s40
    %s42 = ssub.s32 %s22, %s36
    %s43 = sor.u32 %s41, %s42
    %s44 = ssub.s32 %s23, %s32
    %s45 = sor.u32 %s43, %s44
    %p46 = scmp.eq.s32.totalorder %s45, 0
    %s48 = sadd.s32 %s47, 1
    %s49 = scalar_select %p46, %s47, %s48
    %p52 = pneg %p46
    %p53 = scmp.eq.s32.totalorder %s14, 15
    %p54 = por %p52, %p53
    %p55 = scmp.ne.s32.totalorder %s47, %s50
    %p56 = scmp.eq.s32.totalorder %s14, 0
    %p57 = por %p55, %p56
    %p58 = scmp.ne.s32.totalorder %s47, %s50
    %p59 = scmp.eq.s32.totalorder %s19, 15
    %p60 = por %p58, %p59
    %p61 = scmp.ne.s32.totalorder %s50, %s51
    %p62 = scmp.eq.s32.totalorder %s19, 0
    %p63 = por %p61, %p62
    %p64 = scmp.ne.s32.totalorder %s50, %s51
    %p65 = scmp.eq.s32.totalorder %s20, 15
    %p66 = por %p64, %p65
    %p68 = scmp.ne.s32.totalorder %s51, %s67
    %p69 = scmp.eq.s32.totalorder %s20, 0
    %p70 = por %p68, %p69
    %s71 = sadd.s32 %s22, 1
    %s72 = sadd.s32 %s36, 1
    %s73 = ssub.s32 %s21, %s40
    %s74 = ssub.s32 %s71, %s72
    %s75 = sor.u32 %s73, %s74
    %s76 = ssub.s32 %s23, %s32
    %s77 = sor.u32 %s75, %s76
    %p78 = scmp.eq.s32.totalorder %s77, 0
    %s80 = sadd.s32 %s79, 1
    %s81 = scalar_select %p78, %s79, %s80
    %p84 = pneg %p78
    %p85 = scmp.eq.s32.totalorder %s14, 15
    %p86 = por %p84, %p85
    %p87 = scmp.ne.s32.totalorder %s79, %s82
    %p88 = scmp.eq.s32.totalorder %s14, 0
    %p89 = por %p87, %p88
    %p90 = scmp.ne.s32.totalorder %s79, %s82
    %p91 = scmp.eq.s32.totalorder %s19, 15
    %p92 = por %p90, %p91
    %p93 = scmp.ne.s32.totalorder %s82, %s83
    %p94 = scmp.eq.s32.totalorder %s19, 0
    %p95 = por %p93, %p94
    %p96 = scmp.ne.s32.totalorder %s82, %s83
    %p97 = scmp.eq.s32.totalorder %s20, 15
    %p98 = por %p96, %p97
    %p100 = scmp.ne.s32.totalorder %s83, %s99
    %p101 = scmp.eq.s32.totalorder %s20, 0
    %p102 = por %p100, %p101
    %s103 = sadd.s32 %s22, 2
    %s104 = sadd.s32 %s36, 2
    %s105 = ssub.s32 %s21, %s40
    %s106 = ssub.s32 %s103, %s104
    %s107 = sor.u32 %s105, %s106
    %s108 = ssub.s32 %s23, %s32
    %s109 = sor.u32 %s107, %s108
    %p110 = scmp.eq.s32.totalorder %s109, 0
    %s112 = sadd.s32 %s111, 1
    %s113 = scalar_select %p110, %s111, %s112
    %p116 = pneg %p110
    %p117 = scmp.eq.s32.totalorder %s14, 15
    %p118 = por %p116, %p117
    %p119 = scmp.ne.s32.totalorder %s111, %s114
    %p120 = scmp.eq.s32.totalorder %s14, 0
    %p121 = por %p119, %p120
    %p122 = scmp.ne.s32.totalorder %s111, %s114
    %p123 = scmp.eq.s32.totalorder %s19, 15
    %p124 = por %p122, %p123
    %p125 = scmp.ne.s32.totalorder %s114, %s115
    %p126 = scmp.eq.s32.totalorder %s19, 0
    %p127 = por %p125, %p126
    %p128 = scmp.ne.s32.totalorder %s114, %s115
    %p129 = scmp.eq.s32.totalorder %s20, 15
    %p130 = por %p128, %p129
    %p132 = scmp.ne.s32.totalorder %s115, %s131
    %p133 = scmp.eq.s32.totalorder %s20, 0
    %p134 = por %p132, %p133
    %s136 = sadd.s32 %s135, 1
    %p139 = scmp.eq.s32.totalorder %s14, 15
    %p140 = scmp.ne.s32.totalorder %s135, %s137
    %p141 = scmp.eq.s32.totalorder %s14, 0
    %p142 = por %p140, %p141
    %p143 = scmp.ne.s32.totalorder %s135, %s137
    %p144 = scmp.eq.s32.totalorder %s19, 15
    %p145 = por %p143, %p144
    %p146 = scmp.ne.s32.totalorder %s137, %s138
    %p147 = scmp.eq.s32.totalorder %s19, 0
    %p148 = por %p146, %p147
    %p149 = scmp.ne.s32.totalorder %s137, %s138
    %p150 = scmp.eq.s32.totalorder %s20, 15
    %p151 = por %p149, %p150
    %p153 = scmp.ne.s32.totalorder %s138, %s152
    %p154 = scmp.eq.s32.totalorder %s20, 0
    %p155 = por %p153, %p154
    %s157 = sadd.s32 %s156, 1
    %p160 = scmp.eq.s32.totalorder %s14, 15
    %p161 = scmp.ne.s32.totalorder %s156, %s158
    %p162 = scmp.eq.s32.totalorder %s14, 0
    %p163 = por %p161, %p162
    %p164 = scmp.ne.s32.totalorder %s156, %s158
    %p165 = scmp.eq.s32.totalorder %s19, 15
    %p166 = por %p164, %p165
    %p167 = scmp.ne.s32.totalorder %s158, %s159
    %p168 = scmp.eq.s32.totalorder %s19, 0
    %p169 = por %p167, %p168
    %p170 = scmp.ne.s32.totalorder %s158, %s159
    %p171 = scmp.eq.s32.totalorder %s20, 15
    %p172 = por %p170, %p171
    %p174 = scmp.ne.s32.totalorder %s159, %s173
    %p175 = scmp.eq.s32.totalorder %s20, 0
    %p176 = por %p174, %p175
    %s178 = sadd.s32 %s177, 1
    %p181 = scmp.eq.s32.totalorder %s14, 15
    %p182 = scmp.ne.s32.totalorder %s177, %s179
    %p183 = scmp.eq.s32.totalorder %s14, 0
    %p184 = por %p182, %p183
    %p185 = scmp.ne.s32.totalorder %s177, %s179
    %p186 = scmp.eq.s32.totalorder %s19, 15
    %p187 = por %p185, %p186
    %p188 = scmp.ne.s32.totalorder %s179, %s180
    %p189 = scmp.eq.s32.totalorder %s19, 0
    %p190 = por %p188, %p189
    %p191 = scmp.ne.s32.totalorder %s179, %s180
    %p192 = scmp.eq.s32.totalorder %s20, 15
    %p193 = por %p191, %p192
    %p195 = scmp.ne.s32.totalorder %s180, %s194
    %p196 = scmp.eq.s32.totalorder %s20, 0
    %p197 = por %p195, %p196
    %s199 = sadd.s32 %s198, 1
    %p202 = scmp.eq.s32.totalorder %s14, 15
    %p203 = scmp.ne.s32.totalorder %s198, %s200
    %p204 = scmp.eq.s32.totalorder %s14, 0
    %p205 = por %p203, %p204
    %p206 = scmp.ne.s32.totalorder %s198, %s200
    %p207 = scmp.eq.s32.totalorder %s19, 15
    %p208 = por %p206, %p207
    %p209 = scmp.ne.s32.totalorder %s200, %s201
    %p210 = scmp.eq.s32.totalorder %s19, 0
    %p211 = por %p209, %p210
    %p212 = scmp.ne.s32.totalorder %s200, %s201
    %p213 = scmp.eq.s32.totalorder %s20, 15
    %p214 = por %p212, %p213
    %p216 = scmp.ne.s32.totalorder %s201, %s215
    %p217 = scmp.eq.s32.totalorder %s20, 0
    %p218 = por %p216, %p217
    %s220 = sadd.s32 %s219, 1
    %p223 = scmp.eq.s32.totalorder %s14, 15
    %p224 = scmp.ne.s32.totalorder %s219, %s221
    %p225 = scmp.eq.s32.totalorder %s14, 0
    %p226 = por %p224, %p225
    %p227 = scmp.ne.s32.totalorder %s219, %s221
    %p228 = scmp.eq.s32.totalorder %s19, 15
    %p229 = por %p227, %p228
    %p230 = scmp.ne.s32.totalorder %s221, %s222
    %p231 = scmp.eq.s32.totalorder %s19, 0
    %p232 = por %p230, %p231
    %p233 = scmp.ne.s32.totalorder %s221, %s222
    %p234 = scmp.eq.s32.totalorder %s20, 15
    %p235 = por %p233, %p234
    %p237 = scmp.ne.s32.totalorder %s222, %s236
    %p238 = scmp.eq.s32.totalorder %s20, 0
    %p239 = por %p237, %p238
    %s240 = ssub.s32 %s21, %s40
    %s241 = ssub.s32 %s22, %s36
    %s242 = sor.u32 %s240, %s241
    %s243 = ssub.s32 %s23, %s32
    %s244 = sor.u32 %s242, %s243
    %p245 = scmp.eq.s32.totalorder %s244, 0
    %s247 = sadd.s32 %s246, 1
    %s248 = scalar_select %p245, %s246, %s247
    %p251 = pneg %p245
    %p252 = scmp.eq.s32.totalorder %s14, 15
    %p253 = por %p251, %p252
    %p254 = scmp.ne.s32.totalorder %s246, %s249
    %p255 = scmp.eq.s32.totalorder %s14, 0
    %p256 = por %p254, %p255
    %p257 = scmp.ne.s32.totalorder %s246, %s249
    %p258 = scmp.eq.s32.totalorder %s19, 15
    %p259 = por %p257, %p258
    %p260 = scmp.ne.s32.totalorder %s249, %s250
    %p261 = scmp.eq.s32.totalorder %s19, 0
    %p262 = por %p260, %p261
    %p263 = scmp.ne.s32.totalorder %s249, %s250
    %p264 = scmp.eq.s32.totalorder %s20, 15
    %p265 = por %p263, %p264
    %p267 = scmp.ne.s32.totalorder %s250, %s266
    %p268 = scmp.eq.s32.totalorder %s20, 0
    %p269 = por %p267, %p268
    %p270 = scmp.le.s32.totalorder 1, %s14
    %p271 = scmp.lt.s32.totalorder %s14, 17
    %p272 = pnand %p270, %p271
    %p273 = pneg %p272
    // Predicated region
    $region9: #{decoder_block_forward.3} parent=5 // pred_check
      _
    $region10: #{decoder_block_forward.3} parent=5 // pred_check_branch
      %275 = sbr.rel (%p272) target = $region12
    $region11: #{decoder_block_forward.3} parent=5 // pred_region
      %s276 = ssub.s32 %s14, 1
      // Predicated region
      $region13: #{decoder_block_forward.3} parent=11 // pred_check
        %p277 = pneg %p148
      $region14: #{decoder_block_forward.3} parent=11 // pred_check_branch
        %279 = sbr.rel (%p277) target = $region16
      $region15: #{decoder_block_forward.3} parent=11 // pred_region
        _
      $region16: #{decoder_block_forward.3} parent=11 // pred_fallthru
        _
      // Predicated region
      $region17: #{decoder_block_forward.3} parent=11 // pred_check
        %p280 = pneg %p169
      $region18: #{decoder_block_forward.3} parent=11 // pred_check_branch
        %282 = sbr.rel (%p280) target = $region20
      $region19: #{decoder_block_forward.3} parent=11 // pred_region
        %s283 = scalar_lea.vmem %s4, 72
      $region20: #{decoder_block_forward.3} parent=11 // pred_fallthru
        _
      // Predicated region
      $region21: #{decoder_block_forward.3} parent=11 // pred_check
        %p284 = pneg %p190
      $region22: #{decoder_block_forward.3} parent=11 // pred_check_branch
        %286 = sbr.rel (%p284) target = $region24
      $region23: #{decoder_block_forward.3} parent=11 // pred_region
        %s287 = scalar_lea.vmem %s5, 144
      $region24: #{decoder_block_forward.3} parent=11 // pred_fallthru
        _
      // Predicated region
      $region25: #{decoder_block_forward.3} parent=11 // pred_check
        %p288 = pneg %p211
      $region26: #{decoder_block_forward.3} parent=11 // pred_check_branch
        %290 = sbr.rel (%p288) target = $region28
      $region27: #{decoder_block_forward.3} parent=11 // pred_region
        _
      $region28: #{decoder_block_forward.3} parent=11 // pred_fallthru
        _
      // Predicated region
      $region29: #{decoder_block_forward.3} parent=11 // pred_check
        %p291 = pneg %p232
      $region30: #{decoder_block_forward.3} parent=11 // pred_check_branch
        %293 = sbr.rel (%p291) target = $region32
      $region31: #{decoder_block_forward.3} parent=11 // pred_region
        _
      $region32: #{decoder_block_forward.3} parent=11 // pred_fallthru
        _
    $region12: #{decoder_block_forward.3} parent=5 // pred_fallthru
      _
    %p294 = scmp.lt.s32.totalorder %s14, 16
    // Predicated region
    $region33: #{decoder_block_forward.3} parent=5 // pred_check
      %p295 = pneg %p294
    $region34: #{decoder_block_forward.3} parent=5 // pred_check_branch
      %297 = sbr.rel (%p295) target = $region36
    $region35: #{decoder_block_forward.3} parent=5 // pred_region
      // Predicated region
      $region37: #{decoder_block_forward.3} parent=35 // pred_check
        %p298 = pneg %p57
      $region38: #{decoder_block_forward.3} parent=35 // pred_check_branch
        %300 = sbr.rel (%p298) target = $region40
      $region39: #{decoder_block_forward.3} parent=35 // pred_region
        %s301 = smul.u32 32, %s23
        %p302 = scmp.lt.s32.totalorder %s21, 1
        %s303 = scalar_select %p302, %s21, 1
        %p304 = scmp.lt.s32.totalorder %s22, 9
        %s305 = scalar_select %p304, %s22, 9
        %p306 = scmp.lt.s32.totalorder %s301, 31
        %s307 = scalar_select %p306, %s301, 31
        %s308 = smul.addr %s307, 2
        %s309 = smul.addr %s305, 64
        %s310 = sadd.s32 %s308, %s309
        %s311 = smul.addr %s303, 640
        %s312 = sadd.s32 %s310, %s311
        %s313 = smul.addr %s312, 4
        %s314 = scalar_lea.vmem %s0, %s313
        %s315 = smul.u32 32, %s23
      $region40: #{decoder_block_forward.3} parent=35 // pred_fallthru
        _
      // Predicated region
      $region41: #{decoder_block_forward.3} parent=35 // pred_check
        %p316 = pneg %p89
      $region42: #{decoder_block_forward.3} parent=35 // pred_check_branch
        %318 = sbr.rel (%p316) target = $region44
      $region43: #{decoder_block_forward.3} parent=35 // pred_region
        %s319 = sadd.s32 %s22, 1
        %s320 = smul.u32 32, %s23
        %p321 = scmp.lt.s32.totalorder %s21, 1
        %s322 = scalar_select %p321, %s21, 1
        %p323 = scmp.lt.s32.totalorder %s319, 9
        %s324 = scalar_select %p323, %s319, 9
        %p325 = scmp.lt.s32.totalorder %s320, 31
        %s326 = scalar_select %p325, %s320, 31
        %s327 = smul.addr %s326, 2
        %s328 = smul.addr %s324, 64
        %s329 = sadd.s32 %s327, %s328
        %s330 = smul.addr %s322, 640
        %s331 = sadd.s32 %s329, %s330
        %s332 = smul.addr %s331, 4
        %s333 = scalar_lea.vmem %s1, %s332
        %s334 = sadd.s32 %s22, 1
        %s335 = smul.u32 32, %s23
      $region44: #{decoder_block_forward.3} parent=35 // pred_fallthru
        _
      // Predicated region
      $region45: #{decoder_block_forward.3} parent=35 // pred_check
        %p336 = pneg %p121
      $region46: #{decoder_block_forward.3} parent=35 // pred_check_branch
        %338 = sbr.rel (%p336) target = $region48
      $region47: #{decoder_block_forward.3} parent=35 // pred_region
        %s339 = sadd.s32 %s22, 2
        %s340 = smul.u32 32, %s23
        %p341 = scmp.lt.s32.totalorder %s21, 1
        %s342 = scalar_select %p341, %s21, 1
        %p343 = scmp.lt.s32.totalorder %s339, 9
        %s344 = scalar_select %p343, %s339, 9
        %p345 = scmp.lt.s32.totalorder %s340, 31
        %s346 = scalar_select %p345, %s340, 31
        %s347 = smul.addr %s346, 2
        %s348 = smul.addr %s344, 64
        %s349 = sadd.s32 %s347, %s348
        %s350 = smul.addr %s342, 640
        %s351 = sadd.s32 %s349, %s350
        %s352 = smul.addr %s351, 4
        %s353 = scalar_lea.vmem %s2, %s352
        %s354 = sadd.s32 %s22, 2
        %s355 = smul.u32 32, %s23
      $region48: #{decoder_block_forward.3} parent=35 // pred_fallthru
        _
    $region36: #{decoder_block_forward.3} parent=5 // pred_fallthru
      _
    %p356 = scmp.le.s32.totalorder 1, %s14
    %p357 = scmp.lt.s32.totalorder %s14, 17
    %p358 = pnand %p356, %p357
    %p359 = pneg %p358
    // Predicated region
    $region49: #{decoder_block_forward.3} parent=5 // pred_check
      _
    $region50: #{decoder_block_forward.3} parent=5 // pred_check_branch
      %361 = sbr.rel (%p358) target = $region52
    $region51: #{decoder_block_forward.3} parent=5 // pred_region
      %s362 = ssub.s32 %s14, 1
      %s363 = smul.u32 32, %s26
      %p364 = scmp.lt.s32.totalorder %s24, 1
      %s365 = scalar_select %p364, %s24, 1
      %p366 = scmp.lt.s32.totalorder %s25, 9
      %s367 = scalar_select %p366, %s25, 9
      %p368 = scmp.lt.s32.totalorder %s363, 31
      %s369 = scalar_select %p368, %s363, 31
      %s370 = smul.addr %s369, 2
      %s371 = smul.addr %s367, 64
      %s372 = sadd.s32 %s370, %s371
      %s373 = smul.addr %s365, 640
      %s374 = sadd.s32 %s372, %s373
      %s375 = smul.addr %s374, 4
      %s376 = scalar_lea.vmem %s0, %s375
      %p377 = pneg %p63
      %p378 = pneg %p60
      %s379 = sadd.s32 %s25, 1
      %s380 = smul.u32 32, %s26
      %p381 = scmp.lt.s32.totalorder %s24, 1
      %s382 = scalar_select %p381, %s24, 1
      %p383 = scmp.lt.s32.totalorder %s379, 9
      %s384 = scalar_select %p383, %s379, 9
      %p385 = scmp.lt.s32.totalorder %s380, 31
      %s386 = scalar_select %p385, %s380, 31
      %s387 = smul.addr %s386, 2
      %s388 = smul.addr %s384, 64
      %s389 = sadd.s32 %s387, %s388
      %s390 = smul.addr %s382, 640
      %s391 = sadd.s32 %s389, %s390
      %s392 = smul.addr %s391, 4
      %s393 = scalar_lea.vmem %s1, %s392
      %p394 = pneg %p95
      %p395 = pneg %p92
      %s396 = sadd.s32 %s25, 2
      %s397 = smul.u32 32, %s26
      %p398 = scmp.lt.s32.totalorder %s24, 1
      %s399 = scalar_select %p398, %s24, 1
      %p400 = scmp.lt.s32.totalorder %s396, 9
      %s401 = scalar_select %p400, %s396, 9
      %p402 = scmp.lt.s32.totalorder %s397, 31
      %s403 = scalar_select %p402, %s397, 31
      %s404 = smul.addr %s403, 2
      %s405 = smul.addr %s401, 64
      %s406 = sadd.s32 %s404, %s405
      %s407 = smul.addr %s399, 640
      %s408 = sadd.s32 %s406, %s407
      %s409 = smul.addr %s408, 4
      %s410 = scalar_lea.vmem %s2, %s409
      %p411 = pneg %p127
      %p412 = pneg %p124
      %p413 = pneg %p148
      %p414 = pneg %p145
      %s415 = scalar_lea.vmem %s4, 72
      %p416 = pneg %p169
      %p417 = pneg %p166
      %s418 = scalar_lea.vmem %s5, 144
      %p419 = pneg %p190
      %p420 = pneg %p187
      %p421 = pneg %p211
      %p422 = pneg %p208
      %p423 = pneg %p232
      %p424 = pneg %p229
      %p425 = pneg %p262
      %p426 = pneg %p259
      %s427 = smul.u32 32, %s26
      %p428 = scmp.lt.s32.totalorder %s24, 1
      %s429 = scalar_select %p428, %s24, 1
      %p430 = scmp.lt.s32.totalorder %s25, 7
      %s431 = scalar_select %p430, %s25, 7
      %p432 = scmp.lt.s32.totalorder %s427, 31
      %s433 = scalar_select %p432, %s427, 31
      %s434 = smul.addr %s431, 32
      %s435 = sadd.s32 %s433, %s434
      %s436 = smul.addr %s429, 256
      %s437 = sadd.s32 %s435, %s436
      %s438 = smul.addr %s437, 8
      %s439 = scalar_lea.vmem %s8, %s438
      %s440 = smul.u32 32, %s26
      %p441 = scmp.lt.s32.totalorder %s24, 1
      %s442 = scalar_select %p441, %s24, 1
      %p443 = scmp.lt.s32.totalorder %s25, 9
      %s444 = scalar_select %p443, %s25, 9
      %p445 = scmp.lt.s32.totalorder %s440, 31
      %s446 = scalar_select %p445, %s440, 31
      %s447 = smul.addr %s446, 2
      %s448 = smul.addr %s444, 64
      %s449 = sadd.s32 %s447, %s448
      %s450 = smul.addr %s442, 640
      %s451 = sadd.s32 %s449, %s450
      %s452 = smul.addr %s451, 4
      %s453 = scalar_lea.vmem %s0, %s452
      %s454 = smul.u32 32, %s26
      %s455 = sadd.s32 %s25, 1
      %s456 = smul.u32 32, %s26
      %p457 = scmp.lt.s32.totalorder %s24, 1
      %s458 = scalar_select %p457, %s24, 1
      %p459 = scmp.lt.s32.totalorder %s455, 9
      %s460 = scalar_select %p459, %s455, 9
      %p461 = scmp.lt.s32.totalorder %s456, 31
      %s462 = scalar_select %p461, %s456, 31
      %s463 = smul.addr %s462, 2
      %s464 = smul.addr %s460, 64
      %s465 = sadd.s32 %s463, %s464
      %s466 = smul.addr %s458, 640
      %s467 = sadd.s32 %s465, %s466
      %s468 = smul.addr %s467, 4
      %s469 = scalar_lea.vmem %s1, %s468
      %s470 = sadd.s32 %s25, 1
      %s471 = smul.u32 32, %s26
      %s472 = sadd.s32 %s25, 2
      %s473 = smul.u32 32, %s26
      %p474 = scmp.lt.s32.totalorder %s24, 1
      %s475 = scalar_select %p474, %s24, 1
      %p476 = scmp.lt.s32.totalorder %s472, 9
      %s477 = scalar_select %p476, %s472, 9
      %p478 = scmp.lt.s32.totalorder %s473, 31
      %s479 = scalar_select %p478, %s473, 31
      %s480 = smul.addr %s479, 2
      %s481 = smul.addr %s477, 64
      %s482 = sadd.s32 %s480, %s481
      %s483 = smul.addr %s475, 640
      %s484 = sadd.s32 %s482, %s483
      %s485 = smul.addr %s484, 4
      %s486 = scalar_lea.vmem %s2, %s485
      %s487 = sadd.s32 %s25, 2
      %s488 = smul.u32 32, %s26
      %s489 = scalar_lea.vmem %s4, 72
      %s490 = scalar_lea.vmem %s5, 144
      %s491 = smul.u32 32, %s26
      %p492 = scmp.lt.s32.totalorder %s24, 1
      %s493 = scalar_select %p492, %s24, 1
      %p494 = scmp.lt.s32.totalorder %s25, 7
      %s495 = scalar_select %p494, %s25, 7
      %p496 = scmp.lt.s32.totalorder %s491, 31
      %s497 = scalar_select %p496, %s491, 31
      %s498 = smul.addr %s495, 32
      %s499 = sadd.s32 %s497, %s498
      %s500 = smul.addr %s493, 256
      %s501 = sadd.s32 %s499, %s500
      %s502 = smul.addr %s501, 8
      %s503 = scalar_lea.vmem %s8, %s502
      %s504 = smul.u32 32, %s26
      %v506 = vld [vmem:[%s453] sm:$0xff]
      %v507 = vld [vmem:[%s453 + $0x8] sm:$0xff]
      %v508 = vld [vmem:[%s453 + $0x10] sm:$0xff]
      %v509 = vld [vmem:[%s453 + $0x18] sm:$0xff]
      %v510 = vld [vmem:[%s453 + $0x20] sm:$0xff]
      %v511 = vld [vmem:[%s453 + $0x28] sm:$0xff]
      %v512 = vld [vmem:[%s453 + $0x30] sm:$0xff]
      %v513 = vld [vmem:[%s453 + $0x38] sm:$0xff]
      %v514 = vld [vmem:[%s453 + $0x40] sm:$0xff]
      %v515 = vld [vmem:[%s453 + $0x48] sm:$0xff]
      %v516 = vld [vmem:[%s453 + $0x50] sm:$0xff]
      %v517 = vld [vmem:[%s453 + $0x58] sm:$0xff]
      %v518 = vld [vmem:[%s453 + $0x60] sm:$0xff]
      %v519 = vld [vmem:[%s453 + $0x68] sm:$0xff]
      %v520 = vld [vmem:[%s453 + $0x70] sm:$0xff]
      %v521 = vld [vmem:[%s453 + $0x78] sm:$0xff]
      %v522 = vld [vmem:[%s453 + $0x80] sm:$0xff]
      %v523 = vld [vmem:[%s453 + $0x88] sm:$0xff]
      %v524 = vld [vmem:[%s453 + $0x90] sm:$0xff]
      %v525 = vld [vmem:[%s453 + $0x98] sm:$0xff]
      %v526 = vld [vmem:[%s453 + $0xa0] sm:$0xff]
      %v527 = vld [vmem:[%s453 + $0xa8] sm:$0xff]
      %v528 = vld [vmem:[%s453 + $0xb0] sm:$0xff]
      %v529 = vld [vmem:[%s453 + $0xb8] sm:$0xff]
      %v530 = vld [vmem:[%s453 + $0xc0] sm:$0xff]
      %v531 = vld [vmem:[%s453 + $0xc8] sm:$0xff]
      %v532 = vld [vmem:[%s453 + $0xd0] sm:$0xff]
      %v533 = vld [vmem:[%s453 + $0xd8] sm:$0xff]
      %v534 = vld [vmem:[%s453 + $0xe0] sm:$0xff]
      %v535 = vld [vmem:[%s453 + $0xe8] sm:$0xff]
      %v536 = vld [vmem:[%s453 + $0xf0] sm:$0xff]
      %v537 = vld [vmem:[%s453 + $0xf8] sm:$0xff]
      %v538 = vld [vmem:[%s3] sm:$0xf]
      %v539 = vld [vmem:[%s3 + $0x4] sm:$0xf]
      %v540 = vld [vmem:[%s3 + $0x8] sm:$0xf]
      %v541 = vld [vmem:[%s3 + $0xc] sm:$0xf]
      %v542 = vld [vmem:[%s3 + $0x10] sm:$0xf]
      %v543 = vld [vmem:[%s3 + $0x14] sm:$0xf]
      %v544 = vld [vmem:[%s3 + $0x18] sm:$0xf]
      %v545 = vld [vmem:[%s3 + $0x1c] sm:$0xf]
      %v546 = vld [vmem:[%s3 + $0x20] sm:$0xf]
      %v547 = vld [vmem:[%s3 + $0x24] sm:$0xf]
      %v548 = vld [vmem:[%s3 + $0x28] sm:$0xf]
      %v549 = vld [vmem:[%s3 + $0x2c] sm:$0xf]
      %v550 = vld [vmem:[%s3 + $0x30] sm:$0xf]
      %v551 = vld [vmem:[%s3 + $0x34] sm:$0xf]
      %v552 = vld [vmem:[%s3 + $0x38] sm:$0xf]
      %v553 = vld [vmem:[%s3 + $0x3c] sm:$0xf]
      %v554 = vld [vmem:[%s3 + $0x40] sm:$0xf]
      %v555 = vld [vmem:[%s3 + $0x44] sm:$0xf]
      %v556 = vld [vmem:[%s469] sm:$0xff]
      %v557 = vld [vmem:[%s469 + $0x8] sm:$0xff]
      %v558 = vld [vmem:[%s469 + $0x10] sm:$0xff]
      %v559 = vld [vmem:[%s469 + $0x18] sm:$0xff]
      %v560 = vld [vmem:[%s469 + $0x20] sm:$0xff]
      %v561 = vld [vmem:[%s469 + $0x28] sm:$0xff]
      %v562 = vld [vmem:[%s469 + $0x30] sm:$0xff]
      %v563 = vld [vmem:[%s469 + $0x38] sm:$0xff]
      %v564 = vld [vmem:[%s469 + $0x40] sm:$0xff]
      %v565 = vld [vmem:[%s469 + $0x48] sm:$0xff]
      %v566 = vld [vmem:[%s469 + $0x50] sm:$0xff]
      %v567 = vld [vmem:[%s469 + $0x58] sm:$0xff]
      %v568 = vld [vmem:[%s469 + $0x60] sm:$0xff]
      %v569 = vld [vmem:[%s469 + $0x68] sm:$0xff]
      %v570 = vld [vmem:[%s469 + $0x70] sm:$0xff]
      %v571 = vld [vmem:[%s469 + $0x78] sm:$0xff]
      %v572 = vld [vmem:[%s469 + $0x80] sm:$0xff]
      %v573 = vld [vmem:[%s469 + $0x88] sm:$0xff]
      %v574 = vld [vmem:[%s469 + $0x90] sm:$0xff]
      %v575 = vld [vmem:[%s469 + $0x98] sm:$0xff]
      %v576 = vld [vmem:[%s469 + $0xa0] sm:$0xff]
      %v577 = vld [vmem:[%s469 + $0xa8] sm:$0xff]
      %v578 = vld [vmem:[%s469 + $0xb0] sm:$0xff]
      %v579 = vld [vmem:[%s469 + $0xb8] sm:$0xff]
      %v580 = vld [vmem:[%s469 + $0xc0] sm:$0xff]
      %v581 = vld [vmem:[%s469 + $0xc8] sm:$0xff]
      %v582 = vld [vmem:[%s469 + $0xd0] sm:$0xff]
      %v583 = vld [vmem:[%s469 + $0xd8] sm:$0xff]
      %v584 = vld [vmem:[%s469 + $0xe0] sm:$0xff]
      %v585 = vld [vmem:[%s469 + $0xe8] sm:$0xff]
      %v586 = vld [vmem:[%s469 + $0xf0] sm:$0xff]
      %v587 = vld [vmem:[%s469 + $0xf8] sm:$0xff]
      %v588 = vld [vmem:[%s489] sm:$0xf]
      %v589 = vld [vmem:[%s489 + $0x4] sm:$0xf]
      %v590 = vld [vmem:[%s489 + $0x8] sm:$0xf]
      %v591 = vld [vmem:[%s489 + $0xc] sm:$0xf]
      %v592 = vld [vmem:[%s489 + $0x10] sm:$0xf]
      %v593 = vld [vmem:[%s489 + $0x14] sm:$0xf]
      %v594 = vld [vmem:[%s489 + $0x18] sm:$0xf]
      %v595 = vld [vmem:[%s489 + $0x1c] sm:$0xf]
      %v596 = vld [vmem:[%s489 + $0x20] sm:$0xf]
      %v597 = vld [vmem:[%s489 + $0x24] sm:$0xf]
      %v598 = vld [vmem:[%s489 + $0x28] sm:$0xf]
      %v599 = vld [vmem:[%s489 + $0x2c] sm:$0xf]
      %v600 = vld [vmem:[%s489 + $0x30] sm:$0xf]
      %v601 = vld [vmem:[%s489 + $0x34] sm:$0xf]
      %v602 = vld [vmem:[%s489 + $0x38] sm:$0xf]
      %v603 = vld [vmem:[%s489 + $0x3c] sm:$0xf]
      %v604 = vld [vmem:[%s489 + $0x40] sm:$0xf]
      %v605 = vld [vmem:[%s489 + $0x44] sm:$0xf]
      %v638 = vunpack.c.l.b16 %v556
      %v639 = vunpack.c.h.b16 %v556
      %v640 = vunpack.c.l.b16 %v557
      %v641 = vunpack.c.h.b16 %v557
      %v642 = vunpack.c.l.b16 %v558
      %v643 = vunpack.c.h.b16 %v558
      %v644 = vunpack.c.l.b16 %v559
      %v645 = vunpack.c.h.b16 %v559
      %v646 = vunpack.c.l.b16 %v560
      %v647 = vunpack.c.h.b16 %v560
      %v648 = vunpack.c.l.b16 %v561
      %v649 = vunpack.c.h.b16 %v561
      %v650 = vunpack.c.l.b16 %v562
      %v651 = vunpack.c.h.b16 %v562
      %v652 = vunpack.c.l.b16 %v563
      %v653 = vunpack.c.h.b16 %v563
      %v654 = vunpack.c.l.b16 %v564
      %v655 = vunpack.c.h.b16 %v564
      %v656 = vunpack.c.l.b16 %v565
      %v657 = vunpack.c.h.b16 %v565
      %v658 = vunpack.c.l.b16 %v566
      %v659 = vunpack.c.h.b16 %v566
      %v660 = vunpack.c.l.b16 %v567
      %v661 = vunpack.c.h.b16 %v567
      %v662 = vunpack.c.l.b16 %v568
      %v663 = vunpack.c.h.b16 %v568
      %v664 = vunpack.c.l.b16 %v569
      %v665 = vunpack.c.h.b16 %v569
      %v666 = vunpack.c.l.b16 %v570
      %v667 = vunpack.c.h.b16 %v570
      %v668 = vunpack.c.l.b16 %v571
      %v669 = vunpack.c.h.b16 %v571
      %v670 = vunpack.c.l.b16 %v572
      %v671 = vunpack.c.h.b16 %v572
      %v672 = vunpack.c.l.b16 %v573
      %v673 = vunpack.c.h.b16 %v573
      %v674 = vunpack.c.l.b16 %v574
      %v675 = vunpack.c.h.b16 %v574
      %v676 = vunpack.c.l.b16 %v575
      %v677 = vunpack.c.h.b16 %v575
      %v678 = vunpack.c.l.b16 %v576
      %v679 = vunpack.c.h.b16 %v576
      %v680 = vunpack.c.l.b16 %v577
      %v681 = vunpack.c.h.b16 %v577
      %v682 = vunpack.c.l.b16 %v578
      %v683 = vunpack.c.h.b16 %v578
      %v684 = vunpack.c.l.b16 %v579
      %v685 = vunpack.c.h.b16 %v579
      %v686 = vunpack.c.l.b16 %v580
      %v687 = vunpack.c.h.b16 %v580
      %v688 = vunpack.c.l.b16 %v581
      %v689 = vunpack.c.h.b16 %v581
      %v690 = vunpack.c.l.b16 %v582
      %v691 = vunpack.c.h.b16 %v582
      %v692 = vunpack.c.l.b16 %v583
      %v693 = vunpack.c.h.b16 %v583
      %v694 = vunpack.c.l.b16 %v584
      %v695 = vunpack.c.h.b16 %v584
      %v696 = vunpack.c.l.b16 %v585
      %v697 = vunpack.c.h.b16 %v585
      %v698 = vunpack.c.l.b16 %v586
      %v699 = vunpack.c.h.b16 %v586
      %v700 = vunpack.c.l.b16 %v587
      %v701 = vunpack.c.h.b16 %v587
      %v702 = vpack.c.b16 %v640, %v638
      %v703 = vpack.c.b16 %v641, %v639
      %v704 = vpack.c.b16 %v644, %v642
      %v705 = vpack.c.b16 %v645, %v643
      %v706 = vpack.c.b16 %v648, %v646
      %v707 = vpack.c.b16 %v649, %v647
      %v708 = vpack.c.b16 %v652, %v650
      %v709 = vpack.c.b16 %v653, %v651
      %v710 = vpack.c.b16 %v656, %v654
      %v711 = vpack.c.b16 %v657, %v655
      %v712 = vpack.c.b16 %v660, %v658
      %v713 = vpack.c.b16 %v661, %v659
      %v714 = vpack.c.b16 %v664, %v662
      %v715 = vpack.c.b16 %v665, %v663
      %v716 = vpack.c.b16 %v668, %v666
      %v717 = vpack.c.b16 %v669, %v667
      %v718 = vpack.c.b16 %v672, %v670
      %v719 = vpack.c.b16 %v673, %v671
      %v720 = vpack.c.b16 %v676, %v674
      %v721 = vpack.c.b16 %v677, %v675
      %v722 = vpack.c.b16 %v680, %v678
      %v723 = vpack.c.b16 %v681, %v679
      %v724 = vpack.c.b16 %v684, %v682
      %v725 = vpack.c.b16 %v685, %v683
      %v726 = vpack.c.b16 %v688, %v686
      %v727 = vpack.c.b16 %v689, %v687
      %v728 = vpack.c.b16 %v692, %v690
      %v729 = vpack.c.b16 %v693, %v691
      %v730 = vpack.c.b16 %v696, %v694
      %v731 = vpack.c.b16 %v697, %v695
      %v732 = vpack.c.b16 %v700, %v698
      %v733 = vpack.c.b16 %v701, %v699
      %v768 = vunpack.c.l.b16 %v588
      %v769 = vunpack.c.l.b16 %v589
      %v770 = vunpack.c.l.b16 %v590
      %v771 = vunpack.c.l.b16 %v591
      %v772 = vunpack.c.l.b16 %v592
      %v773 = vunpack.c.l.b16 %v593
      %v774 = vunpack.c.l.b16 %v594
      %v775 = vunpack.c.l.b16 %v595
      %v776 = vunpack.c.l.b16 %v596
      %v777 = vunpack.c.l.b16 %v597
      %v778 = vunpack.c.l.b16 %v598
      %v779 = vunpack.c.l.b16 %v599
      %v780 = vunpack.c.l.b16 %v600
      %v781 = vunpack.c.l.b16 %v601
      %v782 = vunpack.c.l.b16 %v602
      %v783 = vunpack.c.l.b16 %v603
      %v784 = vunpack.c.l.b16 %v604
      %v785 = vunpack.c.l.b16 %v605
      %v786 = vpack.c.b16 %v769, %v768
      %v787 = vpack.c.b16 %v771, %v770
      %v788 = vpack.c.b16 %v773, %v772
      %v789 = vpack.c.b16 %v775, %v774
      %v790 = vpack.c.b16 %v777, %v776
      %v791 = vpack.c.b16 %v779, %v778
      %v792 = vpack.c.b16 %v781, %v780
      %v793 = vpack.c.b16 %v783, %v782
      %v794 = vpack.c.b16 %v785, %v784
      %vm804 = vcmask 130048
      %v806 = vsel %vm804, %v703, 0
      %v809 = vsel %vm804, %v705, 0
      %v812 = vsel %vm804, %v707, 0
      %v815 = vsel %vm804, %v709, 0
      %v818 = vsel %vm804, %v711, 0
      %v821 = vsel %vm804, %v713, 0
      %v824 = vsel %vm804, %v715, 0
      %v827 = vsel %vm804, %v717, 0
      %v830 = vsel %vm804, %v719, 0
      %v833 = vsel %vm804, %v721, 0
      %v836 = vsel %vm804, %v723, 0
      %v839 = vsel %vm804, %v725, 0
      %v842 = vsel %vm804, %v727, 0
      %v845 = vsel %vm804, %v729, 0
      %v848 = vsel %vm804, %v731, 0
      %v851 = vsel %vm804, %v733, 0
      %853 = vmatprep.subr.bf16.mxu0 0
      %854 = vmatpush1.bf16.msra.mxu0 %v786
      %855 = vmatprep.subr.bf16.mxu0 0
      %856 = vmatpush1.bf16.msra.mxu0 %v787
      %857 = vmatprep.subr.bf16.mxu0 0
      %858 = vmatpush1.bf16.msra.mxu0 %v788
      %859 = vmatprep.subr.bf16.mxu0 0
      %860 = vmatpush1.bf16.msra.mxu0 %v789
      %861 = vmatprep.subr.bf16.mxu0 0
      %862 = vmatpush1.bf16.msra.mxu0 %v790
      %863 = vmatprep.subr.bf16.mxu0 0
      %864 = vmatpush1.bf16.msra.mxu0 %v791
      %865 = vmatprep.subr.bf16.mxu0 0
      %866 = vmatpush1.bf16.msra.mxu0 %v792
      %867 = vmatprep.subr.bf16.mxu0 0
      %868 = vmatpush1.bf16.msra.mxu0 %v793
      %869 = vmatprep.subr.bf16.mxu0 0
      %870 = vmatpush1.bf16.msra.mxu0 %v794
      %871 = vmatprep.subr.bf16.mxu0 0
      %872 = vmatpush1.bf16.msra.mxu0 0
      %873 = vmatprep.subr.bf16.mxu0 0
      %874 = vmatpush1.bf16.msra.mxu0 0
      %875 = vmatprep.subr.bf16.mxu0 0
      %876 = vmatpush1.bf16.msra.mxu0 0
      %877 = vmatprep.subr.bf16.mxu0 0
      %878 = vmatpush1.bf16.msra.mxu0 0
      %879 = vmatprep.subr.bf16.mxu0 0
      %880 = vmatpush1.bf16.msra.mxu0 0
      %881 = vmatprep.subr.bf16.mxu0 0
      %882 = vmatpush1.bf16.msra.mxu0 0
      %883 = vmatprep.subr.bf16.mxu0 0
      %884 = vmatpush1.bf16.msra.mxu0 0
      %885 = vmatprep.mubr.bf16.mxu0 %v806
      %886 = vmatmul.mubr.bf16.gmra.mrb[0].mxu0 %v702
      %v887 = vpop.f32.mrb[0].mxu0
      %v888 = vadd.f32 0.0, %v887
      %v889 = vpop.f32.mrb[0].mxu0
      %v890 = vpop.f32.mrb[0].mxu0
      %v891 = vadd.f32 0.0, %v890
      %v892 = vpop.f32.mrb[0].mxu0
      %893 = vmatprep.mubr.bf16.mxu0 %v809
      %894 = vmatmul.mubr.bf16.gmra.mrb[0].mxu0 %v704
      %v895 = vpop.f32.mrb[0].mxu0
      %v896 = vadd.f32 0.0, %v895
      %v897 = vpop.f32.mrb[0].mxu0
      %v898 = vpop.f32.mrb[0].mxu0
      %v899 = vadd.f32 0.0, %v898
      %v900 = vpop.f32.mrb[0].mxu0
      %901 = vmatprep.mubr.bf16.mxu0 %v812
      %902 = vmatmul.mubr.bf16.gmra.mrb[0].mxu0 %v706
      %v903 = vpop.f32.mrb[0].mxu0
      %v904 = vadd.f32 0.0, %v903
      %v905 = vpop.f32.mrb[0].mxu0
      %v906 = vpop.f32.mrb[0].mxu0
      %v907 = vadd.f32 0.0, %v906
      %v908 = vpop.f32.mrb[0].mxu0
      %909 = vmatprep.mubr.bf16.mxu0 %v815
      %910 = vmatmul.mubr.bf16.gmra.mrb[0].mxu0 %v708
      %v911 = vpop.f32.mrb[0].mxu0
      %v912 = vadd.f32 0.0, %v911
      %v913 = vpop.f32.mrb[0].mxu0
      %v914 = vpop.f32.mrb[0].mxu0
      %v915 = vadd.f32 0.0, %v914
      %v916 = vpop.f32.mrb[0].mxu0
      %917 = vmatprep.mubr.bf16.mxu0 %v818
      %918 = vmatmul.mubr.bf16.gmra.mrb[0].mxu0 %v710
      %v919 = vpop.f32.mrb[0].mxu0
      %v920 = vadd.f32 0.0, %v919
      %v921 = vpop.f32.mrb[0].mxu0
      %v922 = vpop.f32.mrb[0].mxu0
      %v923 = vadd.f32 0.0, %v922
      %v924 = vpop.f32.mrb[0].mxu0
      %925 = vmatprep.mubr.bf16.mxu0 %v821
      %926 = vmatmul.mubr.bf16.gmra.mrb[0].mxu0 %v712
      %v927 = vpop.f32.mrb[0].mxu0
      %v928 = vadd.f32 0.0, %v927
      %v929 = vpop.f32.mrb[0].mxu0
      %v930 = vpop.f32.mrb[0].mxu0
      %v931 = vadd.f32 0.0, %v930
      %v932 = vpop.f32.mrb[0].mxu0
      %933 = vmatprep.mubr.bf16.mxu0 %v824
      %934 = vmatmul.mubr.bf16.gmra.mrb[0].mxu0 %v714
      %v935 = vpop.f32.mrb[0].mxu0
      %v936 = vadd.f32 0.0, %v935
      %v937 = vpop.f32.mrb[0].mxu0
      %v938 = vpop.f32.mrb[0].mxu0
      %v939 = vadd.f32 0.0, %v938
      %v940 = vpop.f32.mrb[0].mxu0
      %941 = vmatprep.mubr.bf16.mxu0 %v827
      %942 = vmatmul.mubr.bf16.gmra.mrb[0].mxu0 %v716
      %v943 = vpop.f32.mrb[0].mxu0
      %v944 = vadd.f32 0.0, %v943
      %v945 = vpop.f32.mrb[0].mxu0
      %v946 = vpop.f32.mrb[0].mxu0
      %v947 = vadd.f32 0.0, %v946
      %v948 = vpop.f32.mrb[0].mxu0
      %949 = vmatprep.mubr.bf16.mxu0 %v830
      %950 = vmatmul.mubr.bf16.gmra.mrb[0].mxu0 %v718
      %v951 = vpop.f32.mrb[0].mxu0
      %v952 = vadd.f32 0.0, %v951
      %v953 = vpop.f32.mrb[0].mxu0
      %v954 = vpop.f32.mrb[0].mxu0
      %v955 = vadd.f32 0.0, %v954
      %v956 = vpop.f32.mrb[0].mxu0
      %957 = vmatprep.mubr.bf16.mxu0 %v833
      %958 = vmatmul.mubr.bf16.gmra.mrb[0].mxu0 %v720
      %v959 = vpop.f32.mrb[0].mxu0
      %v960 = vadd.f32 0.0, %v959
      %v961 = vpop.f32.mrb[0].mxu0
      %v962 = vpop.f32.mrb[0].mxu0
      %v963 = vadd.f32 0.0, %v962
      %v964 = vpop.f32.mrb[0].mxu0
      %965 = vmatprep.mubr.bf16.mxu0 %v836
      %966 = vmatmul.mubr.bf16.gmra.mrb[0].mxu0 %v722
      %v967 = vpop.f32.mrb[0].mxu0
      %v968 = vadd.f32 0.0, %v967
      %v969 = vpop.f32.mrb[0].mxu0
      %v970 = vpop.f32.mrb[0].mxu0
      %v971 = vadd.f32 0.0, %v970
      %v972 = vpop.f32.mrb[0].mxu0
      %973 = vmatprep.mubr.bf16.mxu0 %v839
      %974 = vmatmul.mubr.bf16.gmra.mrb[0].mxu0 %v724
      %v975 = vpop.f32.mrb[0].mxu0
      %v976 = vadd.f32 0.0, %v975
      %v977 = vpop.f32.mrb[0].mxu0
      %v978 = vpop.f32.mrb[0].mxu0
      %v979 = vadd.f32 0.0, %v978
      %v980 = vpop.f32.mrb[0].mxu0
      %981 = vmatprep.mubr.bf16.mxu0 %v842
      %982 = vmatmul.mubr.bf16.gmra.mrb[0].mxu0 %v726
      %v983 = vpop.f32.mrb[0].mxu0
      %v984 = vadd.f32 0.0, %v983
      %v985 = vpop.f32.mrb[0].mxu0
      %v986 = vpop.f32.mrb[0].mxu0
      %v987 = vadd.f32 0.0, %v986
      %v988 = vpop.f32.mrb[0].mxu0
      %989 = vmatprep.mubr.bf16.mxu0 %v845
      %990 = vmatmul.mubr.bf16.gmra.mrb[0].mxu0 %v728
      %v991 = vpop.f32.mrb[0].mxu0
      %v992 = vadd.f32 0.0, %v991
      %v993 = vpop.f32.mrb[0].mxu0
      %v994 = vpop.f32.mrb[0].mxu0
      %v995 = vadd.f32 0.0, %v994
      %v996 = vpop.f32.mrb[0].mxu0
      %997 = vmatprep.mubr.bf16.mxu0 %v848
      %998 = vmatmul.mubr.bf16.gmra.mrb[0].mxu0 %v730
      %v999 = vpop.f32.mrb[0].mxu0
      %v1000 = vadd.f32 0.0, %v999
      %v1001 = vpop.f32.mrb[0].mxu0
      %v1002 = vpop.f32.mrb[0].mxu0
      %v1003 = vadd.f32 0.0, %v1002
      %v1004 = vpop.f32.mrb[0].mxu0
      %1005 = vmatprep.mubr.bf16.mxu0 %v851
      %1006 = vmatmul.mubr.bf16.gmra.mrb[0].mxu0 %v732
      %v1007 = vpop.f32.mrb[0].mxu0
      %v1008 = vadd.f32 0.0, %v1007
      %v1009 = vpop.f32.mrb[0].mxu0
      %v1010 = vpop.f32.mrb[0].mxu0
      %v1011 = vadd.f32 0.0, %v1010
      %v1012 = vpop.f32.mrb[0].mxu0
      %1013 = vdwg.mxu0
      %v1046 = vunpack.c.l.b16 %v506
      %v1047 = vunpack.c.h.b16 %v506
      %v1048 = vunpack.c.l.b16 %v507
      %v1049 = vunpack.c.h.b16 %v507
      %v1050 = vunpack.c.l.b16 %v508
      %v1051 = vunpack.c.h.b16 %v508
      %v1052 = vunpack.c.l.b16 %v509
      %v1053 = vunpack.c.h.b16 %v509
      %v1054 = vunpack.c.l.b16 %v510
      %v1055 = vunpack.c.h.b16 %v510
      %v1056 = vunpack.c.l.b16 %v511
      %v1057 = vunpack.c.h.b16 %v511
      %v1058 = vunpack.c.l.b16 %v512
      %v1059 = vunpack.c.h.b16 %v512
      %v1060 = vunpack.c.l.b16 %v513
      %v1061 = vunpack.c.h.b16 %v513
      %v1062 = vunpack.c.l.b16 %v514
      %v1063 = vunpack.c.h.b16 %v514
      %v1064 = vunpack.c.l.b16 %v515
      %v1065 = vunpack.c.h.b16 %v515
      %v1066 = vunpack.c.l.b16 %v516
      %v1067 = vunpack.c.h.b16 %v516
      %v1068 = vunpack.c.l.b16 %v517
      %v1069 = vunpack.c.h.b16 %v517
      %v1070 = vunpack.c.l.b16 %v518
      %v1071 = vunpack.c.h.b16 %v518
      %v1072 = vunpack.c.l.b16 %v519
      %v1073 = vunpack.c.h.b16 %v519
      %v1074 = vunpack.c.l.b16 %v520
      %v1075 = vunpack.c.h.b16 %v520
      %v1076 = vunpack.c.l.b16 %v521
      %v1077 = vunpack.c.h.b16 %v521
      %v1078 = vunpack.c.l.b16 %v522
      %v1079 = vunpack.c.h.b16 %v522
      %v1080 = vunpack.c.l.b16 %v523
      %v1081 = vunpack.c.h.b16 %v523
      %v1082 = vunpack.c.l.b16 %v524
      %v1083 = vunpack.c.h.b16 %v524
      %v1084 = vunpack.c.l.b16 %v525
      %v1085 = vunpack.c.h.b16 %v525
      %v1086 = vunpack.c.l.b16 %v526
      %v1087 = vunpack.c.h.b16 %v526
      %v1088 = vunpack.c.l.b16 %v527
      %v1089 = vunpack.c.h.b16 %v527
      %v1090 = vunpack.c.l.b16 %v528
      %v1091 = vunpack.c.h.b16 %v528
      %v1092 = vunpack.c.l.b16 %v529
      %v1093 = vunpack.c.h.b16 %v529
      %v1094 = vunpack.c.l.b16 %v530
      %v1095 = vunpack.c.h.b16 %v530
      %v1096 = vunpack.c.l.b16 %v531
      %v1097 = vunpack.c.h.b16 %v531
      %v1098 = vunpack.c.l.b16 %v532
      %v1099 = vunpack.c.h.b16 %v532
      %v1100 = vunpack.c.l.b16 %v533
      %v1101 = vunpack.c.h.b16 %v533
      %v1102 = vunpack.c.l.b16 %v534
      %v1103 = vunpack.c.h.b16 %v534
      %v1104 = vunpack.c.l.b16 %v535
      %v1105 = vunpack.c.h.b16 %v535
      %v1106 = vunpack.c.l.b16 %v536
      %v1107 = vunpack.c.h.b16 %v536
      %v1108 = vunpack.c.l.b16 %v537
      %v1109 = vunpack.c.h.b16 %v537
      %v1110 = vpack.c.b16 %v1048, %v1046
      %v1111 = vpack.c.b16 %v1049, %v1047
      %v1112 = vpack.c.b16 %v1052, %v1050
      %v1113 = vpack.c.b16 %v1053, %v1051
      %v1114 = vpack.c.b16 %v1056, %v1054
      %v1115 = vpack.c.b16 %v1057, %v1055
      %v1116 = vpack.c.b16 %v1060, %v1058
      %v1117 = vpack.c.b16 %v1061, %v1059
      %v1118 = vpack.c.b16 %v1064, %v1062
      %v1119 = vpack.c.b16 %v1065, %v1063
      %v1120 = vpack.c.b16 %v1068, %v1066
      %v1121 = vpack.c.b16 %v1069, %v1067
      %v1122 = vpack.c.b16 %v1072, %v1070
      %v1123 = vpack.c.b16 %v1073, %v1071
      %v1124 = vpack.c.b16 %v1076, %v1074
      %v1125 = vpack.c.b16 %v1077, %v1075
      %v1126 = vpack.c.b16 %v1080, %v1078
      %v1127 = vpack.c.b16 %v1081, %v1079
      %v1128 = vpack.c.b16 %v1084, %v1082
      %v1129 = vpack.c.b16 %v1085, %v1083
      %v1130 = vpack.c.b16 %v1088, %v1086
      %v1131 = vpack.c.b16 %v1089, %v1087
      %v1132 = vpack.c.b16 %v1092, %v1090
      %v1133 = vpack.c.b16 %v1093, %v1091
      %v1134 = vpack.c.b16 %v1096, %v1094
      %v1135 = vpack.c.b16 %v1097, %v1095
      %v1136 = vpack.c.b16 %v1100, %v1098
      %v1137 = vpack.c.b16 %v1101, %v1099
      %v1138 = vpack.c.b16 %v1104, %v1102
      %v1139 = vpack.c.b16 %v1105, %v1103
      %v1140 = vpack.c.b16 %v1108, %v1106
      %v1141 = vpack.c.b16 %v1109, %v1107
      %v1176 = vunpack.c.l.b16 %v538
      %v1177 = vunpack.c.l.b16 %v539
      %v1178 = vunpack.c.l.b16 %v540
      %v1179 = vunpack.c.l.b16 %v541
      %v1180 = vunpack.c.l.b16 %v542
      %v1181 = vunpack.c.l.b16 %v543
      %v1182 = vunpack.c.l.b16 %v544
      %v1183 = vunpack.c.l.b16 %v545
      %v1184 = vunpack.c.l.b16 %v546
      %v1185 = vunpack.c.l.b16 %v547
      %v1186 = vunpack.c.l.b16 %v548
      %v1187 = vunpack.c.l.b16 %v549
      %v1188 = vunpack.c.l.b16 %v550
      %v1189 = vunpack.c.l.b16 %v551
      %v1190 = vunpack.c.l.b16 %v552
      %v1191 = vunpack.c.l.b16 %v553
      %v1192 = vunpack.c.l.b16 %v554
      %v1193 = vunpack.c.l.b16 %v555
      %v1194 = vpack.c.b16 %v1177, %v1176
      %v1195 = vpack.c.b16 %v1179, %v1178
      %v1196 = vpack.c.b16 %v1181, %v1180
      %v1197 = vpack.c.b16 %v1183, %v1182
      %v1198 = vpack.c.b16 %v1185, %v1184
      %v1199 = vpack.c.b16 %v1187, %v1186
      %v1200 = vpack.c.b16 %v1189, %v1188
      %v1201 = vpack.c.b16 %v1191, %v1190
      %v1202 = vpack.c.b16 %v1193, %v1192
      %v1213 = vsel %vm804, %v1111, 0
      %v1216 = vsel %vm804, %v1113, 0
      %v1219 = vsel %vm804, %v1115, 0
      %v1222 = vsel %vm804, %v1117, 0
      %v1225 = vsel %vm804, %v1119, 0
      %v1228 = vsel %vm804, %v1121, 0
      %v1231 = vsel %vm804, %v1123, 0
      %v1234 = vsel %vm804, %v1125, 0
      %v1237 = vsel %vm804, %v1127, 0
      %v1240 = vsel %vm804, %v1129, 0
      %v1243 = vsel %vm804, %v1131, 0
      %v1246 = vsel %vm804, %v1133, 0
      %v1249 = vsel %vm804, %v1135, 0
      %v1252 = vsel %vm804, %v1137, 0
      %v1255 = vsel %vm804, %v1139, 0
      %v1258 = vsel %vm804, %v1141, 0
      %1260 = vmatprep.subr.bf16.mxu0 0
      %1261 = vmatpush1.bf16.msra.mxu0 %v1194
      %1262 = vmatprep.subr.bf16.mxu0 0
      %1263 = vmatpush1.bf16.msra.mxu0 %v1195
      %1264 = vmatprep.subr.bf16.mxu0 0
      %1265 = vmatpush1.bf16.msra.mxu0 %v1196
      %1266 = vmatprep.subr.bf16.mxu0 0
      %1267 = vmatpush1.bf16.msra.mxu0 %v1197
      %1268 = vmatprep.subr.bf16.mxu0 0
      %1269 = vmatpush1.bf16.msra.mxu0 %v1198
      %1270 = vmatprep.subr.bf16.mxu0 0
      %1271 = vmatpush1.bf16.msra.mxu0 %v1199
      %1272 = vmatprep.subr.bf16.mxu0 0
      %1273 = vmatpush1.bf16.msra.mxu0 %v1200
      %1274 = vmatprep.subr.bf16.mxu0 0
      %1275 = vmatpush1.bf16.msra.mxu0 %v1201
      %1276 = vmatprep.subr.bf16.mxu0 0
      %1277 = vmatpush1.bf16.msra.mxu0 %v1202
      %1278 = vmatprep.subr.bf16.mxu0 0
      %1279 = vmatpush1.bf16.msra.mxu0 0
      %1280 = vmatprep.subr.bf16.mxu0 0
      %1281 = vmatpush1.bf16.msra.mxu0 0
      %1282 = vmatprep.subr.bf16.mxu0 0
      %1283 = vmatpush1.bf16.msra.mxu0 0
      %1284 = vmatprep.subr.bf16.mxu0 0
      %1285 = vmatpush1.bf16.msra.mxu0 0
      %1286 = vmatprep.subr.bf16.mxu0 0
      %1287 = vmatpush1.bf16.msra.mxu0 0
      %1288 = vmatprep.subr.bf16.mxu0 0
      %1289 = vmatpush1.bf16.msra.mxu0 0
      %1290 = vmatprep.subr.bf16.mxu0 0
      %1291 = vmatpush1.bf16.msra.mxu0 0
      %1292 = vmatprep.mubr.bf16.mxu0 %v1213
      %1293 = vmatmul.mubr.bf16.gmra.mrb[0].mxu0 %v1110
      %v1294 = vpop.f32.mrb[0].mxu0
      %v1295 = vadd.f32 %v888, %v1294
      %v1296 = vpop.f32.mrb[0].mxu0
      %v1297 = vpop.f32.mrb[0].mxu0
      %v1298 = vadd.f32 %v891, %v1297
      %v1299 = vpop.f32.mrb[0].mxu0
      %1300 = vmatprep.mubr.bf16.mxu0 %v1216
      %1301 = vmatmul.mubr.bf16.gmra.mrb[0].mxu0 %v1112
      %v1302 = vpop.f32.mrb[0].mxu0
      %v1303 = vadd.f32 %v896, %v1302
      %v1304 = vpop.f32.mrb[0].mxu0
      %v1305 = vpop.f32.mrb[0].mxu0
      %v1306 = vadd.f32 %v899, %v1305
      %v1307 = vpop.f32.mrb[0].mxu0
      %1308 = vmatprep.mubr.bf16.mxu0 %v1219
      %1309 = vmatmul.mubr.bf16.gmra.mrb[0].mxu0 %v1114
      %v1310 = vpop.f32.mrb[0].mxu0
      %v1311 = vadd.f32 %v904, %v1310
      %v1312 = vpop.f32.mrb[0].mxu0
      %v1313 = vpop.f32.mrb[0].mxu0
      %v1314 = vadd.f32 %v907, %v1313
      %v1315 = vpop.f32.mrb[0].mxu0
      %1316 = vmatprep.mubr.bf16.mxu0 %v1222
      %1317 = vmatmul.mubr.bf16.gmra.mrb[0].mxu0 %v1116
      %v1318 = vpop.f32.mrb[0].mxu0
      %v1319 = vadd.f32 %v912, %v1318
      %v1320 = vpop.f32.mrb[0].mxu0
      %v1321 = vpop.f32.mrb[0].mxu0
      %v1322 = vadd.f32 %v915, %v1321
      %v1323 = vpop.f32.mrb[0].mxu0
      %1324 = vmatprep.mubr.bf16.mxu0 %v1225
      %1325 = vmatmul.mubr.bf16.gmra.mrb[0].mxu0 %v1118
      %v1326 = vpop.f32.mrb[0].mxu0
      %v1327 = vadd.f32 %v920, %v1326
      %v1328 = vpop.f32.mrb[0].mxu0
      %v1329 = vpop.f32.mrb[0].mxu0
      %v1330 = vadd.f32 %v923, %v1329
      %v1331 = vpop.f32.mrb[0].mxu0
      %1332 = vmatprep.mubr.bf16.mxu0 %v1228
      %1333 = vmatmul.mubr.bf16.gmra.mrb[0].mxu0 %v1120
      %v1334 = vpop.f32.mrb[0].mxu0
      %v1335 = vadd.f32 %v928, %v1334
      %v1336 = vpop.f32.mrb[0].mxu0
      %v1337 = vpop.f32.mrb[0].mxu0
      %v1338 = vadd.f32 %v931, %v1337
      %v1339 = vpop.f32.mrb[0].mxu0
      %1340 = vmatprep.mubr.bf16.mxu0 %v1231
      %1341 = vmatmul.mubr.bf16.gmra.mrb[0].mxu0 %v1122
      %v1342 = vpop.f32.mrb[0].mxu0
      %v1343 = vadd.f32 %v936, %v1342
      %v1344 = vpop.f32.mrb[0].mxu0
      %v1345 = vpop.f32.mrb[0].mxu0
      %v1346 = vadd.f32 %v939, %v1345
      %v1347 = vpop.f32.mrb[0].mxu0
      %1348 = vmatprep.mubr.bf16.mxu0 %v1234
      %1349 = vmatmul.mubr.bf16.gmra.mrb[0].mxu0 %v1124
      %v1350 = vpop.f32.mrb[0].mxu0
      %v1351 = vadd.f32 %v944, %v1350
      %v1352 = vpop.f32.mrb[0].mxu0
      %v1353 = vpop.f32.mrb[0].mxu0
      %v1354 = vadd.f32 %v947, %v1353
      %v1355 = vpop.f32.mrb[0].mxu0
      %1356 = vmatprep.mubr.bf16.mxu0 %v1237
      %1357 = vmatmul.mubr.bf16.gmra.mrb[0].mxu0 %v1126
      %v1358 = vpop.f32.mrb[0].mxu0
      %v1359 = vadd.f32 %v952, %v1358
      %v1360 = vpop.f32.mrb[0].mxu0
      %v1361 = vpop.f32.mrb[0].mxu0
      %v1362 = vadd.f32 %v955, %v1361
      %v1363 = vpop.f32.mrb[0].mxu0
      %1364 = vmatprep.mubr.bf16.mxu0 %v1240
      %1365 = vmatmul.mubr.bf16.gmra.mrb[0].mxu0 %v1128
      %v1366 = vpop.f32.mrb[0].mxu0
      %v1367 = vadd.f32 %v960, %v1366
      %v1368 = vpop.f32.mrb[0].mxu0
      %v1369 = vpop.f32.mrb[0].mxu0
      %v1370 = vadd.f32 %v963, %v1369
      %v1371 = vpop.f32.mrb[0].mxu0
      %1372 = vmatprep.mubr.bf16.mxu0 %v1243
      %1373 = vmatmul.mubr.bf16.gmra.mrb[0].mxu0 %v1130
      %v1374 = vpop.f32.mrb[0].mxu0
      %v1375 = vadd.f32 %v968, %v1374
      %v1376 = vpop.f32.mrb[0].mxu0
      %v1377 = vpop.f32.mrb[0].mxu0
      %v1378 = vadd.f32 %v971, %v1377
      %v1379 = vpop.f32.mrb[0].mxu0
      %1380 = vmatprep.mubr.bf16.mxu0 %v1246
      %1381 = vmatmul.mubr.bf16.gmra.mrb[0].mxu0 %v1132
      %v1382 = vpop.f32.mrb[0].mxu0
      %v1383 = vadd.f32 %v976, %v1382
      %v1384 = vpop.f32.mrb[0].mxu0
      %v1385 = vpop.f32.mrb[0].mxu0
      %v1386 = vadd.f32 %v979, %v1385
      %v1387 = vpop.f32.mrb[0].mxu0
      %1388 = vmatprep.mubr.bf16.mxu0 %v1249
      %1389 = vmatmul.mubr.bf16.gmra.mrb[0].mxu0 %v1134
      %v1390 = vpop.f32.mrb[0].mxu0
      %v1391 = vadd.f32 %v984, %v1390
      %v1392 = vpop.f32.mrb[0].mxu0
      %v1393 = vpop.f32.mrb[0].mxu0
      %v1394 = vadd.f32 %v987, %v1393
      %v1395 = vpop.f32.mrb[0].mxu0
      %1396 = vmatprep.mubr.bf16.mxu0 %v1252
      %1397 = vmatmul.mubr.bf16.gmra.mrb[0].mxu0 %v1136
      %v1398 = vpop.f32.mrb[0].mxu0
      %v1399 = vadd.f32 %v992, %v1398
      %v1400 = vpop.f32.mrb[0].mxu0
      %v1401 = vpop.f32.mrb[0].mxu0
      %v1402 = vadd.f32 %v995, %v1401
      %v1403 = vpop.f32.mrb[0].mxu0
      %1404 = vmatprep.mubr.bf16.mxu0 %v1255
      %1405 = vmatmul.mubr.bf16.gmra.mrb[0].mxu0 %v1138
      %v1406 = vpop.f32.mrb[0].mxu0
      %v1407 = vadd.f32 %v1000, %v1406
      %v1408 = vpop.f32.mrb[0].mxu0
      %v1409 = vpop.f32.mrb[0].mxu0
      %v1410 = vadd.f32 %v1003, %v1409
      %v1411 = vpop.f32.mrb[0].mxu0
      %1412 = vmatprep.mubr.bf16.mxu0 %v1258
      %1413 = vmatmul.mubr.bf16.gmra.mrb[0].mxu0 %v1140
      %v1414 = vpop.f32.mrb[0].mxu0
      %v1415 = vadd.f32 %v1008, %v1414
      %v1416 = vpop.f32.mrb[0].mxu0
      %v1417 = vpop.f32.mrb[0].mxu0
      %v1418 = vadd.f32 %v1011, %v1417
      %v1419 = vpop.f32.mrb[0].mxu0
      %1420 = vdwg.mxu0
      %v1421 = vld [vmem:[%s486] sm:$0xff]
      %v1422 = vld [vmem:[%s486 + $0x8] sm:$0xff]
      %v1423 = vld [vmem:[%s486 + $0x10] sm:$0xff]
      %v1424 = vld [vmem:[%s486 + $0x18] sm:$0xff]
      %v1425 = vld [vmem:[%s486 + $0x20] sm:$0xff]
      %v1426 = vld [vmem:[%s486 + $0x28] sm:$0xff]
      %v1427 = vld [vmem:[%s486 + $0x30] sm:$0xff]
      %v1428 = vld [vmem:[%s486 + $0x38] sm:$0xff]
      %v1429 = vld [vmem:[%s486 + $0x40] sm:$0xff]
      %v1430 = vld [vmem:[%s486 + $0x48] sm:$0xff]
      %v1431 = vld [vmem:[%s486 + $0x50] sm:$0xff]
      %v1432 = vld [vmem:[%s486 + $0x58] sm:$0xff]
      %v1433 = vld [vmem:[%s486 + $0x60] sm:$0xff]
      %v1434 = vld [vmem:[%s486 + $0x68] sm:$0xff]
      %v1435 = vld [vmem:[%s486 + $0x70] sm:$0xff]
      %v1436 = vld [vmem:[%s486 + $0x78] sm:$0xff]
      %v1437 = vld [vmem:[%s486 + $0x80] sm:$0xff]
      %v1438 = vld [vmem:[%s486 + $0x88] sm:$0xff]
      %v1439 = vld [vmem:[%s486 + $0x90] sm:$0xff]
      %v1440 = vld [vmem:[%s486 + $0x98] sm:$0xff]
      %v1441 = vld [vmem:[%s486 + $0xa0] sm:$0xff]
      %v1442 = vld [vmem:[%s486 + $0xa8] sm:$0xff]
      %v1443 = vld [vmem:[%s486 + $0xb0] sm:$0xff]
      %v1444 = vld [vmem:[%s486 + $0xb8] sm:$0xff]
      %v1445 = vld [vmem:[%s486 + $0xc0] sm:$0xff]
      %v1446 = vld [vmem:[%s486 + $0xc8] sm:$0xff]
      %v1447 = vld [vmem:[%s486 + $0xd0] sm:$0xff]
      %v1448 = vld [vmem:[%s486 + $0xd8] sm:$0xff]
      %v1449 = vld [vmem:[%s486 + $0xe0] sm:$0xff]
      %v1450 = vld [vmem:[%s486 + $0xe8] sm:$0xff]
      %v1451 = vld [vmem:[%s486 + $0xf0] sm:$0xff]
      %v1452 = vld [vmem:[%s486 + $0xf8] sm:$0xff]
      %v1453 = vld [vmem:[%s490] sm:$0xf]
      %v1454 = vld [vmem:[%s490 + $0x4] sm:$0xf]
      %v1455 = vld [vmem:[%s490 + $0x8] sm:$0xf]
      %v1456 = vld [vmem:[%s490 + $0xc] sm:$0xf]
      %v1457 = vld [vmem:[%s490 + $0x10] sm:$0xf]
      %v1458 = vld [vmem:[%s490 + $0x14] sm:$0xf]
      %v1459 = vld [vmem:[%s490 + $0x18] sm:$0xf]
      %v1460 = vld [vmem:[%s490 + $0x1c] sm:$0xf]
      %v1461 = vld [vmem:[%s490 + $0x20] sm:$0xf]
      %v1462 = vld [vmem:[%s490 + $0x24] sm:$0xf]
      %v1463 = vld [vmem:[%s490 + $0x28] sm:$0xf]
      %v1464 = vld [vmem:[%s490 + $0x2c] sm:$0xf]
      %v1465 = vld [vmem:[%s490 + $0x30] sm:$0xf]
      %v1466 = vld [vmem:[%s490 + $0x34] sm:$0xf]
      %v1467 = vld [vmem:[%s490 + $0x38] sm:$0xf]
      %v1468 = vld [vmem:[%s490 + $0x3c] sm:$0xf]
      %v1469 = vld [vmem:[%s490 + $0x40] sm:$0xf]
      %v1470 = vld [vmem:[%s490 + $0x44] sm:$0xf]
      %v1503 = vunpack.c.l.b16 %v1421
      %v1504 = vunpack.c.h.b16 %v1421
      %v1505 = vunpack.c.l.b16 %v1422
      %v1506 = vunpack.c.h.b16 %v1422
      %v1507 = vunpack.c.l.b16 %v1423
      %v1508 = vunpack.c.h.b16 %v1423
      %v1509 = vunpack.c.l.b16 %v1424
      %v1510 = vunpack.c.h.b16 %v1424
      %v1511 = vunpack.c.l.b16 %v1425
      %v1512 = vunpack.c.h.b16 %v1425
      %v1513 = vunpack.c.l.b16 %v1426
      %v1514 = vunpack.c.h.b16 %v1426
      %v1515 = vunpack.c.l.b16 %v1427
      %v1516 = vunpack.c.h.b16 %v1427
      %v1517 = vunpack.c.l.b16 %v1428
      %v1518 = vunpack.c.h.b16 %v1428
      %v1519 = vunpack.c.l.b16 %v1429
      %v1520 = vunpack.c.h.b16 %v1429
      %v1521 = vunpack.c.l.b16 %v1430
      %v1522 = vunpack.c.h.b16 %v1430
      %v1523 = vunpack.c.l.b16 %v1431
      %v1524 = vunpack.c.h.b16 %v1431
      %v1525 = vunpack.c.l.b16 %v1432
      %v1526 = vunpack.c.h.b16 %v1432
      %v1527 = vunpack.c.l.b16 %v1433
      %v1528 = vunpack.c.h.b16 %v1433
      %v1529 = vunpack.c.l.b16 %v1434
      %v1530 = vunpack.c.h.b16 %v1434
      %v1531 = vunpack.c.l.b16 %v1435
      %v1532 = vunpack.c.h.b16 %v1435
      %v1533 = vunpack.c.l.b16 %v1436
      %v1534 = vunpack.c.h.b16 %v1436
      %v1535 = vunpack.c.l.b16 %v1437
      %v1536 = vunpack.c.h.b16 %v1437
      %v1537 = vunpack.c.l.b16 %v1438
      %v1538 = vunpack.c.h.b16 %v1438
      %v1539 = vunpack.c.l.b16 %v1439
      %v1540 = vunpack.c.h.b16 %v1439
      %v1541 = vunpack.c.l.b16 %v1440
      %v1542 = vunpack.c.h.b16 %v1440
      %v1543 = vunpack.c.l.b16 %v1441
      %v1544 = vunpack.c.h.b16 %v1441
      %v1545 = vunpack.c.l.b16 %v1442
      %v1546 = vunpack.c.h.b16 %v1442
      %v1547 = vunpack.c.l.b16 %v1443
      %v1548 = vunpack.c.h.b16 %v1443
      %v1549 = vunpack.c.l.b16 %v1444
      %v1550 = vunpack.c.h.b16 %v1444
      %v1551 = vunpack.c.l.b16 %v1445
      %v1552 = vunpack.c.h.b16 %v1445
      %v1553 = vunpack.c.l.b16 %v1446
      %v1554 = vunpack.c.h.b16 %v1446
      %v1555 = vunpack.c.l.b16 %v1447
      %v1556 = vunpack.c.h.b16 %v1447
      %v1557 = vunpack.c.l.b16 %v1448
      %v1558 = vunpack.c.h.b16 %v1448
      %v1559 = vunpack.c.l.b16 %v1449
      %v1560 = vunpack.c.h.b16 %v1449
      %v1561 = vunpack.c.l.b16 %v1450
      %v1562 = vunpack.c.h.b16 %v1450
      %v1563 = vunpack.c.l.b16 %v1451
      %v1564 = vunpack.c.h.b16 %v1451
      %v1565 = vunpack.c.l.b16 %v1452
      %v1566 = vunpack.c.h.b16 %v1452
      %v1567 = vpack.c.b16 %v1505, %v1503
      %v1568 = vpack.c.b16 %v1506, %v1504
      %v1569 = vpack.c.b16 %v1509, %v1507
      %v1570 = vpack.c.b16 %v1510, %v1508
      %v1571 = vpack.c.b16 %v1513, %v1511
      %v1572 = vpack.c.b16 %v1514, %v1512
      %v1573 = vpack.c.b16 %v1517, %v1515
      %v1574 = vpack.c.b16 %v1518, %v1516
      %v1575 = vpack.c.b16 %v1521, %v1519
      %v1576 = vpack.c.b16 %v1522, %v1520
      %v1577 = vpack.c.b16 %v1525, %v1523
      %v1578 = vpack.c.b16 %v1526, %v1524
      %v1579 = vpack.c.b16 %v1529, %v1527
      %v1580 = vpack.c.b16 %v1530, %v1528
      %v1581 = vpack.c.b16 %v1533, %v1531
      %v1582 = vpack.c.b16 %v1534, %v1532
      %v1583 = vpack.c.b16 %v1537, %v1535
      %v1584 = vpack.c.b16 %v1538, %v1536
      %v1585 = vpack.c.b16 %v1541, %v1539
      %v1586 = vpack.c.b16 %v1542, %v1540
      %v1587 = vpack.c.b16 %v1545, %v1543
      %v1588 = vpack.c.b16 %v1546, %v1544
      %v1589 = vpack.c.b16 %v1549, %v1547
      %v1590 = vpack.c.b16 %v1550, %v1548
      %v1591 = vpack.c.b16 %v1553, %v1551
      %v1592 = vpack.c.b16 %v1554, %v1552
      %v1593 = vpack.c.b16 %v1557, %v1555
      %v1594 = vpack.c.b16 %v1558, %v1556
      %v1595 = vpack.c.b16 %v1561, %v1559
      %v1596 = vpack.c.b16 %v1562, %v1560
      %v1597 = vpack.c.b16 %v1565, %v1563
      %v1598 = vpack.c.b16 %v1566, %v1564
      %v1633 = vunpack.c.l.b16 %v1453
      %v1634 = vunpack.c.l.b16 %v1454
      %v1635 = vunpack.c.l.b16 %v1455
      %v1636 = vunpack.c.l.b16 %v1456
      %v1637 = vunpack.c.l.b16 %v1457
      %v1638 = vunpack.c.l.b16 %v1458
      %v1639 = vunpack.c.l.b16 %v1459
      %v1640 = vunpack.c.l.b16 %v1460
      %v1641 = vunpack.c.l.b16 %v1461
      %v1642 = vunpack.c.l.b16 %v1462
      %v1643 = vunpack.c.l.b16 %v1463
      %v1644 = vunpack.c.l.b16 %v1464
      %v1645 = vunpack.c.l.b16 %v1465
      %v1646 = vunpack.c.l.b16 %v1466
      %v1647 = vunpack.c.l.b16 %v1467
      %v1648 = vunpack.c.l.b16 %v1468
      %v1649 = vunpack.c.l.b16 %v1469
      %v1650 = vunpack.c.l.b16 %v1470
      %v1651 = vpack.c.b16 %v1634, %v1633
      %v1652 = vpack.c.b16 %v1636, %v1635
      %v1653 = vpack.c.b16 %v1638, %v1637
      %v1654 = vpack.c.b16 %v1640, %v1639
      %v1655 = vpack.c.b16 %v1642, %v1641
      %v1656 = vpack.c.b16 %v1644, %v1643
      %v1657 = vpack.c.b16 %v1646, %v1645
      %v1658 = vpack.c.b16 %v1648, %v1647
      %v1659 = vpack.c.b16 %v1650, %v1649
      %v1670 = vsel %vm804, %v1568, 0
      %v1673 = vsel %vm804, %v1570, 0
      %v1676 = vsel %vm804, %v1572, 0
      %v1679 = vsel %vm804, %v1574, 0
      %v1682 = vsel %vm804, %v1576, 0
      %v1685 = vsel %vm804, %v1578, 0
      %v1688 = vsel %vm804, %v1580, 0
      %v1691 = vsel %vm804, %v1582, 0
      %v1694 = vsel %vm804, %v1584, 0
      %v1697 = vsel %vm804, %v1586, 0
      %v1700 = vsel %vm804, %v1588, 0
      %v1703 = vsel %vm804, %v1590, 0
      %v1706 = vsel %vm804, %v1592, 0
      %v1709 = vsel %vm804, %v1594, 0
      %v1712 = vsel %vm804, %v1596, 0
      %v1715 = vsel %vm804, %v1598, 0
      %1717 = vmatprep.subr.bf16.mxu0 0
      %1718 = vmatpush1.bf16.msra.mxu0 %v1651
      %1719 = vmatprep.subr.bf16.mxu0 0
      %1720 = vmatpush1.bf16.msra.mxu0 %v1652
      %1721 = vmatprep.subr.bf16.mxu0 0
      %1722 = vmatpush1.bf16.msra.mxu0 %v1653
      %1723 = vmatprep.subr.bf16.mxu0 0
      %1724 = vmatpush1.bf16.msra.mxu0 %v1654
      %1725 = vmatprep.subr.bf16.mxu0 0
      %1726 = vmatpush1.bf16.msra.mxu0 %v1655
      %1727 = vmatprep.subr.bf16.mxu0 0
      %1728 = vmatpush1.bf16.msra.mxu0 %v1656
      %1729 = vmatprep.subr.bf16.mxu0 0
      %1730 = vmatpush1.bf16.msra.mxu0 %v1657
      %1731 = vmatprep.subr.bf16.mxu0 0
      %1732 = vmatpush1.bf16.msra.mxu0 %v1658
      %1733 = vmatprep.subr.bf16.mxu0 0
      %1734 = vmatpush1.bf16.msra.mxu0 %v1659
      %1735 = vmatprep.subr.bf16.mxu0 0
      %1736 = vmatpush1.bf16.msra.mxu0 0
      %1737 = vmatprep.subr.bf16.mxu0 0
      %1738 = vmatpush1.bf16.msra.mxu0 0
      %1739 = vmatprep.subr.bf16.mxu0 0
      %1740 = vmatpush1.bf16.msra.mxu0 0
      %1741 = vmatprep.subr.bf16.mxu0 0
      %1742 = vmatpush1.bf16.msra.mxu0 0
      %1743 = vmatprep.subr.bf16.mxu0 0
      %1744 = vmatpush1.bf16.msra.mxu0 0
      %1745 = vmatprep.subr.bf16.mxu0 0
      %1746 = vmatpush1.bf16.msra.mxu0 0
      %1747 = vmatprep.subr.bf16.mxu0 0
      %1748 = vmatpush1.bf16.msra.mxu0 0
      %1749 = vmatprep.mubr.bf16.mxu0 %v1670
      %1750 = vmatmul.mubr.bf16.gmra.mrb[0].mxu0 %v1567
      %v1751 = vpop.f32.mrb[0].mxu0
      %v1752 = vadd.f32 0.0, %v1751
      %v1753 = vpop.f32.mrb[0].mxu0
      %v1754 = vpop.f32.mrb[0].mxu0
      %v1755 = vadd.f32 0.0, %v1754
      %v1756 = vpop.f32.mrb[0].mxu0
      %1757 = vmatprep.mubr.bf16.mxu0 %v1673
      %1758 = vmatmul.mubr.bf16.gmra.mrb[0].mxu0 %v1569
      %v1759 = vpop.f32.mrb[0].mxu0
      %v1760 = vadd.f32 0.0, %v1759
      %v1761 = vpop.f32.mrb[0].mxu0
      %v1762 = vpop.f32.mrb[0].mxu0
      %v1763 = vadd.f32 0.0, %v1762
      %v1764 = vpop.f32.mrb[0].mxu0
      %1765 = vmatprep.mubr.bf16.mxu0 %v1676
      %1766 = vmatmul.mubr.bf16.gmra.mrb[0].mxu0 %v1571
      %v1767 = vpop.f32.mrb[0].mxu0
      %v1768 = vadd.f32 0.0, %v1767
      %v1769 = vpop.f32.mrb[0].mxu0
      %v1770 = vpop.f32.mrb[0].mxu0
      %v1771 = vadd.f32 0.0, %v1770
      %v1772 = vpop.f32.mrb[0].mxu0
      %1773 = vmatprep.mubr.bf16.mxu0 %v1679
      %1774 = vmatmul.mubr.bf16.gmra.mrb[0].mxu0 %v1573
      %v1775 = vpop.f32.mrb[0].mxu0
      %v1776 = vadd.f32 0.0, %v1775
      %v1777 = vpop.f32.mrb[0].mxu0
      %v1778 = vpop.f32.mrb[0].mxu0
      %v1779 = vadd.f32 0.0, %v1778
      %v1780 = vpop.f32.mrb[0].mxu0
      %1781 = vmatprep.mubr.bf16.mxu0 %v1682
      %1782 = vmatmul.mubr.bf16.gmra.mrb[0].mxu0 %v1575
      %v1783 = vpop.f32.mrb[0].mxu0
      %v1784 = vadd.f32 0.0, %v1783
      %v1785 = vpop.f32.mrb[0].mxu0
      %v1786 = vpop.f32.mrb[0].mxu0
      %v1787 = vadd.f32 0.0, %v1786
      %v1788 = vpop.f32.mrb[0].mxu0
      %1789 = vmatprep.mubr.bf16.mxu0 %v1685
      %1790 = vmatmul.mubr.bf16.gmra.mrb[0].mxu0 %v1577
      %v1791 = vpop.f32.mrb[0].mxu0
      %v1792 = vadd.f32 0.0, %v1791
      %v1793 = vpop.f32.mrb[0].mxu0
      %v1794 = vpop.f32.mrb[0].mxu0
      %v1795 = vadd.f32 0.0, %v1794
      %v1796 = vpop.f32.mrb[0].mxu0
      %1797 = vmatprep.mubr.bf16.mxu0 %v1688
      %1798 = vmatmul.mubr.bf16.gmra.mrb[0].mxu0 %v1579
      %v1799 = vpop.f32.mrb[0].mxu0
      %v1800 = vadd.f32 0.0, %v1799
      %v1801 = vpop.f32.mrb[0].mxu0
      %v1802 = vpop.f32.mrb[0].mxu0
      %v1803 = vadd.f32 0.0, %v1802
      %v1804 = vpop.f32.mrb[0].mxu0
      %1805 = vmatprep.mubr.bf16.mxu0 %v1691
      %1806 = vmatmul.mubr.bf16.gmra.mrb[0].mxu0 %v1581
      %v1807 = vpop.f32.mrb[0].mxu0
      %v1808 = vadd.f32 0.0, %v1807
      %v1809 = vpop.f32.mrb[0].mxu0
      %v1810 = vpop.f32.mrb[0].mxu0
      %v1811 = vadd.f32 0.0, %v1810
      %v1812 = vpop.f32.mrb[0].mxu0
      %1813 = vmatprep.mubr.bf16.mxu0 %v1694
      %1814 = vmatmul.mubr.bf16.gmra.mrb[0].mxu0 %v1583
      %v1815 = vpop.f32.mrb[0].mxu0
      %v1816 = vadd.f32 0.0, %v1815
      %v1817 = vpop.f32.mrb[0].mxu0
      %v1818 = vpop.f32.mrb[0].mxu0
      %v1819 = vadd.f32 0.0, %v1818
      %v1820 = vpop.f32.mrb[0].mxu0
      %1821 = vmatprep.mubr.bf16.mxu0 %v1697
      %1822 = vmatmul.mubr.bf16.gmra.mrb[0].mxu0 %v1585
      %v1823 = vpop.f32.mrb[0].mxu0
      %v1824 = vadd.f32 0.0, %v1823
      %v1825 = vpop.f32.mrb[0].mxu0
      %v1826 = vpop.f32.mrb[0].mxu0
      %v1827 = vadd.f32 0.0, %v1826
      %v1828 = vpop.f32.mrb[0].mxu0
      %1829 = vmatprep.mubr.bf16.mxu0 %v1700
      %1830 = vmatmul.mubr.bf16.gmra.mrb[0].mxu0 %v1587
      %v1831 = vpop.f32.mrb[0].mxu0
      %v1832 = vadd.f32 0.0, %v1831
      %v1833 = vpop.f32.mrb[0].mxu0
      %v1834 = vpop.f32.mrb[0].mxu0
      %v1835 = vadd.f32 0.0, %v1834
      %v1836 = vpop.f32.mrb[0].mxu0
      %1837 = vmatprep.mubr.bf16.mxu0 %v1703
      %1838 = vmatmul.mubr.bf16.gmra.mrb[0].mxu0 %v1589
      %v1839 = vpop.f32.mrb[0].mxu0
      %v1840 = vadd.f32 0.0, %v1839
      %v1841 = vpop.f32.mrb[0].mxu0
      %v1842 = vpop.f32.mrb[0].mxu0
      %v1843 = vadd.f32 0.0, %v1842
      %v1844 = vpop.f32.mrb[0].mxu0
      %1845 = vmatprep.mubr.bf16.mxu0 %v1706
      %1846 = vmatmul.mubr.bf16.gmra.mrb[0].mxu0 %v1591
      %v1847 = vpop.f32.mrb[0].mxu0
      %v1848 = vadd.f32 0.0, %v1847
      %v1849 = vpop.f32.mrb[0].mxu0
      %v1850 = vpop.f32.mrb[0].mxu0
      %v1851 = vadd.f32 0.0, %v1850
      %v1852 = vpop.f32.mrb[0].mxu0
      %1853 = vmatprep.mubr.bf16.mxu0 %v1709
      %1854 = vmatmul.mubr.bf16.gmra.mrb[0].mxu0 %v1593
      %v1855 = vpop.f32.mrb[0].mxu0
      %v1856 = vadd.f32 0.0, %v1855
      %v1857 = vpop.f32.mrb[0].mxu0
      %v1858 = vpop.f32.mrb[0].mxu0
      %v1859 = vadd.f32 0.0, %v1858
      %v1860 = vpop.f32.mrb[0].mxu0
      %1861 = vmatprep.mubr.bf16.mxu0 %v1712
      %1862 = vmatmul.mubr.bf16.gmra.mrb[0].mxu0 %v1595
      %v1863 = vpop.f32.mrb[0].mxu0
      %v1864 = vadd.f32 0.0, %v1863
      %v1865 = vpop.f32.mrb[0].mxu0
      %v1866 = vpop.f32.mrb[0].mxu0
      %v1867 = vadd.f32 0.0, %v1866
      %v1868 = vpop.f32.mrb[0].mxu0
      %1869 = vmatprep.mubr.bf16.mxu0 %v1715
      %1870 = vmatmul.mubr.bf16.gmra.mrb[0].mxu0 %v1597
      %v1871 = vpop.f32.mrb[0].mxu0
      %v1872 = vadd.f32 0.0, %v1871
      %v1873 = vpop.f32.mrb[0].mxu0
      %v1874 = vpop.f32.mrb[0].mxu0
      %v1875 = vadd.f32 0.0, %v1874
      %v1876 = vpop.f32.mrb[0].mxu0
      %1877 = vdwg.mxu0
      %v1878 = vadd.f32 %v1295, %v1752
      %v1879 = vadd.f32 %v1298, %v1755
      %v1880 = vadd.f32 %v1303, %v1760
      %v1881 = vadd.f32 %v1306, %v1763
      %v1882 = vadd.f32 %v1311, %v1768
      %v1883 = vadd.f32 %v1314, %v1771
      %v1884 = vadd.f32 %v1319, %v1776
      %v1885 = vadd.f32 %v1322, %v1779
      %v1886 = vadd.f32 %v1327, %v1784
      %v1887 = vadd.f32 %v1330, %v1787
      %v1888 = vadd.f32 %v1335, %v1792
      %v1889 = vadd.f32 %v1338, %v1795
      %v1890 = vadd.f32 %v1343, %v1800
      %v1891 = vadd.f32 %v1346, %v1803
      %v1892 = vadd.f32 %v1351, %v1808
      %v1893 = vadd.f32 %v1354, %v1811
      %v1894 = vadd.f32 %v1359, %v1816
      %v1895 = vadd.f32 %v1362, %v1819
      %v1896 = vadd.f32 %v1367, %v1824
      %v1897 = vadd.f32 %v1370, %v1827
      %v1898 = vadd.f32 %v1375, %v1832
      %v1899 = vadd.f32 %v1378, %v1835
      %v1900 = vadd.f32 %v1383, %v1840
      %v1901 = vadd.f32 %v1386, %v1843
      %v1902 = vadd.f32 %v1391, %v1848
      %v1903 = vadd.f32 %v1394, %v1851
      %v1904 = vadd.f32 %v1399, %v1856
      %v1905 = vadd.f32 %v1402, %v1859
      %v1906 = vadd.f32 %v1407, %v1864
      %v1907 = vadd.f32 %v1410, %v1867
      %v1908 = vadd.f32 %v1415, %v1872
      %v1909 = vadd.f32 %v1418, %v1875
      %v1910 = vld [vmem:[%s6] sm:$0x1]
      %v1912 = vlaneseq
      %v1913 = vshrl.u32 %v1912, 7
      %v1914 = vsub.s32 0, %v1913
      %v1915 = vrot.slane %v1910, %v1914
      %v1917 = vmul.f32 %v1878, %v1915
      %v1918 = vmul.f32 %v1879, %v1915
      %v1919 = vmul.f32 %v1880, %v1915
      %v1920 = vmul.f32 %v1881, %v1915
      %v1921 = vmul.f32 %v1882, %v1915
      %v1922 = vmul.f32 %v1883, %v1915
      %v1923 = vmul.f32 %v1884, %v1915
      %v1924 = vmul.f32 %v1885, %v1915
      %v1925 = vmul.f32 %v1886, %v1915
      %v1926 = vmul.f32 %v1887, %v1915
      %v1927 = vmul.f32 %v1888, %v1915
      %v1928 = vmul.f32 %v1889, %v1915
      %v1929 = vmul.f32 %v1890, %v1915
      %v1930 = vmul.f32 %v1891, %v1915
      %v1931 = vmul.f32 %v1892, %v1915
      %v1932 = vmul.f32 %v1893, %v1915
      %v1933 = vmul.f32 %v1894, %v1915
      %v1934 = vmul.f32 %v1895, %v1915
      %v1935 = vmul.f32 %v1896, %v1915
      %v1936 = vmul.f32 %v1897, %v1915
      %v1937 = vmul.f32 %v1898, %v1915
      %v1938 = vmul.f32 %v1899, %v1915
      %v1939 = vmul.f32 %v1900, %v1915
      %v1940 = vmul.f32 %v1901, %v1915
      %v1941 = vmul.f32 %v1902, %v1915
      %v1942 = vmul.f32 %v1903, %v1915
      %v1943 = vmul.f32 %v1904, %v1915
      %v1944 = vmul.f32 %v1905, %v1915
      %v1945 = vmul.f32 %v1906, %v1915
      %v1946 = vmul.f32 %v1907, %v1915
      %v1947 = vmul.f32 %v1908, %v1915
      %v1948 = vmul.f32 %v1909, %v1915
      %v1949 = vld [vmem:[%s7] sm:$0x1]
      %v1951 = vlaneseq
      %v1952 = vshrl.u32 %v1951, 7
      %v1953 = vsub.s32 0, %v1952
      %v1954 = vrot.slane %v1949, %v1953
      %v1956 = vadd.f32 %v1917, %v1954
      %v1957 = vadd.f32 %v1918, %v1954
      %v1958 = vadd.f32 %v1919, %v1954
      %v1959 = vadd.f32 %v1920, %v1954
      %v1960 = vadd.f32 %v1921, %v1954
      %v1961 = vadd.f32 %v1922, %v1954
      %v1962 = vadd.f32 %v1923, %v1954
      %v1963 = vadd.f32 %v1924, %v1954
      %v1964 = vadd.f32 %v1925, %v1954
      %v1965 = vadd.f32 %v1926, %v1954
      %v1966 = vadd.f32 %v1927, %v1954
      %v1967 = vadd.f32 %v1928, %v1954
      %v1968 = vadd.f32 %v1929, %v1954
      %v1969 = vadd.f32 %v1930, %v1954
      %v1970 = vadd.f32 %v1931, %v1954
      %v1971 = vadd.f32 %v1932, %v1954
      %v1972 = vadd.f32 %v1933, %v1954
      %v1973 = vadd.f32 %v1934, %v1954
      %v1974 = vadd.f32 %v1935, %v1954
      %v1975 = vadd.f32 %v1936, %v1954
      %v1976 = vadd.f32 %v1937, %v1954
      %v1977 = vadd.f32 %v1938, %v1954
      %v1978 = vadd.f32 %v1939, %v1954
      %v1979 = vadd.f32 %v1940, %v1954
      %v1980 = vadd.f32 %v1941, %v1954
      %v1981 = vadd.f32 %v1942, %v1954
      %v1982 = vadd.f32 %v1943, %v1954
      %v1983 = vadd.f32 %v1944, %v1954
      %v1984 = vadd.f32 %v1945, %v1954
      %v1985 = vadd.f32 %v1946, %v1954
      %v1986 = vadd.f32 %v1947, %v1954
      %v1987 = vadd.f32 %v1948, %v1954
      %vm1988 = vcmp.gt.f32.partialorder %v1956, 0.0
      %vm1989 = vcmp.gt.f32.partialorder %v1957, 0.0
      %vm1990 = vcmp.gt.f32.partialorder %v1958, 0.0
      %vm1991 = vcmp.gt.f32.partialorder %v1959, 0.0
      %vm1992 = vcmp.gt.f32.partialorder %v1960, 0.0
      %vm1993 = vcmp.gt.f32.partialorder %v1961, 0.0
      %vm1994 = vcmp.gt.f32.partialorder %v1962, 0.0
      %vm1995 = vcmp.gt.f32.partialorder %v1963, 0.0
      %vm1996 = vcmp.gt.f32.partialorder %v1964, 0.0
      %vm1997 = vcmp.gt.f32.partialorder %v1965, 0.0
      %vm1998 = vcmp.gt.f32.partialorder %v1966, 0.0
      %vm1999 = vcmp.gt.f32.partialorder %v1967, 0.0
      %vm2000 = vcmp.gt.f32.partialorder %v1968, 0.0
      %vm2001 = vcmp.gt.f32.partialorder %v1969, 0.0
      %vm2002 = vcmp.gt.f32.partialorder %v1970, 0.0
      %vm2003 = vcmp.gt.f32.partialorder %v1971, 0.0
      %vm2004 = vcmp.gt.f32.partialorder %v1972, 0.0
      %vm2005 = vcmp.gt.f32.partialorder %v1973, 0.0
      %vm2006 = vcmp.gt.f32.partialorder %v1974, 0.0
      %vm2007 = vcmp.gt.f32.partialorder %v1975, 0.0
      %vm2008 = vcmp.gt.f32.partialorder %v1976, 0.0
      %vm2009 = vcmp.gt.f32.partialorder %v1977, 0.0
      %vm2010 = vcmp.gt.f32.partialorder %v1978, 0.0
      %vm2011 = vcmp.gt.f32.partialorder %v1979, 0.0
      %vm2012 = vcmp.gt.f32.partialorder %v1980, 0.0
      %vm2013 = vcmp.gt.f32.partialorder %v1981, 0.0
      %vm2014 = vcmp.gt.f32.partialorder %v1982, 0.0
      %vm2015 = vcmp.gt.f32.partialorder %v1983, 0.0
      %vm2016 = vcmp.gt.f32.partialorder %v1984, 0.0
      %vm2017 = vcmp.gt.f32.partialorder %v1985, 0.0
      %vm2018 = vcmp.gt.f32.partialorder %v1986, 0.0
      %vm2019 = vcmp.gt.f32.partialorder %v1987, 0.0
      %v2020 = vmul.f32 %v1956, 0.01
      %v2021 = vmul.f32 %v1957, 0.01
      %v2022 = vmul.f32 %v1958, 0.01
      %v2023 = vmul.f32 %v1959, 0.01
      %v2024 = vmul.f32 %v1960, 0.01
      %v2025 = vmul.f32 %v1961, 0.01
      %v2026 = vmul.f32 %v1962, 0.01
      %v2027 = vmul.f32 %v1963, 0.01
      %v2028 = vmul.f32 %v1964, 0.01
      %v2029 = vmul.f32 %v1965, 0.01
      %v2030 = vmul.f32 %v1966, 0.01
      %v2031 = vmul.f32 %v1967, 0.01
      %v2032 = vmul.f32 %v1968, 0.01
      %v2033 = vmul.f32 %v1969, 0.01
      %v2034 = vmul.f32 %v1970, 0.01
      %v2035 = vmul.f32 %v1971, 0.01
      %v2036 = vmul.f32 %v1972, 0.01
      %v2037 = vmul.f32 %v1973, 0.01
      %v2038 = vmul.f32 %v1974, 0.01
      %v2039 = vmul.f32 %v1975, 0.01
      %v2040 = vmul.f32 %v1976, 0.01
      %v2041 = vmul.f32 %v1977, 0.01
      %v2042 = vmul.f32 %v1978, 0.01
      %v2043 = vmul.f32 %v1979, 0.01
      %v2044 = vmul.f32 %v1980, 0.01
      %v2045 = vmul.f32 %v1981, 0.01
      %v2046 = vmul.f32 %v1982, 0.01
      %v2047 = vmul.f32 %v1983, 0.01
      %v2048 = vmul.f32 %v1984, 0.01
      %v2049 = vmul.f32 %v1985, 0.01
      %v2050 = vmul.f32 %v1986, 0.01
      %v2051 = vmul.f32 %v1987, 0.01
      %v2052 = vsel %vm1988, %v1956, %v2020
      %v2053 = vsel %vm1989, %v1957, %v2021
      %v2054 = vsel %vm1990, %v1958, %v2022
      %v2055 = vsel %vm1991, %v1959, %v2023
      %v2056 = vsel %vm1992, %v1960, %v2024
      %v2057 = vsel %vm1993, %v1961, %v2025
      %v2058 = vsel %vm1994, %v1962, %v2026
      %v2059 = vsel %vm1995, %v1963, %v2027
      %v2060 = vsel %vm1996, %v1964, %v2028
      %v2061 = vsel %vm1997, %v1965, %v2029
      %v2062 = vsel %vm1998, %v1966, %v2030
      %v2063 = vsel %vm1999, %v1967, %v2031
      %v2064 = vsel %vm2000, %v1968, %v2032
      %v2065 = vsel %vm2001, %v1969, %v2033
      %v2066 = vsel %vm2002, %v1970, %v2034
      %v2067 = vsel %vm2003, %v1971, %v2035
      %v2068 = vsel %vm2004, %v1972, %v2036
      %v2069 = vsel %vm2005, %v1973, %v2037
      %v2070 = vsel %vm2006, %v1974, %v2038
      %v2071 = vsel %vm2007, %v1975, %v2039
      %v2072 = vsel %vm2008, %v1976, %v2040
      %v2073 = vsel %vm2009, %v1977, %v2041
      %v2074 = vsel %vm2010, %v1978, %v2042
      %v2075 = vsel %vm2011, %v1979, %v2043
      %v2076 = vsel %vm2012, %v1980, %v2044
      %v2077 = vsel %vm2013, %v1981, %v2045
      %v2078 = vsel %vm2014, %v1982, %v2046
      %v2079 = vsel %vm2015, %v1983, %v2047
      %v2080 = vsel %vm2016, %v1984, %v2048
      %v2081 = vsel %vm2017, %v1985, %v2049
      %v2082 = vsel %vm2018, %v1986, %v2050
      %v2083 = vsel %vm2019, %v1987, %v2051
      %2084 = vst.msk [vmem:[%s503] sm:$0xff] %vm804, %v2052
      %2085 = vst.msk [vmem:[%s503 + $0x8] sm:$0xff] %vm804, %v2053
      %2086 = vst.msk [vmem:[%s503 + $0x10] sm:$0xff] %vm804, %v2054
      %2087 = vst.msk [vmem:[%s503 + $0x18] sm:$0xff] %vm804, %v2055
      %2088 = vst.msk [vmem:[%s503 + $0x20] sm:$0xff] %vm804, %v2056
      %2089 = vst.msk [vmem:[%s503 + $0x28] sm:$0xff] %vm804, %v2057
      %2090 = vst.msk [vmem:[%s503 + $0x30] sm:$0xff] %vm804, %v2058
      %2091 = vst.msk [vmem:[%s503 + $0x38] sm:$0xff] %vm804, %v2059
      %2092 = vst.msk [vmem:[%s503 + $0x40] sm:$0xff] %vm804, %v2060
      %2093 = vst.msk [vmem:[%s503 + $0x48] sm:$0xff] %vm804, %v2061
      %2094 = vst.msk [vmem:[%s503 + $0x50] sm:$0xff] %vm804, %v2062
      %2095 = vst.msk [vmem:[%s503 + $0x58] sm:$0xff] %vm804, %v2063
      %2096 = vst.msk [vmem:[%s503 + $0x60] sm:$0xff] %vm804, %v2064
      %2097 = vst.msk [vmem:[%s503 + $0x68] sm:$0xff] %vm804, %v2065
      %2098 = vst.msk [vmem:[%s503 + $0x70] sm:$0xff] %vm804, %v2066
      %2099 = vst.msk [vmem:[%s503 + $0x78] sm:$0xff] %vm804, %v2067
      %2100 = vst.msk [vmem:[%s503 + $0x80] sm:$0xff] %vm804, %v2068
      %2101 = vst.msk [vmem:[%s503 + $0x88] sm:$0xff] %vm804, %v2069
      %2102 = vst.msk [vmem:[%s503 + $0x90] sm:$0xff] %vm804, %v2070
      %2103 = vst.msk [vmem:[%s503 + $0x98] sm:$0xff] %vm804, %v2071
      %2104 = vst.msk [vmem:[%s503 + $0xa0] sm:$0xff] %vm804, %v2072
      %2105 = vst.msk [vmem:[%s503 + $0xa8] sm:$0xff] %vm804, %v2073
      %2106 = vst.msk [vmem:[%s503 + $0xb0] sm:$0xff] %vm804, %v2074
      %2107 = vst.msk [vmem:[%s503 + $0xb8] sm:$0xff] %vm804, %v2075
      %2108 = vst.msk [vmem:[%s503 + $0xc0] sm:$0xff] %vm804, %v2076
      %2109 = vst.msk [vmem:[%s503 + $0xc8] sm:$0xff] %vm804, %v2077
      %2110 = vst.msk [vmem:[%s503 + $0xd0] sm:$0xff] %vm804, %v2078
      %2111 = vst.msk [vmem:[%s503 + $0xd8] sm:$0xff] %vm804, %v2079
      %2112 = vst.msk [vmem:[%s503 + $0xe0] sm:$0xff] %vm804, %v2080
      %2113 = vst.msk [vmem:[%s503 + $0xe8] sm:$0xff] %vm804, %v2081
      %2114 = vst.msk [vmem:[%s503 + $0xf0] sm:$0xff] %vm804, %v2082
      %2115 = vst.msk [vmem:[%s503 + $0xf8] sm:$0xff] %vm804, %v2083
      %s2116 = smul.u32 32, %s26
      %p2117 = scmp.lt.s32.totalorder %s24, 1
      %s2118 = scalar_select %p2117, %s24, 1
      %p2119 = scmp.lt.s32.totalorder %s25, 7
      %s2120 = scalar_select %p2119, %s25, 7
      %p2121 = scmp.lt.s32.totalorder %s2116, 31
      %s2122 = scalar_select %p2121, %s2116, 31
      %s2123 = smul.addr %s2120, 32
      %s2124 = sadd.s32 %s2122, %s2123
      %s2125 = smul.addr %s2118, 256
      %s2126 = sadd.s32 %s2124, %s2125
      %s2127 = smul.addr %s2126, 8
      %s2128 = scalar_lea.vmem %s8, %s2127
      // Predicated region
      $region53: #{decoder_block_forward.3} parent=51 // pred_check
        %p2129 = pneg %p259
      $region54: #{decoder_block_forward.3} parent=51 // pred_check_branch
        %2131 = sbr.rel (%p2129) target = $region56
      $region55: #{decoder_block_forward.3} parent=51 // pred_region
        %s2132 = smul.u32 32, %s26
      $region56: #{decoder_block_forward.3} parent=51 // pred_fallthru
        _
    $region52: #{decoder_block_forward.3} parent=5 // pred_fallthru
      _
    %p2133 = scmp.le.s32.totalorder 2, %s14
    // Predicated region
    $region57: #{decoder_block_forward.3} parent=5 // pred_check
      %p2134 = pneg %p2133
    $region58: #{decoder_block_forward.3} parent=5 // pred_check_branch
      %2136 = sbr.rel (%p2134) target = $region60
    $region59: #{decoder_block_forward.3} parent=5 // pred_region
      %s2137 = ssub.s32 %s14, 2
      // Predicated region
      $region61: #{decoder_block_forward.3} parent=59 // pred_check
        %p2138 = pneg %p265
      $region62: #{decoder_block_forward.3} parent=59 // pred_check_branch
        %2140 = sbr.rel (%p2138) target = $region64
      $region63: #{decoder_block_forward.3} parent=59 // pred_region
        %s2141 = smul.u32 32, %s29
        %p2142 = scmp.lt.s32.totalorder %s27, 1
        %s2143 = scalar_select %p2142, %s27, 1
        %p2144 = scmp.lt.s32.totalorder %s28, 7
        %s2145 = scalar_select %p2144, %s28, 7
        %p2146 = scmp.lt.s32.totalorder %s2141, 31
        %s2147 = scalar_select %p2146, %s2141, 31
        %s2148 = smul.addr %s2145, 32
        %s2149 = sadd.s32 %s2147, %s2148
        %s2150 = smul.addr %s2143, 256
        %s2151 = sadd.s32 %s2149, %s2150
        %s2152 = smul.addr %s2151, 8
        %s2153 = scalar_lea.vmem %s8, %s2152
      $region64: #{decoder_block_forward.3} parent=59 // pred_fallthru
        _
    $region60: #{decoder_block_forward.3} parent=5 // pred_fallthru
      _
  $region6: #{decoder_block_forward.3} parent=0 // loop_footer
    %s18 = sadd.s32 1, %s14
  $region7: #{decoder_block_forward.3} parent=0 // loop_footer_branch
    %13 = sbr.rel target = $region3
  $region8: #{decoder_block_forward.3} parent=0 // loop_exit
    _

</llo_original>
